<compile_context>
chip_gen: v7x
topology: tpu7x:2x2x1
jax: 0.10.0
libtpu: 0.0.40
codegen_flags: <defaults>
</compile_context>

<pallas_src>
import functools
import math

import jax
import jax.numpy as jnp
from jax.experimental import pallas as pl
from jax.experimental.pallas import tpu as pltpu


HEAD_COUNT = 3
LN_EPS = 1e-5
GRP = 128          # per-head 128-lane group width (head_dim padded to 128)


def _gelu_tanh(x):
    # tanh approximation of gelu (|err| vs exact erf-gelu <= ~3e-3); runs on EUP.
    c = 0.7978845608028654  # sqrt(2/pi)
    return 0.5 * x * (1.0 + jnp.tanh(c * (x + 0.044715 * x * x * x)))


# ----------------------------------------------------------------------------
# Fused whole-stack kernel: one grid step per encoder layer.
# Residual stream lives in xs_ref (VMEM scratch) across layers.
# ----------------------------------------------------------------------------
def _encoder_stack_kernel(x_ref, wqkv_ref, w1_ref, w2_ref, vec_ref,
                          o_ref, xs_ref, *, batch, seq, d_actual,
                          head_count, eps):
    layer = pl.program_id(0)
    M, Dp = x_ref.shape
    Hp = w1_ref.shape[2]
    w3 = 3 * head_count * GRP
    inv_d = 1.0 / d_actual

    @pl.when(layer == 0)
    def _():
        xs_ref[...] = x_ref[...]            # seed the resident residual stream

    x = xs_ref[...]                          # (M, Dp) f32, padded lanes are 0

    # lane-validity mask so padded lanes never pollute LayerNorm statistics
    lane = jax.lax.broadcasted_iota(jnp.int32, (M, Dp), 1)
    valid = (lane < d_actual).astype(jnp.float32)

    vec = vec_ref[0]                         # (8, VW) packed small vectors
    bqkv = vec[0:1, :w3]                     # (1, 3*H*128) fused qkv bias
    b1 = vec[1:2, :Hp]                       # (1, Hp)
    b2 = vec[2:3, :Dp]                       # (1, Dp)
    gamma = vec[3:4, :Dp]                    # (1, Dp), zero on padded lanes
    beta = vec[4:5, :Dp]                     # (1, Dp), zero on padded lanes

    def layer_norm(z):
        # z has zeros on padded lanes -> sums only see the real d_actual lanes.
        mean = jnp.sum(z, axis=-1, keepdims=True) * inv_d
        zc = (z - mean) * valid
        var = jnp.sum(zc * zc, axis=-1, keepdims=True) * inv_d
        return zc * jax.lax.rsqrt(var + eps) * gamma + beta

    # ---- fused, head-aligned Q/K/V projection (scale folded into Q) ----
    qkv = jnp.dot(x.astype(jnp.bfloat16), wqkv_ref[0],
                  preferred_element_type=jnp.float32) + bqkv      # (M, 3*H*128)

    # ---- multi-head self attention: tiny per-batch / per-head static loops ----
    attn_rows = []
    for b in range(batch):                   # static unroll over batch
        r0 = b * seq
        acc = None
        for h in range(head_count):          # static unroll over heads
            base = 3 * h * GRP               # 128-lane aligned group offsets
            q = qkv[r0:r0 + seq, base:base + GRP].astype(jnp.bfloat16)
            k = qkv[r0:r0 + seq, base + GRP:base + 2 * GRP].astype(jnp.bfloat16)
            v = qkv[r0:r0 + seq, base + 2 * GRP:base + 3 * GRP].astype(jnp.bfloat16)
            # contract both operands on their lane dim (no explicit transpose)
            s = jax.lax.dot_general(q, k, (((1,), (1,)), ((), ())),
                                    preferred_element_type=jnp.float32)  # (S, S)
            s = s - jnp.max(s, axis=-1, keepdims=True)
            e = jnp.exp(s)
            p = e * pl.reciprocal(jnp.sum(e, axis=-1, keepdims=True), approx=True)
            pv = jnp.dot(p.astype(jnp.bfloat16), v,
                         preferred_element_type=jnp.float32)      # (S, 128)
            # V columns were pre-placed at the head's final output lanes, so
            # combining heads is a plain add (no concat / lane shuffle).
            acc = pv if acc is None else acc + pv
        attn_rows.append(acc)
    attn = jnp.concatenate(attn_rows, axis=0) if batch > 1 else attn_rows[0]

    # ---- first residual + (shared) LayerNorm ----
    resid1 = layer_norm(attn + x)

    # ---- feed-forward: fc1 + gelu + fc2 ----
    h1 = jnp.dot(resid1.astype(jnp.bfloat16), w1_ref[0],
                 preferred_element_type=jnp.float32) + b1          # (M, Hp)
    h1 = _gelu_tanh(h1)
    ff = jnp.dot(h1.astype(jnp.bfloat16), w2_ref[0],
                 preferred_element_type=jnp.float32) + b2          # (M, Dp)

    # ---- second residual + LayerNorm; carry result to the next layer ----
    out = layer_norm(resid1 + ff)
    xs_ref[...] = out

    @pl.when(layer == pl.num_programs(0) - 1)
    def _():
        o_ref[...] = out.astype(o_ref.dtype)


def encoder_forward(packed, x):
    """Run the fused encoder stack.  x: (B, S, token) f32."""
    B, S, D = x.shape
    wqkv, w1, w2, vecs = packed["wqkv"], packed["w1"], packed["w2"], packed["vecs"]
    L, Dp, W3 = wqkv.shape
    Hp = w1.shape[2]
    VW = vecs.shape[2]
    M = B * S

    # pad lanes once; the padded lane-dense representation is carried in VMEM
    xp = jnp.zeros((M, Dp), jnp.float32).at[:, :D].set(x.reshape(M, D))

    kernel = functools.partial(_encoder_stack_kernel, batch=B, seq=S,
                               d_actual=D, head_count=HEAD_COUNT, eps=LN_EPS)
    out = pl.pallas_call(
        kernel,
        out_shape=jax.ShapeDtypeStruct((M, Dp), jnp.float32),
        grid=(L,),
        in_specs=[
            pl.BlockSpec((M, Dp), lambda l: (0, 0)),          # activations (once)
            pl.BlockSpec((1, Dp, W3), lambda l: (l, 0, 0)),   # fused qkv weights
            pl.BlockSpec((1, Dp, Hp), lambda l: (l, 0, 0)),   # fc1 weights
            pl.BlockSpec((1, Hp, Dp), lambda l: (l, 0, 0)),   # fc2 weights
            pl.BlockSpec((1, 8, VW), lambda l: (l, 0, 0)),    # packed biases/LN
        ],
        out_specs=pl.BlockSpec((M, Dp), lambda l: (0, 0)),
        scratch_shapes=[pltpu.VMEM((M, Dp), jnp.float32)],    # resident residual
        compiler_params=pltpu.CompilerParams(
            dimension_semantics=("arbitrary",)),              # layers are sequential
    )(xp, wqkv, w1, w2, vecs)
    return out[:, :D].reshape(B, S, D)


# ----------------------------------------------------------------------------
# Parameter init (deterministic, PyTorch-style) + packing for TPU
# ----------------------------------------------------------------------------
def _init_linear(key, din, dout):
    bound = 1.0 / math.sqrt(din)
    kw, kb = jax.random.split(key)
    w = jax.random.uniform(kw, (din, dout), jnp.float32, -bound, bound)
    b = jax.random.uniform(kb, (dout,), jnp.float32, -bound, bound)
    return w, b


def init_encoder_params(key, token, hidden=1000, num_layers=1):
    params = []
    for l in range(num_layers):
        ks = jax.random.split(jax.random.fold_in(key, l), 5)
        params.append({
            "q": _init_linear(ks[0], token, token),
            "k": _init_linear(ks[1], token, token),
            "v": _init_linear(ks[2], token, token),
            "fc1": _init_linear(ks[3], token, hidden),
            "fc2": _init_linear(ks[4], hidden, token),
            # EncoderLayer uses ONE shared LayerNorm for both residual norms.
            "ln_g": jnp.ones((token,), jnp.float32),
            "ln_b": jnp.zeros((token,), jnp.float32),
        })
    return params


def _round_up(n, m):
    return ((n + m - 1) // m) * m


def pack_encoder_params(params, token, hidden):
    """Head-aligned QKV packing, 128-lane padding, scale folding, bf16 weights."""
    assert token % HEAD_COUNT == 0, "token dim must be divisible by head_count"
    hd = token // HEAD_COUNT
    Dp = _round_up(token, 128)
    Hp = _round_up(hidden, 128)
    # TODO(synk): packing assumes token <= 128 so all head outputs fit one group.
    assert Dp == GRP and token <= GRP
    W3 = 3 * HEAD_COUNT * GRP
    VW = max(W3, Hp)
    scale = 1.0 / math.sqrt(hd)

    wqkv_l, w1_l, w2_l, vec_l = [], [], [], []
    for layer in params:
        wq, bq = layer["q"]
        wk, bk = layer["k"]
        wv, bv = layer["v"]
        w1, b1 = layer["fc1"]
        w2, b2 = layer["fc2"]

        wqkv = jnp.zeros((Dp, W3), jnp.float32)
        brow = jnp.zeros((W3,), jnp.float32)
        for h in range(HEAD_COUNT):
            cs = slice(h * hd, (h + 1) * hd)
            base = 3 * h * GRP
            # Q (scaled) at lanes [0,hd) of its group
            wqkv = wqkv.at[:token, base:base + hd].set(wq[:, cs] * scale)
            brow = brow.at[base:base + hd].set(bq[cs] * scale)
            # K at lanes [0,hd) of its group
            wqkv = wqkv.at[:token, base + GRP:base + GRP + hd].set(wk[:, cs])
            brow = brow.at[base + GRP:base + GRP + hd].set(bk[cs])
            # V pre-placed at the head's FINAL output lanes [h*hd,(h+1)*hd)
            v0 = base + 2 * GRP + h * hd
            wqkv = wqkv.at[:token, v0:v0 + hd].set(wv[:, cs])
            brow = brow.at[v0:v0 + hd].set(bv[cs])

        vecs = jnp.zeros((8, VW), jnp.float32)
        vecs = vecs.at[0, :W3].set(brow)
        vecs = vecs.at[1, :hidden].set(b1)
        vecs = vecs.at[2, :token].set(b2)
        vecs = vecs.at[3, :token].set(layer["ln_g"])
        vecs = vecs.at[4, :token].set(layer["ln_b"])

        w1p = jnp.zeros((Dp, Hp), jnp.float32).at[:token, :hidden].set(w1)
        w2p = jnp.zeros((Hp, Dp), jnp.float32).at[:hidden, :token].set(w2)

        wqkv_l.append(wqkv.astype(jnp.bfloat16))
        w1_l.append(w1p.astype(jnp.bfloat16))
        w2_l.append(w2p.astype(jnp.bfloat16))
        vec_l.append(vecs)

    return {
        "wqkv": jnp.stack(wqkv_l),   # (L, Dp, 3*H*128) bf16
        "w1": jnp.stack(w1_l),       # (L, Dp, Hp) bf16
        "w2": jnp.stack(w2_l),       # (L, Hp, Dp) bf16
        "vecs": jnp.stack(vec_l),    # (L, 8, VW) f32
    }


# ----------------------------------------------------------------------------
# Pure-JAX f32 reference (faithful to the PyTorch module: exact erf-gelu)
# ----------------------------------------------------------------------------
def encoder_reference(params, x):
    B, S, D = x.shape
    hd = D // HEAD_COUNT

    def ln(z, g, b, eps=LN_EPS):
        m = jnp.mean(z, axis=-1, keepdims=True)
        v = jnp.mean((z - m) ** 2, axis=-1, keepdims=True)
        return (z - m) / jnp.sqrt(v + eps) * g + b

    def gelu_exact(z):
        return 0.5 * z * (1.0 + jax.scipy.special.erf(z * 0.7071067811865476))

    for layer in params:
        q = x @ layer["q"][0] + layer["q"][1]
        k = x @ layer["k"][0] + layer["k"][1]
        v = x @ layer["v"][0] + layer["v"][1]

        def sh(t):
            return t.reshape(B, S, HEAD_COUNT, hd).transpose(0, 2, 1, 3)

        qh, kh, vh = sh(q), sh(k), sh(v)
        scores = jnp.einsum("bhqd,bhkd->bhqk", qh, kh) / math.sqrt(hd)
        attn = jax.nn.softmax(scores, axis=-1)
        out = jnp.einsum("bhqk,bhkd->bhqd", attn, vh)
        out = out.transpose(0, 2, 1, 3).reshape(B, S, D)

        residual = ln(out + x, layer["ln_g"], layer["ln_b"])
        h = gelu_exact(residual @ layer["fc1"][0] + layer["fc1"][1])
        ff = h @ layer["fc2"][0] + layer["fc2"][1]
        x = ln(residual + ff, layer["ln_g"], layer["ln_b"])
    return x


# ----------------------------------------------------------------------------
if __name__ == "__main__":
    B, S, TOKEN = 2, 8, 96          # token divisible by head_count=3 -> head_dim=32
    HIDDEN = 1000                   # FeedForwardLayer inner dim (from the module)

    key = jax.random.PRNGKey(0)
    k_param, k_x = jax.random.split(key)
    x = jax.random.normal(k_x, (B, S, TOKEN), jnp.float32)

    # --- single layer (module default encoder_layer_num=1) ---
    params1 = init_encoder_params(k_param, TOKEN, HIDDEN, num_layers=1)
    packed1 = pack_encoder_params(params1, TOKEN, HIDDEN)
    out1 = jax.block_until_ready(encoder_forward(packed1, x))
    assert out1.shape == (B, S, TOKEN), out1.shape
    assert bool(jnp.all(jnp.isfinite(out1)))
    ref1 = encoder_reference(params1, x)
    err1 = float(jnp.max(jnp.abs(out1 - ref1)))
    assert bool(jnp.allclose(out1, ref1, rtol=5e-2, atol=5e-2)), err1

    # --- fused two-layer stack (exercises the layer grid axis / VMEM residual) ---
    params2 = init_encoder_params(k_param, TOKEN, HIDDEN, num_layers=2)
    packed2 = pack_encoder_params(params2, TOKEN, HIDDEN)
    out2 = jax.block_until_ready(encoder_forward(packed2, x))
    assert out2.shape == (B, S, TOKEN), out2.shape
    assert bool(jnp.all(jnp.isfinite(out2)))
    ref2 = encoder_reference(params2, x)
    err2 = float(jnp.max(jnp.abs(out2 - ref2)))
    assert bool(jnp.allclose(out2, ref2, rtol=1e-1, atol=1e-1)), err2

    print("KERNEL_OK")
</pallas_src>

<mosaic_0001>
module attributes {stable_mosaic.version = 11 : i64} {
  func.func @_encoder_stack_kernel(%arg0: i32, %arg1: memref<16x128xf32, #tpu.memory_space<vmem>>, %arg2: memref<1x128x1152xbf16, #tpu.memory_space<vmem>>, %arg3: memref<1x128x1024xbf16, #tpu.memory_space<vmem>>, %arg4: memref<1x1024x128xbf16, #tpu.memory_space<vmem>>, %arg5: memref<1x8x1152xf32, #tpu.memory_space<vmem>>, %arg6: memref<16x128xf32, #tpu.memory_space<vmem>>, %arg7: memref<16x128xf32, #tpu.memory_space<vmem>>) attributes {dimension_semantics = [#tpu.dimension_semantics<arbitrary>], iteration_bounds = array<i64: 1>, scalar_prefetch = 0 : i64, scratch_operands = 1 : i64, tpu.core_type = #tpu.core_type<tc>, window_params = [{pipeline_mode = #tpu.pipeline_mode<synchronous>, transform_indices = @transform_0, window_bounds = array<i64: 16, 128>}, {transform_indices = @transform_1, window_bounds = array<i64: 1, 128, 1152>}, {transform_indices = @transform_2, window_bounds = array<i64: 1, 128, 1024>}, {transform_indices = @transform_3, window_bounds = array<i64: 1, 1024, 128>}, {transform_indices = @transform_4, window_bounds = array<i64: 1, 8, 1152>}, {pipeline_mode = #tpu.pipeline_mode<synchronous>, transform_indices = @transform_5, window_bounds = array<i64: 16, 128>}]} {
    %c0_i32 = arith.constant 0 : i32
    %0 = arith.cmpi eq, %arg0, %c0_i32 : i32
    %1 = arith.extui %0 : i1 to i32
    %c0_i32_0 = arith.constant 0 : i32
    %2 = arith.cmpi ne, %1, %c0_i32_0 : i32
    scf.if %2 {
      %c0_58 = arith.constant 0 : index
      %c0_59 = arith.constant 0 : index
      %214 = vector.load %arg1[%c0_58, %c0_59] : memref<16x128xf32, #tpu.memory_space<vmem>>, vector<16x128xf32>
      %c0_60 = arith.constant 0 : index
      %c0_61 = arith.constant 0 : index
      %215 = vector.load %arg7[%c0_60, %c0_61] : memref<16x128xf32, #tpu.memory_space<vmem>>, vector<16x128xf32>
      tpu.vector_store %arg7[%c0_60, %c0_61], %214 {strides = array<i32>} : memref<16x128xf32, #tpu.memory_space<vmem>>, vector<16x128xf32>,
    } else {
    }
    %c0 = arith.constant 0 : index
    %c0_1 = arith.constant 0 : index
    %3 = vector.load %arg7[%c0, %c0_1] : memref<16x128xf32, #tpu.memory_space<vmem>>, vector<16x128xf32>
    %4 = tpu.iota {dimensions = array<i32: 1>} : vector<16x128xi32>
    %c96_i32 = arith.constant 96 : i32
    %5 = vector.broadcast %c96_i32 : i32 to vector<16x128xi32>
    %6 = arith.cmpi slt, %4, %5 : vector<16x128xi32>
    %7 = arith.extui %6 : vector<16x128xi1> to vector<16x128xi32>
    %8 = arith.sitofp %7 : vector<16x128xi32> to vector<16x128xf32>
    %c0_2 = arith.constant 0 : index
    %c0_3 = arith.constant 0 : index
    %c0_4 = arith.constant 0 : index
    %9 = vector.load %arg5[%c0_2, %c0_3, %c0_4] : memref<1x8x1152xf32, #tpu.memory_space<vmem>>, vector<1x8x1152xf32>
    %10 = vector.shape_cast %9 : vector<1x8x1152xf32> to vector<8x1152xf32>
    %11 = vector.extract_strided_slice %10 {offsets = [0, 0], sizes = [1, 1152], strides = [1, 1]} : vector<8x1152xf32> to vector<1x1152xf32>
    %12 = vector.extract_strided_slice %10 {offsets = [1, 0], sizes = [1, 1024], strides = [1, 1]} : vector<8x1152xf32> to vector<1x1024xf32>
    %13 = vector.extract_strided_slice %10 {offsets = [2, 0], sizes = [1, 128], strides = [1, 1]} : vector<8x1152xf32> to vector<1x128xf32>
    %14 = vector.extract_strided_slice %10 {offsets = [3, 0], sizes = [1, 128], strides = [1, 1]} : vector<8x1152xf32> to vector<1x128xf32>
    %15 = vector.extract_strided_slice %10 {offsets = [4, 0], sizes = [1, 128], strides = [1, 1]} : vector<8x1152xf32> to vector<1x128xf32>
    %16 = arith.truncf %3 : vector<16x128xf32> to vector<16x128xbf16>
    %c0_5 = arith.constant 0 : index
    %c0_6 = arith.constant 0 : index
    %c0_7 = arith.constant 0 : index
    %17 = vector.load %arg2[%c0_5, %c0_6, %c0_7] : memref<1x128x1152xbf16, #tpu.memory_space<vmem>>, vector<1x128x1152xbf16>
    %18 = vector.shape_cast %17 : vector<1x128x1152xbf16> to vector<128x1152xbf16>
    %cst = arith.constant dense<0.000000e+00> : vector<16x1152xf32>
    %19 = tpu.matmul %16, %18, %cst {dimension_numbers = #tpu.dot_dimension_numbers<[1], [0], [0], [1], [0, 0, 1, 1], [], []>} : vector<16x128xbf16>, vector<128x1152xbf16>, vector<16x1152xf32> -> vector<16x1152xf32>
    %20 = vector.broadcast %11 : vector<1x1152xf32> to vector<16x1152xf32>
    %21 = arith.addf %19, %20 : vector<16x1152xf32>
    %22 = vector.extract_strided_slice %21 {offsets = [0, 0], sizes = [8, 128], strides = [1, 1]} : vector<16x1152xf32> to vector<8x128xf32>
    %23 = arith.truncf %22 : vector<8x128xf32> to vector<8x128xbf16>
    %24 = vector.extract_strided_slice %21 {offsets = [0, 128], sizes = [8, 128], strides = [1, 1]} : vector<16x1152xf32> to vector<8x128xf32>
    %25 = arith.truncf %24 : vector<8x128xf32> to vector<8x128xbf16>
    %26 = vector.extract_strided_slice %21 {offsets = [0, 256], sizes = [8, 128], strides = [1, 1]} : vector<16x1152xf32> to vector<8x128xf32>
    %27 = arith.truncf %26 : vector<8x128xf32> to vector<8x128xbf16>
    %cst_8 = arith.constant dense<0.000000e+00> : vector<8x8xf32>
    %28 = tpu.matmul %23, %25, %cst_8 {dimension_numbers = #tpu.dot_dimension_numbers<[1], [1], [0], [0], [0, 0, 1, 0], [], []>} : vector<8x128xbf16>, vector<8x128xbf16>, vector<8x8xf32> -> vector<8x8xf32>
    %cst_9 = arith.constant dense<0xFF800000> : vector<8xf32>
    %29 = vector.multi_reduction <maximumf>, %28, %cst_9 [1] : vector<8x8xf32> to vector<8xf32>
    %30 = vector.shape_cast %29 : vector<8xf32> to vector<8x1xf32>
    %31 = vector.broadcast %30 : vector<8x1xf32> to vector<8x8xf32>
    %32 = arith.subf %28, %31 : vector<8x8xf32>
    %33 = math.exp %32 : vector<8x8xf32>
    %cst_10 = arith.constant dense<0.000000e+00> : vector<8xf32>
    %34 = vector.multi_reduction <add>, %33, %cst_10 [1] : vector<8x8xf32> to vector<8xf32>
    %35 = vector.shape_cast %34 : vector<8xf32> to vector<8x1xf32>
    %36 = tpu.reciprocal %35 {approx = true} : vector<8x1xf32> -> vector<8x1xf32>
    %37 = vector.broadcast %36 : vector<8x1xf32> to vector<8x8xf32>
    %38 = arith.mulf %33, %37 : vector<8x8xf32>
    %39 = arith.truncf %38 : vector<8x8xf32> to vector<8x8xbf16>
    %cst_11 = arith.constant dense<0.000000e+00> : vector<8x128xf32>
    %40 = tpu.matmul %39, %27, %cst_11 {dimension_numbers = #tpu.dot_dimension_numbers<[1], [0], [0], [1], [0, 0, 1, 1], [], []>} : vector<8x8xbf16>, vector<8x128xbf16>, vector<8x128xf32> -> vector<8x128xf32>
    %41 = vector.extract_strided_slice %21 {offsets = [0, 384], sizes = [8, 128], strides = [1, 1]} : vector<16x1152xf32> to vector<8x128xf32>
    %42 = arith.truncf %41 : vector<8x128xf32> to vector<8x128xbf16>
    %43 = vector.extract_strided_slice %21 {offsets = [0, 512], sizes = [8, 128], strides = [1, 1]} : vector<16x1152xf32> to vector<8x128xf32>
    %44 = arith.truncf %43 : vector<8x128xf32> to vector<8x128xbf16>
    %45 = vector.extract_strided_slice %21 {offsets = [0, 640], sizes = [8, 128], strides = [1, 1]} : vector<16x1152xf32> to vector<8x128xf32>
    %46 = arith.truncf %45 : vector<8x128xf32> to vector<8x128xbf16>
    %cst_12 = arith.constant dense<0.000000e+00> : vector<8x8xf32>
    %47 = tpu.matmul %42, %44, %cst_12 {dimension_numbers = #tpu.dot_dimension_numbers<[1], [1], [0], [0], [0, 0, 1, 0], [], []>} : vector<8x128xbf16>, vector<8x128xbf16>, vector<8x8xf32> -> vector<8x8xf32>
    %cst_13 = arith.constant dense<0xFF800000> : vector<8xf32>
    %48 = vector.multi_reduction <maximumf>, %47, %cst_13 [1] : vector<8x8xf32> to vector<8xf32>
    %49 = vector.shape_cast %48 : vector<8xf32> to vector<8x1xf32>
    %50 = vector.broadcast %49 : vector<8x1xf32> to vector<8x8xf32>
    %51 = arith.subf %47, %50 : vector<8x8xf32>
    %52 = math.exp %51 : vector<8x8xf32>
    %cst_14 = arith.constant dense<0.000000e+00> : vector<8xf32>
    %53 = vector.multi_reduction <add>, %52, %cst_14 [1] : vector<8x8xf32> to vector<8xf32>
    %54 = vector.shape_cast %53 : vector<8xf32> to vector<8x1xf32>
    %55 = tpu.reciprocal %54 {approx = true} : vector<8x1xf32> -> vector<8x1xf32>
    %56 = vector.broadcast %55 : vector<8x1xf32> to vector<8x8xf32>
    %57 = arith.mulf %52, %56 : vector<8x8xf32>
    %58 = arith.truncf %57 : vector<8x8xf32> to vector<8x8xbf16>
    %cst_15 = arith.constant dense<0.000000e+00> : vector<8x128xf32>
    %59 = tpu.matmul %58, %46, %cst_15 {dimension_numbers = #tpu.dot_dimension_numbers<[1], [0], [0], [1], [0, 0, 1, 1], [], []>} : vector<8x8xbf16>, vector<8x128xbf16>, vector<8x128xf32> -> vector<8x128xf32>
    %60 = arith.addf %40, %59 : vector<8x128xf32>
    %61 = vector.extract_strided_slice %21 {offsets = [0, 768], sizes = [8, 128], strides = [1, 1]} : vector<16x1152xf32> to vector<8x128xf32>
    %62 = arith.truncf %61 : vector<8x128xf32> to vector<8x128xbf16>
    %63 = vector.extract_strided_slice %21 {offsets = [0, 896], sizes = [8, 128], strides = [1, 1]} : vector<16x1152xf32> to vector<8x128xf32>
    %64 = arith.truncf %63 : vector<8x128xf32> to vector<8x128xbf16>
    %65 = vector.extract_strided_slice %21 {offsets = [0, 1024], sizes = [8, 128], strides = [1, 1]} : vector<16x1152xf32> to vector<8x128xf32>
    %66 = arith.truncf %65 : vector<8x128xf32> to vector<8x128xbf16>
    %cst_16 = arith.constant dense<0.000000e+00> : vector<8x8xf32>
    %67 = tpu.matmul %62, %64, %cst_16 {dimension_numbers = #tpu.dot_dimension_numbers<[1], [1], [0], [0], [0, 0, 1, 0], [], []>} : vector<8x128xbf16>, vector<8x128xbf16>, vector<8x8xf32> -> vector<8x8xf32>
    %cst_17 = arith.constant dense<0xFF800000> : vector<8xf32>
    %68 = vector.multi_reduction <maximumf>, %67, %cst_17 [1] : vector<8x8xf32> to vector<8xf32>
    %69 = vector.shape_cast %68 : vector<8xf32> to vector<8x1xf32>
    %70 = vector.broadcast %69 : vector<8x1xf32> to vector<8x8xf32>
    %71 = arith.subf %67, %70 : vector<8x8xf32>
    %72 = math.exp %71 : vector<8x8xf32>
    %cst_18 = arith.constant dense<0.000000e+00> : vector<8xf32>
    %73 = vector.multi_reduction <add>, %72, %cst_18 [1] : vector<8x8xf32> to vector<8xf32>
    %74 = vector.shape_cast %73 : vector<8xf32> to vector<8x1xf32>
    %75 = tpu.reciprocal %74 {approx = true} : vector<8x1xf32> -> vector<8x1xf32>
    %76 = vector.broadcast %75 : vector<8x1xf32> to vector<8x8xf32>
    %77 = arith.mulf %72, %76 : vector<8x8xf32>
    %78 = arith.truncf %77 : vector<8x8xf32> to vector<8x8xbf16>
    %cst_19 = arith.constant dense<0.000000e+00> : vector<8x128xf32>
    %79 = tpu.matmul %78, %66, %cst_19 {dimension_numbers = #tpu.dot_dimension_numbers<[1], [0], [0], [1], [0, 0, 1, 1], [], []>} : vector<8x8xbf16>, vector<8x128xbf16>, vector<8x128xf32> -> vector<8x128xf32>
    %80 = arith.addf %60, %79 : vector<8x128xf32>
    %81 = vector.extract_strided_slice %21 {offsets = [8, 0], sizes = [8, 128], strides = [1, 1]} : vector<16x1152xf32> to vector<8x128xf32>
    %82 = arith.truncf %81 : vector<8x128xf32> to vector<8x128xbf16>
    %83 = vector.extract_strided_slice %21 {offsets = [8, 128], sizes = [8, 128], strides = [1, 1]} : vector<16x1152xf32> to vector<8x128xf32>
    %84 = arith.truncf %83 : vector<8x128xf32> to vector<8x128xbf16>
    %85 = vector.extract_strided_slice %21 {offsets = [8, 256], sizes = [8, 128], strides = [1, 1]} : vector<16x1152xf32> to vector<8x128xf32>
    %86 = arith.truncf %85 : vector<8x128xf32> to vector<8x128xbf16>
    %cst_20 = arith.constant dense<0.000000e+00> : vector<8x8xf32>
    %87 = tpu.matmul %82, %84, %cst_20 {dimension_numbers = #tpu.dot_dimension_numbers<[1], [1], [0], [0], [0, 0, 1, 0], [], []>} : vector<8x128xbf16>, vector<8x128xbf16>, vector<8x8xf32> -> vector<8x8xf32>
    %cst_21 = arith.constant dense<0xFF800000> : vector<8xf32>
    %88 = vector.multi_reduction <maximumf>, %87, %cst_21 [1] : vector<8x8xf32> to vector<8xf32>
    %89 = vector.shape_cast %88 : vector<8xf32> to vector<8x1xf32>
    %90 = vector.broadcast %89 : vector<8x1xf32> to vector<8x8xf32>
    %91 = arith.subf %87, %90 : vector<8x8xf32>
    %92 = math.exp %91 : vector<8x8xf32>
    %cst_22 = arith.constant dense<0.000000e+00> : vector<8xf32>
    %93 = vector.multi_reduction <add>, %92, %cst_22 [1] : vector<8x8xf32> to vector<8xf32>
    %94 = vector.shape_cast %93 : vector<8xf32> to vector<8x1xf32>
    %95 = tpu.reciprocal %94 {approx = true} : vector<8x1xf32> -> vector<8x1xf32>
    %96 = vector.broadcast %95 : vector<8x1xf32> to vector<8x8xf32>
    %97 = arith.mulf %92, %96 : vector<8x8xf32>
    %98 = arith.truncf %97 : vector<8x8xf32> to vector<8x8xbf16>
    %cst_23 = arith.constant dense<0.000000e+00> : vector<8x128xf32>
    %99 = tpu.matmul %98, %86, %cst_23 {dimension_numbers = #tpu.dot_dimension_numbers<[1], [0], [0], [1], [0, 0, 1, 1], [], []>} : vector<8x8xbf16>, vector<8x128xbf16>, vector<8x128xf32> -> vector<8x128xf32>
    %100 = vector.extract_strided_slice %21 {offsets = [8, 384], sizes = [8, 128], strides = [1, 1]} : vector<16x1152xf32> to vector<8x128xf32>
    %101 = arith.truncf %100 : vector<8x128xf32> to vector<8x128xbf16>
    %102 = vector.extract_strided_slice %21 {offsets = [8, 512], sizes = [8, 128], strides = [1, 1]} : vector<16x1152xf32> to vector<8x128xf32>
    %103 = arith.truncf %102 : vector<8x128xf32> to vector<8x128xbf16>
    %104 = vector.extract_strided_slice %21 {offsets = [8, 640], sizes = [8, 128], strides = [1, 1]} : vector<16x1152xf32> to vector<8x128xf32>
    %105 = arith.truncf %104 : vector<8x128xf32> to vector<8x128xbf16>
    %cst_24 = arith.constant dense<0.000000e+00> : vector<8x8xf32>
    %106 = tpu.matmul %101, %103, %cst_24 {dimension_numbers = #tpu.dot_dimension_numbers<[1], [1], [0], [0], [0, 0, 1, 0], [], []>} : vector<8x128xbf16>, vector<8x128xbf16>, vector<8x8xf32> -> vector<8x8xf32>
    %cst_25 = arith.constant dense<0xFF800000> : vector<8xf32>
    %107 = vector.multi_reduction <maximumf>, %106, %cst_25 [1] : vector<8x8xf32> to vector<8xf32>
    %108 = vector.shape_cast %107 : vector<8xf32> to vector<8x1xf32>
    %109 = vector.broadcast %108 : vector<8x1xf32> to vector<8x8xf32>
    %110 = arith.subf %106, %109 : vector<8x8xf32>
    %111 = math.exp %110 : vector<8x8xf32>
    %cst_26 = arith.constant dense<0.000000e+00> : vector<8xf32>
    %112 = vector.multi_reduction <add>, %111, %cst_26 [1] : vector<8x8xf32> to vector<8xf32>
    %113 = vector.shape_cast %112 : vector<8xf32> to vector<8x1xf32>
    %114 = tpu.reciprocal %113 {approx = true} : vector<8x1xf32> -> vector<8x1xf32>
    %115 = vector.broadcast %114 : vector<8x1xf32> to vector<8x8xf32>
    %116 = arith.mulf %111, %115 : vector<8x8xf32>
    %117 = arith.truncf %116 : vector<8x8xf32> to vector<8x8xbf16>
    %cst_27 = arith.constant dense<0.000000e+00> : vector<8x128xf32>
    %118 = tpu.matmul %117, %105, %cst_27 {dimension_numbers = #tpu.dot_dimension_numbers<[1], [0], [0], [1], [0, 0, 1, 1], [], []>} : vector<8x8xbf16>, vector<8x128xbf16>, vector<8x128xf32> -> vector<8x128xf32>
    %119 = arith.addf %99, %118 : vector<8x128xf32>
    %120 = vector.extract_strided_slice %21 {offsets = [8, 768], sizes = [8, 128], strides = [1, 1]} : vector<16x1152xf32> to vector<8x128xf32>
    %121 = arith.truncf %120 : vector<8x128xf32> to vector<8x128xbf16>
    %122 = vector.extract_strided_slice %21 {offsets = [8, 896], sizes = [8, 128], strides = [1, 1]} : vector<16x1152xf32> to vector<8x128xf32>
    %123 = arith.truncf %122 : vector<8x128xf32> to vector<8x128xbf16>
    %124 = vector.extract_strided_slice %21 {offsets = [8, 1024], sizes = [8, 128], strides = [1, 1]} : vector<16x1152xf32> to vector<8x128xf32>
    %125 = arith.truncf %124 : vector<8x128xf32> to vector<8x128xbf16>
    %cst_28 = arith.constant dense<0.000000e+00> : vector<8x8xf32>
    %126 = tpu.matmul %121, %123, %cst_28 {dimension_numbers = #tpu.dot_dimension_numbers<[1], [1], [0], [0], [0, 0, 1, 0], [], []>} : vector<8x128xbf16>, vector<8x128xbf16>, vector<8x8xf32> -> vector<8x8xf32>
    %cst_29 = arith.constant dense<0xFF800000> : vector<8xf32>
    %127 = vector.multi_reduction <maximumf>, %126, %cst_29 [1] : vector<8x8xf32> to vector<8xf32>
    %128 = vector.shape_cast %127 : vector<8xf32> to vector<8x1xf32>
    %129 = vector.broadcast %128 : vector<8x1xf32> to vector<8x8xf32>
    %130 = arith.subf %126, %129 : vector<8x8xf32>
    %131 = math.exp %130 : vector<8x8xf32>
    %cst_30 = arith.constant dense<0.000000e+00> : vector<8xf32>
    %132 = vector.multi_reduction <add>, %131, %cst_30 [1] : vector<8x8xf32> to vector<8xf32>
    %133 = vector.shape_cast %132 : vector<8xf32> to vector<8x1xf32>
    %134 = tpu.reciprocal %133 {approx = true} : vector<8x1xf32> -> vector<8x1xf32>
    %135 = vector.broadcast %134 : vector<8x1xf32> to vector<8x8xf32>
    %136 = arith.mulf %131, %135 : vector<8x8xf32>
    %137 = arith.truncf %136 : vector<8x8xf32> to vector<8x8xbf16>
    %cst_31 = arith.constant dense<0.000000e+00> : vector<8x128xf32>
    %138 = tpu.matmul %137, %125, %cst_31 {dimension_numbers = #tpu.dot_dimension_numbers<[1], [0], [0], [1], [0, 0, 1, 1], [], []>} : vector<8x8xbf16>, vector<8x128xbf16>, vector<8x128xf32> -> vector<8x128xf32>
    %139 = arith.addf %119, %138 : vector<8x128xf32>
    %140 = tpu.concatenate %80, %139 in 0 : vector<8x128xf32>, vector<8x128xf32> -> vector<16x128xf32>
    %141 = arith.addf %140, %3 : vector<16x128xf32>
    %cst_32 = arith.constant dense<0.000000e+00> : vector<16xf32>
    %142 = vector.multi_reduction <add>, %141, %cst_32 [1] : vector<16x128xf32> to vector<16xf32>
    %143 = vector.shape_cast %142 : vector<16xf32> to vector<16x1xf32>
    %cst_33 = arith.constant 0.010416667 : f32
    %144 = vector.broadcast %cst_33 : f32 to vector<16x1xf32>
    %145 = arith.mulf %143, %144 : vector<16x1xf32>
    %146 = vector.broadcast %145 : vector<16x1xf32> to vector<16x128xf32>
    %147 = arith.subf %141, %146 : vector<16x128xf32>
    %148 = arith.mulf %147, %8 : vector<16x128xf32>
    %149 = arith.mulf %148, %148 : vector<16x128xf32>
    %cst_34 = arith.constant dense<0.000000e+00> : vector<16xf32>
    %150 = vector.multi_reduction <add>, %149, %cst_34 [1] : vector<16x128xf32> to vector<16xf32>
    %151 = vector.shape_cast %150 : vector<16xf32> to vector<16x1xf32>
    %cst_35 = arith.constant 0.010416667 : f32
    %152 = vector.broadcast %cst_35 : f32 to vector<16x1xf32>
    %153 = arith.mulf %151, %152 : vector<16x1xf32>
    %cst_36 = arith.constant 9.99999974E-6 : f32
    %154 = vector.broadcast %cst_36 : f32 to vector<16x1xf32>
    %155 = arith.addf %153, %154 : vector<16x1xf32>
    %156 = math.rsqrt %155 : vector<16x1xf32>
    %157 = vector.broadcast %156 : vector<16x1xf32> to vector<16x128xf32>
    %158 = arith.mulf %148, %157 : vector<16x128xf32>
    %159 = vector.broadcast %14 : vector<1x128xf32> to vector<16x128xf32>
    %160 = arith.mulf %158, %159 : vector<16x128xf32>
    %161 = vector.broadcast %15 : vector<1x128xf32> to vector<16x128xf32>
    %162 = arith.addf %160, %161 : vector<16x128xf32>
    %163 = arith.truncf %162 : vector<16x128xf32> to vector<16x128xbf16>
    %c0_37 = arith.constant 0 : index
    %c0_38 = arith.constant 0 : index
    %c0_39 = arith.constant 0 : index
    %164 = vector.load %arg3[%c0_37, %c0_38, %c0_39] : memref<1x128x1024xbf16, #tpu.memory_space<vmem>>, vector<1x128x1024xbf16>
    %165 = vector.shape_cast %164 : vector<1x128x1024xbf16> to vector<128x1024xbf16>
    %cst_40 = arith.constant dense<0.000000e+00> : vector<16x1024xf32>
    %166 = tpu.matmul %163, %165, %cst_40 {dimension_numbers = #tpu.dot_dimension_numbers<[1], [0], [0], [1], [0, 0, 1, 1], [], []>} : vector<16x128xbf16>, vector<128x1024xbf16>, vector<16x1024xf32> -> vector<16x1024xf32>
    %167 = vector.broadcast %12 : vector<1x1024xf32> to vector<16x1024xf32>
    %168 = arith.addf %166, %167 : vector<16x1024xf32>
    %cst_41 = arith.constant 5.000000e-01 : f32
    %169 = vector.broadcast %cst_41 : f32 to vector<16x1024xf32>
    %170 = arith.mulf %169, %168 : vector<16x1024xf32>
    %cst_42 = arith.constant 4.471500e-02 : f32
    %171 = vector.broadcast %cst_42 : f32 to vector<16x1024xf32>
    %172 = arith.mulf %171, %168 : vector<16x1024xf32>
    %173 = arith.mulf %172, %168 : vector<16x1024xf32>
    %174 = arith.mulf %173, %168 : vector<16x1024xf32>
    %175 = arith.addf %168, %174 : vector<16x1024xf32>
    %cst_43 = arith.constant 0.797884583 : f32
    %176 = vector.broadcast %cst_43 : f32 to vector<16x1024xf32>
    %177 = arith.mulf %176, %175 : vector<16x1024xf32>
    %178 = math.tanh %177 : vector<16x1024xf32>
    %cst_44 = arith.constant 1.000000e+00 : f32
    %179 = vector.broadcast %cst_44 : f32 to vector<16x1024xf32>
    %180 = arith.addf %179, %178 : vector<16x1024xf32>
    %181 = arith.mulf %170, %180 : vector<16x1024xf32>
    %182 = arith.truncf %181 : vector<16x1024xf32> to vector<16x1024xbf16>
    %c0_45 = arith.constant 0 : index
    %c0_46 = arith.constant 0 : index
    %c0_47 = arith.constant 0 : index
    %183 = vector.load %arg4[%c0_45, %c0_46, %c0_47] : memref<1x1024x128xbf16, #tpu.memory_space<vmem>>, vector<1x1024x128xbf16>
    %184 = vector.shape_cast %183 : vector<1x1024x128xbf16> to vector<1024x128xbf16>
    %cst_48 = arith.constant dense<0.000000e+00> : vector<16x128xf32>
    %185 = tpu.matmul %182, %184, %cst_48 {dimension_numbers = #tpu.dot_dimension_numbers<[1], [0], [0], [1], [0, 0, 1, 1], [], []>} : vector<16x1024xbf16>, vector<1024x128xbf16>, vector<16x128xf32> -> vector<16x128xf32>
    %186 = vector.broadcast %13 : vector<1x128xf32> to vector<16x128xf32>
    %187 = arith.addf %185, %186 : vector<16x128xf32>
    %188 = arith.addf %162, %187 : vector<16x128xf32>
    %cst_49 = arith.constant dense<0.000000e+00> : vector<16xf32>
    %189 = vector.multi_reduction <add>, %188, %cst_49 [1] : vector<16x128xf32> to vector<16xf32>
    %190 = vector.shape_cast %189 : vector<16xf32> to vector<16x1xf32>
    %cst_50 = arith.constant 0.010416667 : f32
    %191 = vector.broadcast %cst_50 : f32 to vector<16x1xf32>
    %192 = arith.mulf %190, %191 : vector<16x1xf32>
    %193 = vector.broadcast %192 : vector<16x1xf32> to vector<16x128xf32>
    %194 = arith.subf %188, %193 : vector<16x128xf32>
    %195 = arith.mulf %194, %8 : vector<16x128xf32>
    %196 = arith.mulf %195, %195 : vector<16x128xf32>
    %cst_51 = arith.constant dense<0.000000e+00> : vector<16xf32>
    %197 = vector.multi_reduction <add>, %196, %cst_51 [1] : vector<16x128xf32> to vector<16xf32>
    %198 = vector.shape_cast %197 : vector<16xf32> to vector<16x1xf32>
    %cst_52 = arith.constant 0.010416667 : f32
    %199 = vector.broadcast %cst_52 : f32 to vector<16x1xf32>
    %200 = arith.mulf %198, %199 : vector<16x1xf32>
    %cst_53 = arith.constant 9.99999974E-6 : f32
    %201 = vector.broadcast %cst_53 : f32 to vector<16x1xf32>
    %202 = arith.addf %200, %201 : vector<16x1xf32>
    %203 = math.rsqrt %202 : vector<16x1xf32>
    %204 = vector.broadcast %203 : vector<16x1xf32> to vector<16x128xf32>
    %205 = arith.mulf %195, %204 : vector<16x128xf32>
    %206 = vector.broadcast %14 : vector<1x128xf32> to vector<16x128xf32>
    %207 = arith.mulf %205, %206 : vector<16x128xf32>
    %208 = vector.broadcast %15 : vector<1x128xf32> to vector<16x128xf32>
    %209 = arith.addf %207, %208 : vector<16x128xf32>
    %c0_54 = arith.constant 0 : index
    %c0_55 = arith.constant 0 : index
    %210 = vector.load %arg7[%c0_54, %c0_55] : memref<16x128xf32, #tpu.memory_space<vmem>>, vector<16x128xf32>
    tpu.vector_store %arg7[%c0_54, %c0_55], %209 {strides = array<i32>} : memref<16x128xf32, #tpu.memory_space<vmem>>, vector<16x128xf32>,
    %c0_i32_56 = arith.constant 0 : i32
    %211 = arith.cmpi eq, %arg0, %c0_i32_56 : i32
    %212 = arith.extui %211 : i1 to i32
    %c0_i32_57 = arith.constant 0 : i32
    %213 = arith.cmpi ne, %212, %c0_i32_57 : i32
    scf.if %213 {
      %c0_58 = arith.constant 0 : index
      %c0_59 = arith.constant 0 : index
      %214 = vector.load %arg6[%c0_58, %c0_59] : memref<16x128xf32, #tpu.memory_space<vmem>>, vector<16x128xf32>
      tpu.vector_store %arg6[%c0_58, %c0_59], %209 {strides = array<i32>} : memref<16x128xf32, #tpu.memory_space<vmem>>, vector<16x128xf32>,
    } else {
    }
    return
  }
  func.func @transform_0(%arg0: i32) -> (i32, i32) {
    %c0_i32 = arith.constant 0 : i32
    %c0_i32_0 = arith.constant 0 : i32
    %c0_i32_1 = arith.constant 0 : i32
    return %c0_i32, %c0_i32_0 : i32, i32
  }
  func.func @transform_1(%arg0: i32) -> (i32, i32, i32) {
    %c0_i32 = arith.constant 0 : i32
    %c0_i32_0 = arith.constant 0 : i32
    %c0_i32_1 = arith.constant 0 : i32
    return %arg0, %c0_i32, %c0_i32_0 : i32, i32, i32
  }
  func.func @transform_2(%arg0: i32) -> (i32, i32, i32) {
    %c0_i32 = arith.constant 0 : i32
    %c0_i32_0 = arith.constant 0 : i32
    %c0_i32_1 = arith.constant 0 : i32
    return %arg0, %c0_i32, %c0_i32_0 : i32, i32, i32
  }
  func.func @transform_3(%arg0: i32) -> (i32, i32, i32) {
    %c0_i32 = arith.constant 0 : i32
    %c0_i32_0 = arith.constant 0 : i32
    %c0_i32_1 = arith.constant 0 : i32
    return %arg0, %c0_i32, %c0_i32_0 : i32, i32, i32
  }
  func.func @transform_4(%arg0: i32) -> (i32, i32, i32) {
    %c0_i32 = arith.constant 0 : i32
    %c0_i32_0 = arith.constant 0 : i32
    %c0_i32_1 = arith.constant 0 : i32
    return %arg0, %c0_i32, %c0_i32_0 : i32, i32, i32
  }
  func.func @transform_5(%arg0: i32) -> (i32, i32) {
    %c0_i32 = arith.constant 0 : i32
    %c0_i32_0 = arith.constant 0 : i32
    %c0_i32_1 = arith.constant 0 : i32
    return %c0_i32, %c0_i32_0 : i32, i32
  }
}

</mosaic_0001>

<llo_original>
// kernel: tpu_custom_call.1
$region0: #{tpu_custom_call.1}
  #allocation0 [shape = 'u32[]', space=smem, size = 0x4, offset = 0x4, fixed_abs, tag = 'smem constant byte address 0x4 - core index']
  #allocation1 [shape = 'u32[144,128]{1,0:T(1,128)}', space=vmem, size = 0x12000, scoped, tag = 'internal scratch']
  #allocation2 [shape = 'f32[16,128]{1,0:T(8,128)}', space=vmem, size = 0x2000, scoped, tag = 'scratch operand']
  %s0 = inlined_call_operand.hbm [shape: f32[16,128], index: 0, kind: input, shape index: {}]
  %s1 = inlined_call_operand.hbm [shape: bf16[1,128,1152], index: 1, kind: input, shape index: {}]
  %s2 = inlined_call_operand.hbm [shape: bf16[1,128,1024], index: 2, kind: input, shape index: {}]
  %s3 = inlined_call_operand.hbm [shape: bf16[1,1024,128], index: 3, kind: input, shape index: {}]
  %s4 = inlined_call_operand.hbm [shape: f32[1,8,1152], index: 4, kind: input, shape index: {}]
  %s5 = inlined_call_operand.hbm [shape: f32[16,128], index: 5, kind: output, shape index: {}]
  %s6 = sld [smem:[#allocation0]]
  $region58: #{tpu_custom_call.1} parent=0
    _
  %s8 = ssub.s32 1, %s6
  %s9 = scalar_select 0, %s8, %s6
  $region1: #{tpu_custom_call.1} parent=0
    #allocation3 [shape = 'u8[8192]{0}', space=vmem, size = 0x2000, scoped, tag = 'input window, operand 0, single buffered']
    #allocation4 [shape = 's32[1]{0}', space=sflag, size = 0x4, scoped, tag = 'scoped memory for tpu_custom_call.1']
    #allocation5 [shape = 's32[1]{0}', space=sflag, size = 0x4, scoped, tag = 'scoped memory for tpu_custom_call.1']
    #allocation6 [shape = 'u8[294912]{0}', space=vmem, size = 0x48000, scoped, tag = 'input window, operand 1, single buffered']
    #allocation7 [shape = 's32[1]{0}', space=sflag, size = 0x4, scoped, tag = 'scoped memory for tpu_custom_call.1']
    #allocation8 [shape = 'u8[262144]{0}', space=vmem, size = 0x40000, scoped, tag = 'input window, operand 2, single buffered']
    #allocation9 [shape = 'u8[262144]{0}', space=vmem, size = 0x40000, scoped, tag = 'input window, operand 3, single buffered']
    #allocation10 [shape = 's32[1]{0}', space=sflag, size = 0x4, scoped, tag = 'scoped memory for tpu_custom_call.1']
    #allocation11 [shape = 'u8[36864]{0}', space=vmem, size = 0x9000, scoped, tag = 'input window, operand 4, single buffered']
    #allocation12 [shape = 'u8[8192]{0}', space=vmem, size = 0x2000, scoped, tag = 'output window, operand 0, single buffered']
    %10 = vsyncpa [#allocation4], 0
    %11 = vsyncpa [#allocation7], 0
    %12 = vsyncpa [#allocation10], 0
    %13 = vsyncpa [#allocation5], 0
    // Predicated region
    $region2: #{tpu_custom_call.1} parent=1 // pred_check
      _
    $region3: #{tpu_custom_call.1} parent=1 // pred_check_branch
      %15 = sbr.rel (0) target = $region5
    $region4: #{tpu_custom_call.1} parent=1 // pred_region
      %s17 = ssub.s32 256, 256
      %18 = vsyncadd [#allocation4], %s17
      %s19 = sshll.u32 [#allocation3], 4
      %s20 = int_to_ptr.vmem [resolvable:$true] %s19
      %25 = dma.hbm_to_vmem [thread:$0]  %s0, 256, %s20, [#allocation4], 128, 128, 8
    $region5: #{tpu_custom_call.1} parent=1 // pred_fallthru
      _
    // Predicated region
    $region6: #{tpu_custom_call.1} parent=1 // pred_check
      _
    $region7: #{tpu_custom_call.1} parent=1 // pred_check_branch
      %27 = sbr.rel (0) target = $region9
    $region8: #{tpu_custom_call.1} parent=1 // pred_region
      %s29 = ssub.s32 9216, 9216
      %30 = vsyncadd [#allocation7], %s29
      %s31 = sshll.u32 [#allocation6], 4
      %s32 = int_to_ptr.vmem [resolvable:$true] %s31
      %37 = dma.hbm_to_vmem [thread:$0]  %s1, 9216, %s32, [#allocation7], 576, 576, 36
    $region9: #{tpu_custom_call.1} parent=1 // pred_fallthru
      _
    // Predicated region
    $region10: #{tpu_custom_call.1} parent=1 // pred_check
      _
    $region11: #{tpu_custom_call.1} parent=1 // pred_check_branch
      %39 = sbr.rel (0) target = $region13
    $region12: #{tpu_custom_call.1} parent=1 // pred_region
      %s41 = ssub.s32 8192, 8192
      %42 = vsyncadd [#allocation7], %s41
      %s43 = sshll.u32 [#allocation8], 4
      %s44 = int_to_ptr.vmem [resolvable:$true] %s43
      %49 = dma.hbm_to_vmem [thread:$0]  %s2, 8192, %s44, [#allocation7], 512, 512, 32
    $region13: #{tpu_custom_call.1} parent=1 // pred_fallthru
      _
    // Predicated region
    $region14: #{tpu_custom_call.1} parent=1 // pred_check
      _
    $region15: #{tpu_custom_call.1} parent=1 // pred_check_branch
      %51 = sbr.rel (0) target = $region17
    $region16: #{tpu_custom_call.1} parent=1 // pred_region
      %s53 = ssub.s32 8192, 8192
      %54 = vsyncadd [#allocation10], %s53
      %s55 = sshll.u32 [#allocation9], 4
      %s56 = int_to_ptr.vmem [resolvable:$true] %s55
      %61 = dma.hbm_to_vmem [thread:$0]  %s3, 8192, %s56, [#allocation10], 64, 64, 4
    $region17: #{tpu_custom_call.1} parent=1 // pred_fallthru
      _
    // Predicated region
    $region18: #{tpu_custom_call.1} parent=1 // pred_check
      _
    $region19: #{tpu_custom_call.1} parent=1 // pred_check_branch
      %63 = sbr.rel (0) target = $region21
    $region20: #{tpu_custom_call.1} parent=1 // pred_region
      %s65 = ssub.s32 1152, 1152
      %66 = vsyncadd [#allocation10], %s65
      %s68 = sshll.u32 [#allocation11], 4
      %s69 = int_to_ptr.vmem [resolvable:$true] %s68
      %71 = dma.hbm_to_vmem [thread:$0]  %s4, 1152, %s69, [#allocation10]
    $region21: #{tpu_custom_call.1} parent=1 // pred_fallthru
      _
    // Predicated region
    $region22: #{tpu_custom_call.1} parent=1 // pred_check
      _
    $region23: #{tpu_custom_call.1} parent=1 // pred_check_branch
      %73 = sbr.rel (0) target = $region25
    $region24: #{tpu_custom_call.1} parent=1 // pred_region
      %74 = dma.done [#allocation4], 256
    $region25: #{tpu_custom_call.1} parent=1 // pred_fallthru
      _
    // Predicated region
    $region26: #{tpu_custom_call.1} parent=1 // pred_check
      _
    $region27: #{tpu_custom_call.1} parent=1 // pred_check_branch
      %76 = sbr.rel (0) target = $region29
    $region28: #{tpu_custom_call.1} parent=1 // pred_region
      %77 = dma.done [#allocation7], 9216
    $region29: #{tpu_custom_call.1} parent=1 // pred_fallthru
      _
    // Predicated region
    $region30: #{tpu_custom_call.1} parent=1 // pred_check
      _
    $region31: #{tpu_custom_call.1} parent=1 // pred_check_branch
      %79 = sbr.rel (0) target = $region33
    $region32: #{tpu_custom_call.1} parent=1 // pred_region
      %80 = dma.done [#allocation7], 8192
    $region33: #{tpu_custom_call.1} parent=1 // pred_fallthru
      _
    // Predicated region
    $region34: #{tpu_custom_call.1} parent=1 // pred_check
      _
    $region35: #{tpu_custom_call.1} parent=1 // pred_check_branch
      %82 = sbr.rel (0) target = $region37
    $region36: #{tpu_custom_call.1} parent=1 // pred_region
      %83 = dma.done [#allocation10], 8192
    $region37: #{tpu_custom_call.1} parent=1 // pred_fallthru
      _
    // Predicated region
    $region38: #{tpu_custom_call.1} parent=1 // pred_check
      _
    $region39: #{tpu_custom_call.1} parent=1 // pred_check_branch
      %85 = sbr.rel (0) target = $region41
    $region40: #{tpu_custom_call.1} parent=1 // pred_region
      %86 = dma.done [#allocation10], 1152
    $region41: #{tpu_custom_call.1} parent=1 // pred_fallthru
      _
    %p88 = scmp.eq.s32.totalorder 0, 0
    // Predicated region
    $region42: #{tpu_custom_call.1} parent=1 // pred_check
      %p89 = pneg %p88
    $region43: #{tpu_custom_call.1} parent=1 // pred_check_branch
      %91 = sbr.rel (%p89) target = $region45
    $region44: #{tpu_custom_call.1} parent=1 // pred_region
      %v92 = vld [vmem:[#allocation3] sm:$0xff]
      %v93 = vld [vmem:[#allocation3 + $0x8] sm:$0xff]
      %94 = vst [vmem:[#allocation2] sm:$0xff] %v92
      %95 = vst [vmem:[#allocation2 + $0x8] sm:$0xff] %v93
    $region45: #{tpu_custom_call.1} parent=1 // pred_fallthru
      _
    %v96 = vld [vmem:[#allocation2] sm:$0xff]
    %v97 = vld [vmem:[#allocation2 + $0x8] sm:$0xff]
    %v98 = vlaneseq
    %v99 = vand.u32 %v98, 127
    %vm100 = vcmp.lt.s32.totalorder %v99, 96
    %v101 = vsel %vm100, 1, 0
    %v102 = vcvt.s32.f32 %v101
    %v103 = vld [vmem:[#allocation11] sm:$0xff]
    %v104 = vld [vmem:[#allocation11 + $0x8] sm:$0xff]
    %v105 = vld [vmem:[#allocation11 + $0x10] sm:$0xff]
    %v106 = vld [vmem:[#allocation11 + $0x18] sm:$0xff]
    %v107 = vld [vmem:[#allocation11 + $0x20] sm:$0xff]
    %v108 = vld [vmem:[#allocation11 + $0x28] sm:$0xff]
    %v109 = vld [vmem:[#allocation11 + $0x30] sm:$0xff]
    %v110 = vld [vmem:[#allocation11 + $0x38] sm:$0xff]
    %v111 = vld [vmem:[#allocation11 + $0x40] sm:$0xff]
    %v112 = vpack.c.bf16 %v97, %v96
    %v113 = vld [vmem:[#allocation6] sm:$0xff]
    %v114 = vld [vmem:[#allocation6 + $0x8] sm:$0xff]
    %v115 = vld [vmem:[#allocation6 + $0x10] sm:$0xff]
    %v116 = vld [vmem:[#allocation6 + $0x18] sm:$0xff]
    %v117 = vld [vmem:[#allocation6 + $0x20] sm:$0xf]
    %v118 = vld [vmem:[#allocation6 + $0x24] sm:$0xff]
    %v119 = vld [vmem:[#allocation6 + $0x2c] sm:$0xff]
    %v120 = vld [vmem:[#allocation6 + $0x34] sm:$0xff]
    %v121 = vld [vmem:[#allocation6 + $0x3c] sm:$0xff]
    %v122 = vld [vmem:[#allocation6 + $0x44] sm:$0xf]
    %v123 = vld [vmem:[#allocation6 + $0x48] sm:$0xff]
    %v124 = vld [vmem:[#allocation6 + $0x50] sm:$0xff]
    %v125 = vld [vmem:[#allocation6 + $0x58] sm:$0xff]
    %v126 = vld [vmem:[#allocation6 + $0x60] sm:$0xff]
    %v127 = vld [vmem:[#allocation6 + $0x68] sm:$0xf]
    %v128 = vld [vmem:[#allocation6 + $0x6c] sm:$0xff]
    %v129 = vld [vmem:[#allocation6 + $0x74] sm:$0xff]
    %v130 = vld [vmem:[#allocation6 + $0x7c] sm:$0xff]
    %v131 = vld [vmem:[#allocation6 + $0x84] sm:$0xff]
    %v132 = vld [vmem:[#allocation6 + $0x8c] sm:$0xf]
    %v133 = vld [vmem:[#allocation6 + $0x90] sm:$0xff]
    %v134 = vld [vmem:[#allocation6 + $0x98] sm:$0xff]
    %v135 = vld [vmem:[#allocation6 + $0xa0] sm:$0xff]
    %v136 = vld [vmem:[#allocation6 + $0xa8] sm:$0xff]
    %v137 = vld [vmem:[#allocation6 + $0xb0] sm:$0xf]
    %v138 = vld [vmem:[#allocation6 + $0xb4] sm:$0xff]
    %v139 = vld [vmem:[#allocation6 + $0xbc] sm:$0xff]
    %v140 = vld [vmem:[#allocation6 + $0xc4] sm:$0xff]
    %v141 = vld [vmem:[#allocation6 + $0xcc] sm:$0xff]
    %v142 = vld [vmem:[#allocation6 + $0xd4] sm:$0xf]
    %v143 = vld [vmem:[#allocation6 + $0xd8] sm:$0xff]
    %v144 = vld [vmem:[#allocation6 + $0xe0] sm:$0xff]
    %v145 = vld [vmem:[#allocation6 + $0xe8] sm:$0xff]
    %v146 = vld [vmem:[#allocation6 + $0xf0] sm:$0xff]
    %v147 = vld [vmem:[#allocation6 + $0xf8] sm:$0xf]
    %v148 = vld [vmem:[#allocation6 + $0xfc] sm:$0xff]
    %v149 = vld [vmem:[#allocation6 + $0x104] sm:$0xff]
    %v150 = vld [vmem:[#allocation6 + $0x10c] sm:$0xff]
    %v151 = vld [vmem:[#allocation6 + $0x114] sm:$0xff]
    %v152 = vld [vmem:[#allocation6 + $0x11c] sm:$0xf]
    %v153 = vld [vmem:[#allocation6 + $0x120] sm:$0xff]
    %v154 = vld [vmem:[#allocation6 + $0x128] sm:$0xff]
    %v155 = vld [vmem:[#allocation6 + $0x130] sm:$0xff]
    %v156 = vld [vmem:[#allocation6 + $0x138] sm:$0xff]
    %v157 = vld [vmem:[#allocation6 + $0x140] sm:$0xf]
    %v158 = vld [vmem:[#allocation6 + $0x144] sm:$0xff]
    %v159 = vld [vmem:[#allocation6 + $0x14c] sm:$0xff]
    %v160 = vld [vmem:[#allocation6 + $0x154] sm:$0xff]
    %v161 = vld [vmem:[#allocation6 + $0x15c] sm:$0xff]
    %v162 = vld [vmem:[#allocation6 + $0x164] sm:$0xf]
    %v163 = vld [vmem:[#allocation6 + $0x168] sm:$0xff]
    %v164 = vld [vmem:[#allocation6 + $0x170] sm:$0xff]
    %v165 = vld [vmem:[#allocation6 + $0x178] sm:$0xff]
    %v166 = vld [vmem:[#allocation6 + $0x180] sm:$0xff]
    %v167 = vld [vmem:[#allocation6 + $0x188] sm:$0xf]
    %v168 = vld [vmem:[#allocation6 + $0x18c] sm:$0xff]
    %v169 = vld [vmem:[#allocation6 + $0x194] sm:$0xff]
    %v170 = vld [vmem:[#allocation6 + $0x19c] sm:$0xff]
    %v171 = vld [vmem:[#allocation6 + $0x1a4] sm:$0xff]
    %v172 = vld [vmem:[#allocation6 + $0x1ac] sm:$0xf]
    %v173 = vld [vmem:[#allocation6 + $0x1b0] sm:$0xff]
    %v174 = vld [vmem:[#allocation6 + $0x1b8] sm:$0xff]
    %v175 = vld [vmem:[#allocation6 + $0x1c0] sm:$0xff]
    %v176 = vld [vmem:[#allocation6 + $0x1c8] sm:$0xff]
    %v177 = vld [vmem:[#allocation6 + $0x1d0] sm:$0xf]
    %v178 = vld [vmem:[#allocation6 + $0x1d4] sm:$0xff]
    %v179 = vld [vmem:[#allocation6 + $0x1dc] sm:$0xff]
    %v180 = vld [vmem:[#allocation6 + $0x1e4] sm:$0xff]
    %v181 = vld [vmem:[#allocation6 + $0x1ec] sm:$0xff]
    %v182 = vld [vmem:[#allocation6 + $0x1f4] sm:$0xf]
    %v183 = vld [vmem:[#allocation6 + $0x1f8] sm:$0xff]
    %v184 = vld [vmem:[#allocation6 + $0x200] sm:$0xff]
    %v185 = vld [vmem:[#allocation6 + $0x208] sm:$0xff]
    %v186 = vld [vmem:[#allocation6 + $0x210] sm:$0xff]
    %v187 = vld [vmem:[#allocation6 + $0x218] sm:$0xf]
    %v188 = vld [vmem:[#allocation6 + $0x21c] sm:$0xff]
    %v189 = vld [vmem:[#allocation6 + $0x224] sm:$0xff]
    %v190 = vld [vmem:[#allocation6 + $0x22c] sm:$0xff]
    %v191 = vld [vmem:[#allocation6 + $0x234] sm:$0xff]
    %v192 = vld [vmem:[#allocation6 + $0x23c] sm:$0xf]
    %v193 = vlaneseq
    %v194 = vshrl.u32 %v193, 7
    %v195 = vsub.s32 0, %v194
    %v196 = vrot.slane %v103, %v195
    %v197 = vlaneseq
    %v198 = vshrl.u32 %v197, 7
    %v199 = vsub.s32 0, %v198
    %v200 = vrot.slane %v104, %v199
    %v201 = vlaneseq
    %v202 = vshrl.u32 %v201, 7
    %v203 = vsub.s32 0, %v202
    %v204 = vrot.slane %v105, %v203
    %v205 = vlaneseq
    %v206 = vshrl.u32 %v205, 7
    %v207 = vsub.s32 0, %v206
    %v208 = vrot.slane %v106, %v207
    %v209 = vlaneseq
    %v210 = vshrl.u32 %v209, 7
    %v211 = vsub.s32 0, %v210
    %v212 = vrot.slane %v107, %v211
    %v213 = vlaneseq
    %v214 = vshrl.u32 %v213, 7
    %v215 = vsub.s32 0, %v214
    %v216 = vrot.slane %v108, %v215
    %v217 = vlaneseq
    %v218 = vshrl.u32 %v217, 7
    %v219 = vsub.s32 0, %v218
    %v220 = vrot.slane %v109, %v219
    %v221 = vlaneseq
    %v222 = vshrl.u32 %v221, 7
    %v223 = vsub.s32 0, %v222
    %v224 = vrot.slane %v110, %v223
    %v225 = vlaneseq
    %v226 = vshrl.u32 %v225, 7
    %v227 = vsub.s32 0, %v226
    %v228 = vrot.slane %v111, %v227
    %v309 = vunpack.c.l.b16 %v113
    %v310 = vunpack.c.h.b16 %v113
    %v311 = vunpack.c.l.b16 %v114
    %v312 = vunpack.c.h.b16 %v114
    %v313 = vunpack.c.l.b16 %v115
    %v314 = vunpack.c.h.b16 %v115
    %v315 = vunpack.c.l.b16 %v116
    %v316 = vunpack.c.h.b16 %v116
    %v317 = vunpack.c.l.b16 %v117
    %v318 = vunpack.c.l.b16 %v118
    %v319 = vunpack.c.h.b16 %v118
    %v320 = vunpack.c.l.b16 %v119
    %v321 = vunpack.c.h.b16 %v119
    %v322 = vunpack.c.l.b16 %v120
    %v323 = vunpack.c.h.b16 %v120
    %v324 = vunpack.c.l.b16 %v121
    %v325 = vunpack.c.h.b16 %v121
    %v326 = vunpack.c.l.b16 %v122
    %v327 = vunpack.c.l.b16 %v123
    %v328 = vunpack.c.h.b16 %v123
    %v329 = vunpack.c.l.b16 %v124
    %v330 = vunpack.c.h.b16 %v124
    %v331 = vunpack.c.l.b16 %v125
    %v332 = vunpack.c.h.b16 %v125
    %v333 = vunpack.c.l.b16 %v126
    %v334 = vunpack.c.h.b16 %v126
    %v335 = vunpack.c.l.b16 %v127
    %v336 = vunpack.c.l.b16 %v128
    %v337 = vunpack.c.h.b16 %v128
    %v338 = vunpack.c.l.b16 %v129
    %v339 = vunpack.c.h.b16 %v129
    %v340 = vunpack.c.l.b16 %v130
    %v341 = vunpack.c.h.b16 %v130
    %v342 = vunpack.c.l.b16 %v131
    %v343 = vunpack.c.h.b16 %v131
    %v344 = vunpack.c.l.b16 %v132
    %v345 = vunpack.c.l.b16 %v133
    %v346 = vunpack.c.h.b16 %v133
    %v347 = vunpack.c.l.b16 %v134
    %v348 = vunpack.c.h.b16 %v134
    %v349 = vunpack.c.l.b16 %v135
    %v350 = vunpack.c.h.b16 %v135
    %v351 = vunpack.c.l.b16 %v136
    %v352 = vunpack.c.h.b16 %v136
    %v353 = vunpack.c.l.b16 %v137
    %v354 = vunpack.c.l.b16 %v138
    %v355 = vunpack.c.h.b16 %v138
    %v356 = vunpack.c.l.b16 %v139
    %v357 = vunpack.c.h.b16 %v139
    %v358 = vunpack.c.l.b16 %v140
    %v359 = vunpack.c.h.b16 %v140
    %v360 = vunpack.c.l.b16 %v141
    %v361 = vunpack.c.h.b16 %v141
    %v362 = vunpack.c.l.b16 %v142
    %v363 = vunpack.c.l.b16 %v143
    %v364 = vunpack.c.h.b16 %v143
    %v365 = vunpack.c.l.b16 %v144
    %v366 = vunpack.c.h.b16 %v144
    %v367 = vunpack.c.l.b16 %v145
    %v368 = vunpack.c.h.b16 %v145
    %v369 = vunpack.c.l.b16 %v146
    %v370 = vunpack.c.h.b16 %v146
    %v371 = vunpack.c.l.b16 %v147
    %v372 = vunpack.c.l.b16 %v148
    %v373 = vunpack.c.h.b16 %v148
    %v374 = vunpack.c.l.b16 %v149
    %v375 = vunpack.c.h.b16 %v149
    %v376 = vunpack.c.l.b16 %v150
    %v377 = vunpack.c.h.b16 %v150
    %v378 = vunpack.c.l.b16 %v151
    %v379 = vunpack.c.h.b16 %v151
    %v380 = vunpack.c.l.b16 %v152
    %v381 = vunpack.c.l.b16 %v153
    %v382 = vunpack.c.h.b16 %v153
    %v383 = vunpack.c.l.b16 %v154
    %v384 = vunpack.c.h.b16 %v154
    %v385 = vunpack.c.l.b16 %v155
    %v386 = vunpack.c.h.b16 %v155
    %v387 = vunpack.c.l.b16 %v156
    %v388 = vunpack.c.h.b16 %v156
    %v389 = vunpack.c.l.b16 %v157
    %v390 = vunpack.c.l.b16 %v158
    %v391 = vunpack.c.h.b16 %v158
    %v392 = vunpack.c.l.b16 %v159
    %v393 = vunpack.c.h.b16 %v159
    %v394 = vunpack.c.l.b16 %v160
    %v395 = vunpack.c.h.b16 %v160
    %v396 = vunpack.c.l.b16 %v161
    %v397 = vunpack.c.h.b16 %v161
    %v398 = vunpack.c.l.b16 %v162
    %v399 = vunpack.c.l.b16 %v163
    %v400 = vunpack.c.h.b16 %v163
    %v401 = vunpack.c.l.b16 %v164
    %v402 = vunpack.c.h.b16 %v164
    %v403 = vunpack.c.l.b16 %v165
    %v404 = vunpack.c.h.b16 %v165
    %v405 = vunpack.c.l.b16 %v166
    %v406 = vunpack.c.h.b16 %v166
    %v407 = vunpack.c.l.b16 %v167
    %v408 = vunpack.c.l.b16 %v168
    %v409 = vunpack.c.h.b16 %v168
    %v410 = vunpack.c.l.b16 %v169
    %v411 = vunpack.c.h.b16 %v169
    %v412 = vunpack.c.l.b16 %v170
    %v413 = vunpack.c.h.b16 %v170
    %v414 = vunpack.c.l.b16 %v171
    %v415 = vunpack.c.h.b16 %v171
    %v416 = vunpack.c.l.b16 %v172
    %v417 = vunpack.c.l.b16 %v173
    %v418 = vunpack.c.h.b16 %v173
    %v419 = vunpack.c.l.b16 %v174
    %v420 = vunpack.c.h.b16 %v174
    %v421 = vunpack.c.l.b16 %v175
    %v422 = vunpack.c.h.b16 %v175
    %v423 = vunpack.c.l.b16 %v176
    %v424 = vunpack.c.h.b16 %v176
    %v425 = vunpack.c.l.b16 %v177
    %v426 = vunpack.c.l.b16 %v178
    %v427 = vunpack.c.h.b16 %v178
    %v428 = vunpack.c.l.b16 %v179
    %v429 = vunpack.c.h.b16 %v179
    %v430 = vunpack.c.l.b16 %v180
    %v431 = vunpack.c.h.b16 %v180
    %v432 = vunpack.c.l.b16 %v181
    %v433 = vunpack.c.h.b16 %v181
    %v434 = vunpack.c.l.b16 %v182
    %v435 = vunpack.c.l.b16 %v183
    %v436 = vunpack.c.h.b16 %v183
    %v437 = vunpack.c.l.b16 %v184
    %v438 = vunpack.c.h.b16 %v184
    %v439 = vunpack.c.l.b16 %v185
    %v440 = vunpack.c.h.b16 %v185
    %v441 = vunpack.c.l.b16 %v186
    %v442 = vunpack.c.h.b16 %v186
    %v443 = vunpack.c.l.b16 %v187
    %v444 = vunpack.c.l.b16 %v188
    %v445 = vunpack.c.h.b16 %v188
    %v446 = vunpack.c.l.b16 %v189
    %v447 = vunpack.c.h.b16 %v189
    %v448 = vunpack.c.l.b16 %v190
    %v449 = vunpack.c.h.b16 %v190
    %v450 = vunpack.c.l.b16 %v191
    %v451 = vunpack.c.h.b16 %v191
    %v452 = vunpack.c.l.b16 %v192
    %v453 = vpack.c.b16 %v318, %v309
    %v454 = vpack.c.b16 %v319, %v310
    %v455 = vpack.c.b16 %v320, %v311
    %v456 = vpack.c.b16 %v321, %v312
    %v457 = vpack.c.b16 %v322, %v313
    %v458 = vpack.c.b16 %v323, %v314
    %v459 = vpack.c.b16 %v324, %v315
    %v460 = vpack.c.b16 %v325, %v316
    %v461 = vpack.c.b16 %v326, %v317
    %v462 = vpack.c.b16 %v336, %v327
    %v463 = vpack.c.b16 %v337, %v328
    %v464 = vpack.c.b16 %v338, %v329
    %v465 = vpack.c.b16 %v339, %v330
    %v466 = vpack.c.b16 %v340, %v331
    %v467 = vpack.c.b16 %v341, %v332
    %v468 = vpack.c.b16 %v342, %v333
    %v469 = vpack.c.b16 %v343, %v334
    %v470 = vpack.c.b16 %v344, %v335
    %v471 = vpack.c.b16 %v354, %v345
    %v472 = vpack.c.b16 %v355, %v346
    %v473 = vpack.c.b16 %v356, %v347
    %v474 = vpack.c.b16 %v357, %v348
    %v475 = vpack.c.b16 %v358, %v349
    %v476 = vpack.c.b16 %v359, %v350
    %v477 = vpack.c.b16 %v360, %v351
    %v478 = vpack.c.b16 %v361, %v352
    %v479 = vpack.c.b16 %v362, %v353
    %v480 = vpack.c.b16 %v372, %v363
    %v481 = vpack.c.b16 %v373, %v364
    %v482 = vpack.c.b16 %v374, %v365
    %v483 = vpack.c.b16 %v375, %v366
    %v484 = vpack.c.b16 %v376, %v367
    %v485 = vpack.c.b16 %v377, %v368
    %v486 = vpack.c.b16 %v378, %v369
    %v487 = vpack.c.b16 %v379, %v370
    %v488 = vpack.c.b16 %v380, %v371
    %v489 = vpack.c.b16 %v390, %v381
    %v490 = vpack.c.b16 %v391, %v382
    %v491 = vpack.c.b16 %v392, %v383
    %v492 = vpack.c.b16 %v393, %v384
    %v493 = vpack.c.b16 %v394, %v385
    %v494 = vpack.c.b16 %v395, %v386
    %v495 = vpack.c.b16 %v396, %v387
    %v496 = vpack.c.b16 %v397, %v388
    %v497 = vpack.c.b16 %v398, %v389
    %v498 = vpack.c.b16 %v408, %v399
    %v499 = vpack.c.b16 %v409, %v400
    %v500 = vpack.c.b16 %v410, %v401
    %v501 = vpack.c.b16 %v411, %v402
    %v502 = vpack.c.b16 %v412, %v403
    %v503 = vpack.c.b16 %v413, %v404
    %v504 = vpack.c.b16 %v414, %v405
    %v505 = vpack.c.b16 %v415, %v406
    %v506 = vpack.c.b16 %v416, %v407
    %v507 = vpack.c.b16 %v426, %v417
    %v508 = vpack.c.b16 %v427, %v418
    %v509 = vpack.c.b16 %v428, %v419
    %v510 = vpack.c.b16 %v429, %v420
    %v511 = vpack.c.b16 %v430, %v421
    %v512 = vpack.c.b16 %v431, %v422
    %v513 = vpack.c.b16 %v432, %v423
    %v514 = vpack.c.b16 %v433, %v424
    %v515 = vpack.c.b16 %v434, %v425
    %v516 = vpack.c.b16 %v444, %v435
    %v517 = vpack.c.b16 %v445, %v436
    %v518 = vpack.c.b16 %v446, %v437
    %v519 = vpack.c.b16 %v447, %v438
    %v520 = vpack.c.b16 %v448, %v439
    %v521 = vpack.c.b16 %v449, %v440
    %v522 = vpack.c.b16 %v450, %v441
    %v523 = vpack.c.b16 %v451, %v442
    %v524 = vpack.c.b16 %v452, %v443
    %597 = vmatprep.subr.bf16.mxu0 %v454
    %598 = vmatpush1.bf16.msra.mxu0 %v453
    %599 = vmatprep.subr.bf16.mxu0 %v463
    %600 = vmatpush1.bf16.msra.mxu0 %v462
    %601 = vmatprep.subr.bf16.mxu0 %v472
    %602 = vmatpush1.bf16.msra.mxu0 %v471
    %603 = vmatprep.subr.bf16.mxu0 %v481
    %604 = vmatpush1.bf16.msra.mxu0 %v480
    %605 = vmatprep.subr.bf16.mxu0 %v490
    %606 = vmatpush1.bf16.msra.mxu0 %v489
    %607 = vmatprep.subr.bf16.mxu0 %v499
    %608 = vmatpush1.bf16.msra.mxu0 %v498
    %609 = vmatprep.subr.bf16.mxu0 %v508
    %610 = vmatpush1.bf16.msra.mxu0 %v507
    %611 = vmatprep.subr.bf16.mxu0 %v517
    %612 = vmatpush1.bf16.msra.mxu0 %v516
    %613 = vmatprep.subr.bf16.mxu0 0
    %614 = vmatpush1.bf16.msra.mxu0 0
    %615 = vmatprep.subr.bf16.mxu0 0
    %616 = vmatpush1.bf16.msra.mxu0 0
    %617 = vmatprep.subr.bf16.mxu0 0
    %618 = vmatpush1.bf16.msra.mxu0 0
    %619 = vmatprep.subr.bf16.mxu0 0
    %620 = vmatpush1.bf16.msra.mxu0 0
    %621 = vmatprep.subr.bf16.mxu0 0
    %622 = vmatpush1.bf16.msra.mxu0 0
    %623 = vmatprep.subr.bf16.mxu0 0
    %624 = vmatpush1.bf16.msra.mxu0 0
    %625 = vmatprep.subr.bf16.mxu0 0
    %626 = vmatpush1.bf16.msra.mxu0 0
    %627 = vmatprep.subr.bf16.mxu0 0
    %628 = vmatpush1.bf16.msra.mxu0 0
    %629 = vmatprep.mubr.bf16.mxu0 0
    %630 = vmatmul.mubr.bf16.gmra.mrb[0].mxu0 %v112
    %v631 = vpop.f32.mrb[0].mxu0
    %v632 = vadd.f32 %v196, %v631
    %v633 = vpop.f32.mrb[0].mxu0
    %v634 = vadd.f32 %v200, %v633
    %v635 = vpop.f32.mrb[0].mxu0
    %v636 = vadd.f32 %v196, %v635
    %v637 = vpop.f32.mrb[0].mxu0
    %v638 = vadd.f32 %v200, %v637
    %639 = vdwg.mxu0
    %640 = vmatprep.subr.bf16.mxu0 %v456
    %641 = vmatpush1.bf16.msra.mxu0 %v455
    %642 = vmatprep.subr.bf16.mxu0 %v465
    %643 = vmatpush1.bf16.msra.mxu0 %v464
    %644 = vmatprep.subr.bf16.mxu0 %v474
    %645 = vmatpush1.bf16.msra.mxu0 %v473
    %646 = vmatprep.subr.bf16.mxu0 %v483
    %647 = vmatpush1.bf16.msra.mxu0 %v482
    %648 = vmatprep.subr.bf16.mxu0 %v492
    %649 = vmatpush1.bf16.msra.mxu0 %v491
    %650 = vmatprep.subr.bf16.mxu0 %v501
    %651 = vmatpush1.bf16.msra.mxu0 %v500
    %652 = vmatprep.subr.bf16.mxu0 %v510
    %653 = vmatpush1.bf16.msra.mxu0 %v509
    %654 = vmatprep.subr.bf16.mxu0 %v519
    %655 = vmatpush1.bf16.msra.mxu0 %v518
    %656 = vmatprep.subr.bf16.mxu0 0
    %657 = vmatpush1.bf16.msra.mxu0 0
    %658 = vmatprep.subr.bf16.mxu0 0
    %659 = vmatpush1.bf16.msra.mxu0 0
    %660 = vmatprep.subr.bf16.mxu0 0
    %661 = vmatpush1.bf16.msra.mxu0 0
    %662 = vmatprep.subr.bf16.mxu0 0
    %663 = vmatpush1.bf16.msra.mxu0 0
    %664 = vmatprep.subr.bf16.mxu0 0
    %665 = vmatpush1.bf16.msra.mxu0 0
    %666 = vmatprep.subr.bf16.mxu0 0
    %667 = vmatpush1.bf16.msra.mxu0 0
    %668 = vmatprep.subr.bf16.mxu0 0
    %669 = vmatpush1.bf16.msra.mxu0 0
    %670 = vmatprep.subr.bf16.mxu0 0
    %671 = vmatpush1.bf16.msra.mxu0 0
    %672 = vmatprep.mubr.bf16.mxu0 0
    %673 = vmatmul.mubr.bf16.gmra.mrb[0].mxu0 %v112
    %v674 = vpop.f32.mrb[0].mxu0
    %v675 = vadd.f32 %v204, %v674
    %v676 = vpop.f32.mrb[0].mxu0
    %v677 = vadd.f32 %v208, %v676
    %v678 = vpop.f32.mrb[0].mxu0
    %v679 = vadd.f32 %v204, %v678
    %v680 = vpop.f32.mrb[0].mxu0
    %v681 = vadd.f32 %v208, %v680
    %682 = vdwg.mxu0
    %683 = vmatprep.subr.bf16.mxu0 %v458
    %684 = vmatpush1.bf16.msra.mxu0 %v457
    %685 = vmatprep.subr.bf16.mxu0 %v467
    %686 = vmatpush1.bf16.msra.mxu0 %v466
    %687 = vmatprep.subr.bf16.mxu0 %v476
    %688 = vmatpush1.bf16.msra.mxu0 %v475
    %689 = vmatprep.subr.bf16.mxu0 %v485
    %690 = vmatpush1.bf16.msra.mxu0 %v484
    %691 = vmatprep.subr.bf16.mxu0 %v494
    %692 = vmatpush1.bf16.msra.mxu0 %v493
    %693 = vmatprep.subr.bf16.mxu0 %v503
    %694 = vmatpush1.bf16.msra.mxu0 %v502
    %695 = vmatprep.subr.bf16.mxu0 %v512
    %696 = vmatpush1.bf16.msra.mxu0 %v511
    %697 = vmatprep.subr.bf16.mxu0 %v521
    %698 = vmatpush1.bf16.msra.mxu0 %v520
    %699 = vmatprep.subr.bf16.mxu0 0
    %700 = vmatpush1.bf16.msra.mxu0 0
    %701 = vmatprep.subr.bf16.mxu0 0
    %702 = vmatpush1.bf16.msra.mxu0 0
    %703 = vmatprep.subr.bf16.mxu0 0
    %704 = vmatpush1.bf16.msra.mxu0 0
    %705 = vmatprep.subr.bf16.mxu0 0
    %706 = vmatpush1.bf16.msra.mxu0 0
    %707 = vmatprep.subr.bf16.mxu0 0
    %708 = vmatpush1.bf16.msra.mxu0 0
    %709 = vmatprep.subr.bf16.mxu0 0
    %710 = vmatpush1.bf16.msra.mxu0 0
    %711 = vmatprep.subr.bf16.mxu0 0
    %712 = vmatpush1.bf16.msra.mxu0 0
    %713 = vmatprep.subr.bf16.mxu0 0
    %714 = vmatpush1.bf16.msra.mxu0 0
    %715 = vmatprep.mubr.bf16.mxu0 0
    %716 = vmatmul.mubr.bf16.gmra.mrb[0].mxu0 %v112
    %v717 = vpop.f32.mrb[0].mxu0
    %v718 = vadd.f32 %v212, %v717
    %v719 = vpop.f32.mrb[0].mxu0
    %v720 = vadd.f32 %v216, %v719
    %v721 = vpop.f32.mrb[0].mxu0
    %v722 = vadd.f32 %v212, %v721
    %v723 = vpop.f32.mrb[0].mxu0
    %v724 = vadd.f32 %v216, %v723
    %725 = vdwg.mxu0
    %726 = vmatprep.subr.bf16.mxu0 %v460
    %727 = vmatpush1.bf16.msra.mxu0 %v459
    %728 = vmatprep.subr.bf16.mxu0 %v469
    %729 = vmatpush1.bf16.msra.mxu0 %v468
    %730 = vmatprep.subr.bf16.mxu0 %v478
    %731 = vmatpush1.bf16.msra.mxu0 %v477
    %732 = vmatprep.subr.bf16.mxu0 %v487
    %733 = vmatpush1.bf16.msra.mxu0 %v486
    %734 = vmatprep.subr.bf16.mxu0 %v496
    %735 = vmatpush1.bf16.msra.mxu0 %v495
    %736 = vmatprep.subr.bf16.mxu0 %v505
    %737 = vmatpush1.bf16.msra.mxu0 %v504
    %738 = vmatprep.subr.bf16.mxu0 %v514
    %739 = vmatpush1.bf16.msra.mxu0 %v513
    %740 = vmatprep.subr.bf16.mxu0 %v523
    %741 = vmatpush1.bf16.msra.mxu0 %v522
    %742 = vmatprep.subr.bf16.mxu0 0
    %743 = vmatpush1.bf16.msra.mxu0 0
    %744 = vmatprep.subr.bf16.mxu0 0
    %745 = vmatpush1.bf16.msra.mxu0 0
    %746 = vmatprep.subr.bf16.mxu0 0
    %747 = vmatpush1.bf16.msra.mxu0 0
    %748 = vmatprep.subr.bf16.mxu0 0
    %749 = vmatpush1.bf16.msra.mxu0 0
    %750 = vmatprep.subr.bf16.mxu0 0
    %751 = vmatpush1.bf16.msra.mxu0 0
    %752 = vmatprep.subr.bf16.mxu0 0
    %753 = vmatpush1.bf16.msra.mxu0 0
    %754 = vmatprep.subr.bf16.mxu0 0
    %755 = vmatpush1.bf16.msra.mxu0 0
    %756 = vmatprep.subr.bf16.mxu0 0
    %757 = vmatpush1.bf16.msra.mxu0 0
    %758 = vmatprep.mubr.bf16.mxu0 0
    %759 = vmatmul.mubr.bf16.gmra.mrb[0].mxu0 %v112
    %v760 = vpop.f32.mrb[0].mxu0
    %v761 = vadd.f32 %v220, %v760
    %v762 = vpop.f32.mrb[0].mxu0
    %v763 = vadd.f32 %v224, %v762
    %v764 = vpop.f32.mrb[0].mxu0
    %v765 = vadd.f32 %v220, %v764
    %v766 = vpop.f32.mrb[0].mxu0
    %v767 = vadd.f32 %v224, %v766
    %768 = vdwg.mxu0
    %769 = vmatprep.subr.bf16.mxu0 0
    %770 = vmatpush1.bf16.msra.mxu0 %v461
    %771 = vmatprep.subr.bf16.mxu0 0
    %772 = vmatpush1.bf16.msra.mxu0 %v470
    %773 = vmatprep.subr.bf16.mxu0 0
    %774 = vmatpush1.bf16.msra.mxu0 %v479
    %775 = vmatprep.subr.bf16.mxu0 0
    %776 = vmatpush1.bf16.msra.mxu0 %v488
    %777 = vmatprep.subr.bf16.mxu0 0
    %778 = vmatpush1.bf16.msra.mxu0 %v497
    %779 = vmatprep.subr.bf16.mxu0 0
    %780 = vmatpush1.bf16.msra.mxu0 %v506
    %781 = vmatprep.subr.bf16.mxu0 0
    %782 = vmatpush1.bf16.msra.mxu0 %v515
    %783 = vmatprep.subr.bf16.mxu0 0
    %784 = vmatpush1.bf16.msra.mxu0 %v524
    %785 = vmatprep.subr.bf16.mxu0 0
    %786 = vmatpush1.bf16.msra.mxu0 0
    %787 = vmatprep.subr.bf16.mxu0 0
    %788 = vmatpush1.bf16.msra.mxu0 0
    %789 = vmatprep.subr.bf16.mxu0 0
    %790 = vmatpush1.bf16.msra.mxu0 0
    %791 = vmatprep.subr.bf16.mxu0 0
    %792 = vmatpush1.bf16.msra.mxu0 0
    %793 = vmatprep.subr.bf16.mxu0 0
    %794 = vmatpush1.bf16.msra.mxu0 0
    %795 = vmatprep.subr.bf16.mxu0 0
    %796 = vmatpush1.bf16.msra.mxu0 0
    %797 = vmatprep.subr.bf16.mxu0 0
    %798 = vmatpush1.bf16.msra.mxu0 0
    %799 = vmatprep.subr.bf16.mxu0 0
    %800 = vmatpush1.bf16.msra.mxu0 0
    %801 = vmatprep.mubr.bf16.mxu0 0
    %802 = vmatmul.mubr.bf16.gmra.mrb[0].mxu0 %v112
    %v803 = vpop.f32.mrb[0].mxu0
    %v804 = vadd.f32 %v228, %v803
    %v805 = vpop.f32.mrb[0].mxu0
    %v806 = vpop.f32.mrb[0].mxu0
    %v807 = vadd.f32 %v228, %v806
    %v808 = vpop.f32.mrb[0].mxu0
    %809 = vdwg.mxu0
    %v810 = vpack.c.bf16 %v632, %v632
    %v811 = vpack.c.bf16 %v634, %v634
    %v812 = vpack.c.bf16 %v675, %v675
    %813 = vmatprep.subr.bf16.mxu0 0
    %814 = vmatpush1.bf16.xpose.msra.mxu0 %v811
    %815 = vmatprep.subr.bf16.mxu0 0
    %816 = vmatpush1.bf16.xpose.msra.mxu0 0
    %817 = vmatprep.subr.bf16.mxu0 0
    %818 = vmatpush1.bf16.xpose.msra.mxu0 0
    %819 = vmatprep.subr.bf16.mxu0 0
    %820 = vmatpush1.bf16.xpose.msra.mxu0 0
    %821 = vmatprep.subr.bf16.mxu0 0
    %822 = vmatpush1.bf16.xpose.msra.mxu0 0
    %823 = vmatprep.subr.bf16.mxu0 0
    %824 = vmatpush1.bf16.xpose.msra.mxu0 0
    %825 = vmatprep.subr.bf16.mxu0 0
    %826 = vmatpush1.bf16.xpose.msra.mxu0 0
    %827 = vmatprep.subr.bf16.mxu0 0
    %828 = vmatpush1.bf16.xpose.msra.mxu0 0
    %829 = vmatprep.subr.bf16.mxu0 0
    %830 = vmatpush1.bf16.xpose.msra.mxu0 0
    %831 = vmatprep.subr.bf16.mxu0 0
    %832 = vmatpush1.bf16.xpose.msra.mxu0 0
    %833 = vmatprep.subr.bf16.mxu0 0
    %834 = vmatpush1.bf16.xpose.msra.mxu0 0
    %835 = vmatprep.subr.bf16.mxu0 0
    %836 = vmatpush1.bf16.xpose.msra.mxu0 0
    %837 = vmatprep.subr.bf16.mxu0 0
    %838 = vmatpush1.bf16.xpose.msra.mxu0 0
    %839 = vmatprep.subr.bf16.mxu0 0
    %840 = vmatpush1.bf16.xpose.msra.mxu0 0
    %841 = vmatprep.subr.bf16.mxu0 0
    %842 = vmatpush1.bf16.xpose.msra.mxu0 0
    %843 = vmatprep.subr.bf16.mxu0 0
    %844 = vmatpush1.bf16.xpose.msra.mxu0 0
    %845 = vmatprep.mubr.bf16.mxu0 0
    %846 = vmatmul.mubr.bf16.gmra.mrb[0].mxu0 %v810
    %v847 = vpop.f32.mrb[0].mxu0
    %v848 = vadd.f32 0.0, %v847
    %v849 = vpop.f32.mrb[0].mxu0
    %v850 = vpop.f32.mrb[0].mxu0
    %v851 = vpop.f32.mrb[0].mxu0
    %852 = vdwg.mxu0
    %vm853 = vcmask 64512
    %v854 = vsel %vm853, %v848, -inf
    %855 = vmax.xlane.f32.xlu0 %v854
    %v856 = vpop.xlane.xlu0 %855
    %v857 = vsub.f32 %v848, %v856
    %v858 = vmul.f32 %v857, 1.442695
    %v859 = vpow.pop %v858
    %v860 = vsel %vm853, %v859, 0.0
    %861 = vadd.xlane.f32.xlu0 %v860
    %v862 = vpop.xlane.xlu0 %861
    %v863 = vrcp.pop %v862
    %v864 = vmul.f32 %v859, %v863
    %v865 = vpack.c.bf16 %v864, %v864
    %v866 = vpack.c.bf16 %v677, %v677
    %v867 = vpack.c.bf16 %v718, %v718
    %v868 = vpack.c.bf16 %v720, %v720
    %869 = vmatprep.subr.bf16.mxu0 0
    %870 = vmatpush1.bf16.xpose.msra.mxu0 %v867
    %871 = vmatprep.subr.bf16.mxu0 0
    %872 = vmatpush1.bf16.xpose.msra.mxu0 0
    %873 = vmatprep.subr.bf16.mxu0 0
    %874 = vmatpush1.bf16.xpose.msra.mxu0 0
    %875 = vmatprep.subr.bf16.mxu0 0
    %876 = vmatpush1.bf16.xpose.msra.mxu0 0
    %877 = vmatprep.subr.bf16.mxu0 0
    %878 = vmatpush1.bf16.xpose.msra.mxu0 0
    %879 = vmatprep.subr.bf16.mxu0 0
    %880 = vmatpush1.bf16.xpose.msra.mxu0 0
    %881 = vmatprep.subr.bf16.mxu0 0
    %882 = vmatpush1.bf16.xpose.msra.mxu0 0
    %883 = vmatprep.subr.bf16.mxu0 0
    %884 = vmatpush1.bf16.xpose.msra.mxu0 0
    %885 = vmatprep.subr.bf16.mxu0 0
    %886 = vmatpush1.bf16.xpose.msra.mxu0 0
    %887 = vmatprep.subr.bf16.mxu0 0
    %888 = vmatpush1.bf16.xpose.msra.mxu0 0
    %889 = vmatprep.subr.bf16.mxu0 0
    %890 = vmatpush1.bf16.xpose.msra.mxu0 0
    %891 = vmatprep.subr.bf16.mxu0 0
    %892 = vmatpush1.bf16.xpose.msra.mxu0 0
    %893 = vmatprep.subr.bf16.mxu0 0
    %894 = vmatpush1.bf16.xpose.msra.mxu0 0
    %895 = vmatprep.subr.bf16.mxu0 0
    %896 = vmatpush1.bf16.xpose.msra.mxu0 0
    %897 = vmatprep.subr.bf16.mxu0 0
    %898 = vmatpush1.bf16.xpose.msra.mxu0 0
    %899 = vmatprep.subr.bf16.mxu0 0
    %900 = vmatpush1.bf16.xpose.msra.mxu0 0
    %901 = vmatprep.mubr.bf16.mxu0 0
    %902 = vmatmul.mubr.bf16.gmra.mrb[0].mxu0 %v866
    %v903 = vpop.f32.mrb[0].mxu0
    %v904 = vadd.f32 0.0, %v903
    %v905 = vpop.f32.mrb[0].mxu0
    %v906 = vpop.f32.mrb[0].mxu0
    %v907 = vpop.f32.mrb[0].mxu0
    %908 = vdwg.mxu0
    %v909 = vsel %vm853, %v904, -inf
    %910 = vmax.xlane.f32.xlu0 %v909
    %v911 = vpop.xlane.xlu0 %910
    %v912 = vsub.f32 %v904, %v911
    %v913 = vmul.f32 %v912, 1.442695
    %v914 = vpow.pop %v913
    %v915 = vsel %vm853, %v914, 0.0
    %916 = vadd.xlane.f32.xlu0 %v915
    %v917 = vpop.xlane.xlu0 %916
    %v918 = vrcp.pop %v917
    %v919 = vmul.f32 %v914, %v918
    %v920 = vpack.c.bf16 %v919, %v919
    %v922 = vsel %vm853, %v920, 0
    %vm924 = vcmask 1043456
    %v926 = vsel %vm924, %v868, 0
    %928 = vmatprep.subr.bf16.mxu0 0
    %929 = vmatpush1.bf16.msra.mxu0 %v926
    %930 = vmatprep.subr.bf16.mxu0 0
    %931 = vmatpush1.bf16.msra.mxu0 0
    %932 = vmatprep.subr.bf16.mxu0 0
    %933 = vmatpush1.bf16.msra.mxu0 0
    %934 = vmatprep.subr.bf16.mxu0 0
    %935 = vmatpush1.bf16.msra.mxu0 0
    %936 = vmatprep.subr.bf16.mxu0 0
    %937 = vmatpush1.bf16.msra.mxu0 0
    %938 = vmatprep.subr.bf16.mxu0 0
    %939 = vmatpush1.bf16.msra.mxu0 0
    %940 = vmatprep.subr.bf16.mxu0 0
    %941 = vmatpush1.bf16.msra.mxu0 0
    %942 = vmatprep.subr.bf16.mxu0 0
    %943 = vmatpush1.bf16.msra.mxu0 0
    %944 = vmatprep.subr.bf16.mxu0 0
    %945 = vmatpush1.bf16.msra.mxu0 0
    %946 = vmatprep.subr.bf16.mxu0 0
    %947 = vmatpush1.bf16.msra.mxu0 0
    %948 = vmatprep.subr.bf16.mxu0 0
    %949 = vmatpush1.bf16.msra.mxu0 0
    %950 = vmatprep.subr.bf16.mxu0 0
    %951 = vmatpush1.bf16.msra.mxu0 0
    %952 = vmatprep.subr.bf16.mxu0 0
    %953 = vmatpush1.bf16.msra.mxu0 0
    %954 = vmatprep.subr.bf16.mxu0 0
    %955 = vmatpush1.bf16.msra.mxu0 0
    %956 = vmatprep.subr.bf16.mxu0 0
    %957 = vmatpush1.bf16.msra.mxu0 0
    %958 = vmatprep.subr.bf16.mxu0 0
    %959 = vmatpush1.bf16.msra.mxu0 0
    %960 = vmatprep.mubr.bf16.mxu0 0
    %961 = vmatmul.mubr.bf16.gmra.mrb[0].mxu0 %v922
    %v962 = vpop.f32.mrb[0].mxu0
    %v963 = vadd.f32 0.0, %v962
    %v964 = vpop.f32.mrb[0].mxu0
    %v965 = vpop.f32.mrb[0].mxu0
    %v966 = vpop.f32.mrb[0].mxu0
    %967 = vdwg.mxu0
    %v969 = vsel %vm853, %v865, 0
    %v972 = vsel %vm924, %v812, 0
    %974 = vmatprep.subr.bf16.mxu0 0
    %975 = vmatpush1.bf16.msra.mxu0 %v972
    %976 = vmatprep.subr.bf16.mxu0 0
    %977 = vmatpush1.bf16.msra.mxu0 0
    %978 = vmatprep.subr.bf16.mxu0 0
    %979 = vmatpush1.bf16.msra.mxu0 0
    %980 = vmatprep.subr.bf16.mxu0 0
    %981 = vmatpush1.bf16.msra.mxu0 0
    %982 = vmatprep.subr.bf16.mxu0 0
    %983 = vmatpush1.bf16.msra.mxu0 0
    %984 = vmatprep.subr.bf16.mxu0 0
    %985 = vmatpush1.bf16.msra.mxu0 0
    %986 = vmatprep.subr.bf16.mxu0 0
    %987 = vmatpush1.bf16.msra.mxu0 0
    %988 = vmatprep.subr.bf16.mxu0 0
    %989 = vmatpush1.bf16.msra.mxu0 0
    %990 = vmatprep.subr.bf16.mxu0 0
    %991 = vmatpush1.bf16.msra.mxu0 0
    %992 = vmatprep.subr.bf16.mxu0 0
    %993 = vmatpush1.bf16.msra.mxu0 0
    %994 = vmatprep.subr.bf16.mxu0 0
    %995 = vmatpush1.bf16.msra.mxu0 0
    %996 = vmatprep.subr.bf16.mxu0 0
    %997 = vmatpush1.bf16.msra.mxu0 0
    %998 = vmatprep.subr.bf16.mxu0 0
    %999 = vmatpush1.bf16.msra.mxu0 0
    %1000 = vmatprep.subr.bf16.mxu0 0
    %1001 = vmatpush1.bf16.msra.mxu0 0
    %1002 = vmatprep.subr.bf16.mxu0 0
    %1003 = vmatpush1.bf16.msra.mxu0 0
    %1004 = vmatprep.subr.bf16.mxu0 0
    %1005 = vmatpush1.bf16.msra.mxu0 0
    %1006 = vmatprep.mubr.bf16.mxu0 0
    %1007 = vmatmul.mubr.bf16.gmra.mrb[0].mxu0 %v969
    %v1008 = vpop.f32.mrb[0].mxu0
    %v1009 = vadd.f32 %v963, %v1008
    %v1010 = vpop.f32.mrb[0].mxu0
    %v1011 = vpop.f32.mrb[0].mxu0
    %v1012 = vpop.f32.mrb[0].mxu0
    %1013 = vdwg.mxu0
    %v1014 = vpack.c.bf16 %v761, %v761
    %v1015 = vpack.c.bf16 %v763, %v763
    %v1016 = vpack.c.bf16 %v804, %v804
    %1017 = vmatprep.subr.bf16.mxu0 0
    %1018 = vmatpush1.bf16.xpose.msra.mxu0 %v1015
    %1019 = vmatprep.subr.bf16.mxu0 0
    %1020 = vmatpush1.bf16.xpose.msra.mxu0 0
    %1021 = vmatprep.subr.bf16.mxu0 0
    %1022 = vmatpush1.bf16.xpose.msra.mxu0 0
    %1023 = vmatprep.subr.bf16.mxu0 0
    %1024 = vmatpush1.bf16.xpose.msra.mxu0 0
    %1025 = vmatprep.subr.bf16.mxu0 0
    %1026 = vmatpush1.bf16.xpose.msra.mxu0 0
    %1027 = vmatprep.subr.bf16.mxu0 0
    %1028 = vmatpush1.bf16.xpose.msra.mxu0 0
    %1029 = vmatprep.subr.bf16.mxu0 0
    %1030 = vmatpush1.bf16.xpose.msra.mxu0 0
    %1031 = vmatprep.subr.bf16.mxu0 0
    %1032 = vmatpush1.bf16.xpose.msra.mxu0 0
    %1033 = vmatprep.subr.bf16.mxu0 0
    %1034 = vmatpush1.bf16.xpose.msra.mxu0 0
    %1035 = vmatprep.subr.bf16.mxu0 0
    %1036 = vmatpush1.bf16.xpose.msra.mxu0 0
    %1037 = vmatprep.subr.bf16.mxu0 0
    %1038 = vmatpush1.bf16.xpose.msra.mxu0 0
    %1039 = vmatprep.subr.bf16.mxu0 0
    %1040 = vmatpush1.bf16.xpose.msra.mxu0 0
    %1041 = vmatprep.subr.bf16.mxu0 0
    %1042 = vmatpush1.bf16.xpose.msra.mxu0 0
    %1043 = vmatprep.subr.bf16.mxu0 0
    %1044 = vmatpush1.bf16.xpose.msra.mxu0 0
    %1045 = vmatprep.subr.bf16.mxu0 0
    %1046 = vmatpush1.bf16.xpose.msra.mxu0 0
    %1047 = vmatprep.subr.bf16.mxu0 0
    %1048 = vmatpush1.bf16.xpose.msra.mxu0 0
    %1049 = vmatprep.mubr.bf16.mxu0 0
    %1050 = vmatmul.mubr.bf16.gmra.mrb[0].mxu0 %v1014
    %v1051 = vpop.f32.mrb[0].mxu0
    %v1052 = vadd.f32 0.0, %v1051
    %v1053 = vpop.f32.mrb[0].mxu0
    %v1054 = vpop.f32.mrb[0].mxu0
    %v1055 = vpop.f32.mrb[0].mxu0
    %1056 = vdwg.mxu0
    %v1057 = vsel %vm853, %v1052, -inf
    %1058 = vmax.xlane.f32.xlu0 %v1057
    %v1059 = vpop.xlane.xlu0 %1058
    %v1060 = vsub.f32 %v1052, %v1059
    %v1061 = vmul.f32 %v1060, 1.442695
    %v1062 = vpow.pop %v1061
    %v1063 = vsel %vm853, %v1062, 0.0
    %1064 = vadd.xlane.f32.xlu0 %v1063
    %v1065 = vpop.xlane.xlu0 %1064
    %v1066 = vrcp.pop %v1065
    %v1067 = vmul.f32 %v1062, %v1066
    %v1068 = vpack.c.bf16 %v1067, %v1067
    %v1070 = vsel %vm853, %v1068, 0
    %v1073 = vsel %vm924, %v1016, 0
    %1075 = vmatprep.subr.bf16.mxu0 0
    %1076 = vmatpush1.bf16.msra.mxu0 %v1073
    %1077 = vmatprep.subr.bf16.mxu0 0
    %1078 = vmatpush1.bf16.msra.mxu0 0
    %1079 = vmatprep.subr.bf16.mxu0 0
    %1080 = vmatpush1.bf16.msra.mxu0 0
    %1081 = vmatprep.subr.bf16.mxu0 0
    %1082 = vmatpush1.bf16.msra.mxu0 0
    %1083 = vmatprep.subr.bf16.mxu0 0
    %1084 = vmatpush1.bf16.msra.mxu0 0
    %1085 = vmatprep.subr.bf16.mxu0 0
    %1086 = vmatpush1.bf16.msra.mxu0 0
    %1087 = vmatprep.subr.bf16.mxu0 0
    %1088 = vmatpush1.bf16.msra.mxu0 0
    %1089 = vmatprep.subr.bf16.mxu0 0
    %1090 = vmatpush1.bf16.msra.mxu0 0
    %1091 = vmatprep.subr.bf16.mxu0 0
    %1092 = vmatpush1.bf16.msra.mxu0 0
    %1093 = vmatprep.subr.bf16.mxu0 0
    %1094 = vmatpush1.bf16.msra.mxu0 0
    %1095 = vmatprep.subr.bf16.mxu0 0
    %1096 = vmatpush1.bf16.msra.mxu0 0
    %1097 = vmatprep.subr.bf16.mxu0 0
    %1098 = vmatpush1.bf16.msra.mxu0 0
    %1099 = vmatprep.subr.bf16.mxu0 0
    %1100 = vmatpush1.bf16.msra.mxu0 0
    %1101 = vmatprep.subr.bf16.mxu0 0
    %1102 = vmatpush1.bf16.msra.mxu0 0
    %1103 = vmatprep.subr.bf16.mxu0 0
    %1104 = vmatpush1.bf16.msra.mxu0 0
    %1105 = vmatprep.subr.bf16.mxu0 0
    %1106 = vmatpush1.bf16.msra.mxu0 0
    %1107 = vmatprep.mubr.bf16.mxu0 0
    %1108 = vmatmul.mubr.bf16.gmra.mrb[0].mxu0 %v1070
    %v1109 = vpop.f32.mrb[0].mxu0
    %v1110 = vadd.f32 0.0, %v1109
    %v1111 = vpop.f32.mrb[0].mxu0
    %v1112 = vpop.f32.mrb[0].mxu0
    %v1113 = vpop.f32.mrb[0].mxu0
    %1114 = vdwg.mxu0
    %v1115 = vadd.f32 %v1009, %v1110
    %v1116 = vpack.c.bf16 %v636, %v636
    %v1117 = vpack.c.bf16 %v638, %v638
    %v1118 = vpack.c.bf16 %v679, %v679
    %1119 = vmatprep.subr.bf16.mxu0 0
    %1120 = vmatpush1.bf16.xpose.msra.mxu0 %v1117
    %1121 = vmatprep.subr.bf16.mxu0 0
    %1122 = vmatpush1.bf16.xpose.msra.mxu0 0
    %1123 = vmatprep.subr.bf16.mxu0 0
    %1124 = vmatpush1.bf16.xpose.msra.mxu0 0
    %1125 = vmatprep.subr.bf16.mxu0 0
    %1126 = vmatpush1.bf16.xpose.msra.mxu0 0
    %1127 = vmatprep.subr.bf16.mxu0 0
    %1128 = vmatpush1.bf16.xpose.msra.mxu0 0
    %1129 = vmatprep.subr.bf16.mxu0 0
    %1130 = vmatpush1.bf16.xpose.msra.mxu0 0
    %1131 = vmatprep.subr.bf16.mxu0 0
    %1132 = vmatpush1.bf16.xpose.msra.mxu0 0
    %1133 = vmatprep.subr.bf16.mxu0 0
    %1134 = vmatpush1.bf16.xpose.msra.mxu0 0
    %1135 = vmatprep.subr.bf16.mxu0 0
    %1136 = vmatpush1.bf16.xpose.msra.mxu0 0
    %1137 = vmatprep.subr.bf16.mxu0 0
    %1138 = vmatpush1.bf16.xpose.msra.mxu0 0
    %1139 = vmatprep.subr.bf16.mxu0 0
    %1140 = vmatpush1.bf16.xpose.msra.mxu0 0
    %1141 = vmatprep.subr.bf16.mxu0 0
    %1142 = vmatpush1.bf16.xpose.msra.mxu0 0
    %1143 = vmatprep.subr.bf16.mxu0 0
    %1144 = vmatpush1.bf16.xpose.msra.mxu0 0
    %1145 = vmatprep.subr.bf16.mxu0 0
    %1146 = vmatpush1.bf16.xpose.msra.mxu0 0
    %1147 = vmatprep.subr.bf16.mxu0 0
    %1148 = vmatpush1.bf16.xpose.msra.mxu0 0
    %1149 = vmatprep.subr.bf16.mxu0 0
    %1150 = vmatpush1.bf16.xpose.msra.mxu0 0
    %1151 = vmatprep.mubr.bf16.mxu0 0
    %1152 = vmatmul.mubr.bf16.gmra.mrb[0].mxu0 %v1116
    %v1153 = vpop.f32.mrb[0].mxu0
    %v1154 = vadd.f32 0.0, %v1153
    %v1155 = vpop.f32.mrb[0].mxu0
    %v1156 = vpop.f32.mrb[0].mxu0
    %v1157 = vpop.f32.mrb[0].mxu0
    %1158 = vdwg.mxu0
    %v1159 = vsel %vm853, %v1154, -inf
    %1160 = vmax.xlane.f32.xlu0 %v1159
    %v1161 = vpop.xlane.xlu0 %1160
    %v1162 = vsub.f32 %v1154, %v1161
    %v1163 = vmul.f32 %v1162, 1.442695
    %v1164 = vpow.pop %v1163
    %v1165 = vsel %vm853, %v1164, 0.0
    %1166 = vadd.xlane.f32.xlu0 %v1165
    %v1167 = vpop.xlane.xlu0 %1166
    %v1168 = vrcp.pop %v1167
    %v1169 = vmul.f32 %v1164, %v1168
    %v1170 = vpack.c.bf16 %v1169, %v1169
    %v1171 = vpack.c.bf16 %v681, %v681
    %v1172 = vpack.c.bf16 %v722, %v722
    %v1173 = vpack.c.bf16 %v724, %v724
    %1174 = vmatprep.subr.bf16.mxu0 0
    %1175 = vmatpush1.bf16.xpose.msra.mxu0 %v1172
    %1176 = vmatprep.subr.bf16.mxu0 0
    %1177 = vmatpush1.bf16.xpose.msra.mxu0 0
    %1178 = vmatprep.subr.bf16.mxu0 0
    %1179 = vmatpush1.bf16.xpose.msra.mxu0 0
    %1180 = vmatprep.subr.bf16.mxu0 0
    %1181 = vmatpush1.bf16.xpose.msra.mxu0 0
    %1182 = vmatprep.subr.bf16.mxu0 0
    %1183 = vmatpush1.bf16.xpose.msra.mxu0 0
    %1184 = vmatprep.subr.bf16.mxu0 0
    %1185 = vmatpush1.bf16.xpose.msra.mxu0 0
    %1186 = vmatprep.subr.bf16.mxu0 0
    %1187 = vmatpush1.bf16.xpose.msra.mxu0 0
    %1188 = vmatprep.subr.bf16.mxu0 0
    %1189 = vmatpush1.bf16.xpose.msra.mxu0 0
    %1190 = vmatprep.subr.bf16.mxu0 0
    %1191 = vmatpush1.bf16.xpose.msra.mxu0 0
    %1192 = vmatprep.subr.bf16.mxu0 0
    %1193 = vmatpush1.bf16.xpose.msra.mxu0 0
    %1194 = vmatprep.subr.bf16.mxu0 0
    %1195 = vmatpush1.bf16.xpose.msra.mxu0 0
    %1196 = vmatprep.subr.bf16.mxu0 0
    %1197 = vmatpush1.bf16.xpose.msra.mxu0 0
    %1198 = vmatprep.subr.bf16.mxu0 0
    %1199 = vmatpush1.bf16.xpose.msra.mxu0 0
    %1200 = vmatprep.subr.bf16.mxu0 0
    %1201 = vmatpush1.bf16.xpose.msra.mxu0 0
    %1202 = vmatprep.subr.bf16.mxu0 0
    %1203 = vmatpush1.bf16.xpose.msra.mxu0 0
    %1204 = vmatprep.subr.bf16.mxu0 0
    %1205 = vmatpush1.bf16.xpose.msra.mxu0 0
    %1206 = vmatprep.mubr.bf16.mxu0 0
    %1207 = vmatmul.mubr.bf16.gmra.mrb[0].mxu0 %v1171
    %v1208 = vpop.f32.mrb[0].mxu0
    %v1209 = vadd.f32 0.0, %v1208
    %v1210 = vpop.f32.mrb[0].mxu0
    %v1211 = vpop.f32.mrb[0].mxu0
    %v1212 = vpop.f32.mrb[0].mxu0
    %1213 = vdwg.mxu0
    %v1214 = vsel %vm853, %v1209, -inf
    %1215 = vmax.xlane.f32.xlu0 %v1214
    %v1216 = vpop.xlane.xlu0 %1215
    %v1217 = vsub.f32 %v1209, %v1216
    %v1218 = vmul.f32 %v1217, 1.442695
    %v1219 = vpow.pop %v1218
    %v1220 = vsel %vm853, %v1219, 0.0
    %1221 = vadd.xlane.f32.xlu0 %v1220
    %v1222 = vpop.xlane.xlu0 %1221
    %v1223 = vrcp.pop %v1222
    %v1224 = vmul.f32 %v1219, %v1223
    %v1225 = vpack.c.bf16 %v1224, %v1224
    %v1227 = vsel %vm853, %v1225, 0
    %v1230 = vsel %vm924, %v1173, 0
    %1232 = vmatprep.subr.bf16.mxu0 0
    %1233 = vmatpush1.bf16.msra.mxu0 %v1230
    %1234 = vmatprep.subr.bf16.mxu0 0
    %1235 = vmatpush1.bf16.msra.mxu0 0
    %1236 = vmatprep.subr.bf16.mxu0 0
    %1237 = vmatpush1.bf16.msra.mxu0 0
    %1238 = vmatprep.subr.bf16.mxu0 0
    %1239 = vmatpush1.bf16.msra.mxu0 0
    %1240 = vmatprep.subr.bf16.mxu0 0
    %1241 = vmatpush1.bf16.msra.mxu0 0
    %1242 = vmatprep.subr.bf16.mxu0 0
    %1243 = vmatpush1.bf16.msra.mxu0 0
    %1244 = vmatprep.subr.bf16.mxu0 0
    %1245 = vmatpush1.bf16.msra.mxu0 0
    %1246 = vmatprep.subr.bf16.mxu0 0
    %1247 = vmatpush1.bf16.msra.mxu0 0
    %1248 = vmatprep.subr.bf16.mxu0 0
    %1249 = vmatpush1.bf16.msra.mxu0 0
    %1250 = vmatprep.subr.bf16.mxu0 0
    %1251 = vmatpush1.bf16.msra.mxu0 0
    %1252 = vmatprep.subr.bf16.mxu0 0
    %1253 = vmatpush1.bf16.msra.mxu0 0
    %1254 = vmatprep.subr.bf16.mxu0 0
    %1255 = vmatpush1.bf16.msra.mxu0 0
    %1256 = vmatprep.subr.bf16.mxu0 0
    %1257 = vmatpush1.bf16.msra.mxu0 0
    %1258 = vmatprep.subr.bf16.mxu0 0
    %1259 = vmatpush1.bf16.msra.mxu0 0
    %1260 = vmatprep.subr.bf16.mxu0 0
    %1261 = vmatpush1.bf16.msra.mxu0 0
    %1262 = vmatprep.subr.bf16.mxu0 0
    %1263 = vmatpush1.bf16.msra.mxu0 0
    %1264 = vmatprep.mubr.bf16.mxu0 0
    %1265 = vmatmul.mubr.bf16.gmra.mrb[0].mxu0 %v1227
    %v1266 = vpop.f32.mrb[0].mxu0
    %v1267 = vadd.f32 0.0, %v1266
    %v1268 = vpop.f32.mrb[0].mxu0
    %v1269 = vpop.f32.mrb[0].mxu0
    %v1270 = vpop.f32.mrb[0].mxu0
    %1271 = vdwg.mxu0
    %v1273 = vsel %vm853, %v1170, 0
    %v1276 = vsel %vm924, %v1118, 0
    %1278 = vmatprep.subr.bf16.mxu0 0
    %1279 = vmatpush1.bf16.msra.mxu0 %v1276
    %1280 = vmatprep.subr.bf16.mxu0 0
    %1281 = vmatpush1.bf16.msra.mxu0 0
    %1282 = vmatprep.subr.bf16.mxu0 0
    %1283 = vmatpush1.bf16.msra.mxu0 0
    %1284 = vmatprep.subr.bf16.mxu0 0
    %1285 = vmatpush1.bf16.msra.mxu0 0
    %1286 = vmatprep.subr.bf16.mxu0 0
    %1287 = vmatpush1.bf16.msra.mxu0 0
    %1288 = vmatprep.subr.bf16.mxu0 0
    %1289 = vmatpush1.bf16.msra.mxu0 0
    %1290 = vmatprep.subr.bf16.mxu0 0
    %1291 = vmatpush1.bf16.msra.mxu0 0
    %1292 = vmatprep.subr.bf16.mxu0 0
    %1293 = vmatpush1.bf16.msra.mxu0 0
    %1294 = vmatprep.subr.bf16.mxu0 0
    %1295 = vmatpush1.bf16.msra.mxu0 0
    %1296 = vmatprep.subr.bf16.mxu0 0
    %1297 = vmatpush1.bf16.msra.mxu0 0
    %1298 = vmatprep.subr.bf16.mxu0 0
    %1299 = vmatpush1.bf16.msra.mxu0 0
    %1300 = vmatprep.subr.bf16.mxu0 0
    %1301 = vmatpush1.bf16.msra.mxu0 0
    %1302 = vmatprep.subr.bf16.mxu0 0
    %1303 = vmatpush1.bf16.msra.mxu0 0
    %1304 = vmatprep.subr.bf16.mxu0 0
    %1305 = vmatpush1.bf16.msra.mxu0 0
    %1306 = vmatprep.subr.bf16.mxu0 0
    %1307 = vmatpush1.bf16.msra.mxu0 0
    %1308 = vmatprep.subr.bf16.mxu0 0
    %1309 = vmatpush1.bf16.msra.mxu0 0
    %1310 = vmatprep.mubr.bf16.mxu0 0
    %1311 = vmatmul.mubr.bf16.gmra.mrb[0].mxu0 %v1273
    %v1312 = vpop.f32.mrb[0].mxu0
    %v1313 = vadd.f32 %v1267, %v1312
    %v1314 = vpop.f32.mrb[0].mxu0
    %v1315 = vpop.f32.mrb[0].mxu0
    %v1316 = vpop.f32.mrb[0].mxu0
    %1317 = vdwg.mxu0
    %v1318 = vpack.c.bf16 %v765, %v765
    %v1319 = vpack.c.bf16 %v767, %v767
    %v1320 = vpack.c.bf16 %v807, %v807
    %1321 = vmatprep.subr.bf16.mxu0 0
    %1322 = vmatpush1.bf16.xpose.msra.mxu0 %v1319
    %1323 = vmatprep.subr.bf16.mxu0 0
    %1324 = vmatpush1.bf16.xpose.msra.mxu0 0
    %1325 = vmatprep.subr.bf16.mxu0 0
    %1326 = vmatpush1.bf16.xpose.msra.mxu0 0
    %1327 = vmatprep.subr.bf16.mxu0 0
    %1328 = vmatpush1.bf16.xpose.msra.mxu0 0
    %1329 = vmatprep.subr.bf16.mxu0 0
    %1330 = vmatpush1.bf16.xpose.msra.mxu0 0
    %1331 = vmatprep.subr.bf16.mxu0 0
    %1332 = vmatpush1.bf16.xpose.msra.mxu0 0
    %1333 = vmatprep.subr.bf16.mxu0 0
    %1334 = vmatpush1.bf16.xpose.msra.mxu0 0
    %1335 = vmatprep.subr.bf16.mxu0 0
    %1336 = vmatpush1.bf16.xpose.msra.mxu0 0
    %1337 = vmatprep.subr.bf16.mxu0 0
    %1338 = vmatpush1.bf16.xpose.msra.mxu0 0
    %1339 = vmatprep.subr.bf16.mxu0 0
    %1340 = vmatpush1.bf16.xpose.msra.mxu0 0
    %1341 = vmatprep.subr.bf16.mxu0 0
    %1342 = vmatpush1.bf16.xpose.msra.mxu0 0
    %1343 = vmatprep.subr.bf16.mxu0 0
    %1344 = vmatpush1.bf16.xpose.msra.mxu0 0
    %1345 = vmatprep.subr.bf16.mxu0 0
    %1346 = vmatpush1.bf16.xpose.msra.mxu0 0
    %1347 = vmatprep.subr.bf16.mxu0 0
    %1348 = vmatpush1.bf16.xpose.msra.mxu0 0
    %1349 = vmatprep.subr.bf16.mxu0 0
    %1350 = vmatpush1.bf16.xpose.msra.mxu0 0
    %1351 = vmatprep.subr.bf16.mxu0 0
    %1352 = vmatpush1.bf16.xpose.msra.mxu0 0
    %1353 = vmatprep.mubr.bf16.mxu0 0
    %1354 = vmatmul.mubr.bf16.gmra.mrb[0].mxu0 %v1318
    %v1355 = vpop.f32.mrb[0].mxu0
    %v1356 = vadd.f32 0.0, %v1355
    %v1357 = vpop.f32.mrb[0].mxu0
    %v1358 = vpop.f32.mrb[0].mxu0
    %v1359 = vpop.f32.mrb[0].mxu0
    %1360 = vdwg.mxu0
    %v1361 = vsel %vm853, %v1356, -inf
    %1362 = vmax.xlane.f32.xlu0 %v1361
    %v1363 = vpop.xlane.xlu0 %1362
    %v1364 = vsub.f32 %v1356, %v1363
    %v1365 = vmul.f32 %v1364, 1.442695
    %v1366 = vpow.pop %v1365
    %v1367 = vsel %vm853, %v1366, 0.0
    %1368 = vadd.xlane.f32.xlu0 %v1367
    %v1369 = vpop.xlane.xlu0 %1368
    %v1370 = vrcp.pop %v1369
    %v1371 = vmul.f32 %v1366, %v1370
    %v1372 = vpack.c.bf16 %v1371, %v1371
    %v1374 = vsel %vm853, %v1372, 0
    %v1377 = vsel %vm924, %v1320, 0
    %1379 = vmatprep.subr.bf16.mxu0 0
    %1380 = vmatpush1.bf16.msra.mxu0 %v1377
    %1381 = vmatprep.subr.bf16.mxu0 0
    %1382 = vmatpush1.bf16.msra.mxu0 0
    %1383 = vmatprep.subr.bf16.mxu0 0
    %1384 = vmatpush1.bf16.msra.mxu0 0
    %1385 = vmatprep.subr.bf16.mxu0 0
    %1386 = vmatpush1.bf16.msra.mxu0 0
    %1387 = vmatprep.subr.bf16.mxu0 0
    %1388 = vmatpush1.bf16.msra.mxu0 0
    %1389 = vmatprep.subr.bf16.mxu0 0
    %1390 = vmatpush1.bf16.msra.mxu0 0
    %1391 = vmatprep.subr.bf16.mxu0 0
    %1392 = vmatpush1.bf16.msra.mxu0 0
    %1393 = vmatprep.subr.bf16.mxu0 0
    %1394 = vmatpush1.bf16.msra.mxu0 0
    %1395 = vmatprep.subr.bf16.mxu0 0
    %1396 = vmatpush1.bf16.msra.mxu0 0
    %1397 = vmatprep.subr.bf16.mxu0 0
    %1398 = vmatpush1.bf16.msra.mxu0 0
    %1399 = vmatprep.subr.bf16.mxu0 0
    %1400 = vmatpush1.bf16.msra.mxu0 0
    %1401 = vmatprep.subr.bf16.mxu0 0
    %1402 = vmatpush1.bf16.msra.mxu0 0
    %1403 = vmatprep.subr.bf16.mxu0 0
    %1404 = vmatpush1.bf16.msra.mxu0 0
    %1405 = vmatprep.subr.bf16.mxu0 0
    %1406 = vmatpush1.bf16.msra.mxu0 0
    %1407 = vmatprep.subr.bf16.mxu0 0
    %1408 = vmatpush1.bf16.msra.mxu0 0
    %1409 = vmatprep.subr.bf16.mxu0 0
    %1410 = vmatpush1.bf16.msra.mxu0 0
    %1411 = vmatprep.mubr.bf16.mxu0 0
    %1412 = vmatmul.mubr.bf16.gmra.mrb[0].mxu0 %v1374
    %v1413 = vpop.f32.mrb[0].mxu0
    %v1414 = vadd.f32 0.0, %v1413
    %v1415 = vpop.f32.mrb[0].mxu0
    %v1416 = vpop.f32.mrb[0].mxu0
    %v1417 = vpop.f32.mrb[0].mxu0
    %1418 = vdwg.mxu0
    %v1419 = vadd.f32 %v1313, %v1414
    %v1420 = vadd.f32 %v1115, %v96
    %v1421 = vadd.f32 %v1419, %v97
    %1422 = vadd.xlane.f32.xlu0 %v1420
    %v1423 = vpop.xlane.xlu0 %1422
    %1424 = vadd.xlane.f32.xlu0 %v1421
    %v1425 = vpop.xlane.xlu0 %1424
    %v1426 = vmul.f32 %v1423, 0.010416667
    %v1427 = vmul.f32 %v1425, 0.010416667
    %v1428 = vsub.f32 %v1420, %v1426
    %v1429 = vsub.f32 %v1421, %v1427
    %v1430 = vmul.f32 %v1428, %v102
    %v1431 = vmul.f32 %v1429, %v102
    %v1432 = vmul.f32 %v1430, %v1430
    %v1433 = vmul.f32 %v1431, %v1431
    %1434 = vadd.xlane.f32.xlu0 %v1432
    %v1435 = vpop.xlane.xlu0 %1434
    %1436 = vadd.xlane.f32.xlu0 %v1433
    %v1437 = vpop.xlane.xlu0 %1436
    %v1438 = vmul.f32 %v1435, 0.010416667
    %v1439 = vmul.f32 %v1437, 0.010416667
    %v1440 = vadd.f32 %v1438, 1e-05
    %v1441 = vadd.f32 %v1439, 1e-05
    %v1442 = vrsqrt.pop %v1440
    %v1443 = vrsqrt.pop %v1441
    %v1444 = vmul.f32 %v1430, %v1442
    %v1445 = vmul.f32 %v1431, %v1443
    %v1446 = vlaneseq
    %v1447 = vshrl.u32 %v1446, 7
    %v1448 = vsub.s32 3, %v1447
    %v1449 = vrot.slane %v103, %v1448
    %v1450 = vmul.f32 %v1444, %v1449
    %v1451 = vmul.f32 %v1445, %v1449
    %v1452 = vlaneseq
    %v1453 = vshrl.u32 %v1452, 7
    %v1454 = vsub.s32 4, %v1453
    %v1455 = vrot.slane %v103, %v1454
    %v1456 = vadd.f32 %v1450, %v1455
    %v1457 = vadd.f32 %v1451, %v1455
    %v1458 = vpack.c.bf16 %v1457, %v1456
    %v1459 = vld [vmem:[#allocation8] sm:$0xff]
    %v1460 = vld [vmem:[#allocation8 + $0x8] sm:$0xff]
    %v1461 = vld [vmem:[#allocation8 + $0x10] sm:$0xff]
    %v1462 = vld [vmem:[#allocation8 + $0x18] sm:$0xff]
    %v1463 = vld [vmem:[#allocation8 + $0x20] sm:$0xff]
    %v1464 = vld [vmem:[#allocation8 + $0x28] sm:$0xff]
    %v1465 = vld [vmem:[#allocation8 + $0x30] sm:$0xff]
    %v1466 = vld [vmem:[#allocation8 + $0x38] sm:$0xff]
    %v1467 = vld [vmem:[#allocation8 + $0x40] sm:$0xff]
    %v1468 = vld [vmem:[#allocation8 + $0x48] sm:$0xff]
    %v1469 = vld [vmem:[#allocation8 + $0x50] sm:$0xff]
    %v1470 = vld [vmem:[#allocation8 + $0x58] sm:$0xff]
    %v1471 = vld [vmem:[#allocation8 + $0x60] sm:$0xff]
    %v1472 = vld [vmem:[#allocation8 + $0x68] sm:$0xff]
    %v1473 = vld [vmem:[#allocation8 + $0x70] sm:$0xff]
    %v1474 = vld [vmem:[#allocation8 + $0x78] sm:$0xff]
    %v1475 = vld [vmem:[#allocation8 + $0x80] sm:$0xff]
    %v1476 = vld [vmem:[#allocation8 + $0x88] sm:$0xff]
    %v1477 = vld [vmem:[#allocation8 + $0x90] sm:$0xff]
    %v1478 = vld [vmem:[#allocation8 + $0x98] sm:$0xff]
    %v1479 = vld [vmem:[#allocation8 + $0xa0] sm:$0xff]
    %v1480 = vld [vmem:[#allocation8 + $0xa8] sm:$0xff]
    %v1481 = vld [vmem:[#allocation8 + $0xb0] sm:$0xff]
    %v1482 = vld [vmem:[#allocation8 + $0xb8] sm:$0xff]
    %v1483 = vld [vmem:[#allocation8 + $0xc0] sm:$0xff]
    %v1484 = vld [vmem:[#allocation8 + $0xc8] sm:$0xff]
    %v1485 = vld [vmem:[#allocation8 + $0xd0] sm:$0xff]
    %v1486 = vld [vmem:[#allocation8 + $0xd8] sm:$0xff]
    %v1487 = vld [vmem:[#allocation8 + $0xe0] sm:$0xff]
    %v1488 = vld [vmem:[#allocation8 + $0xe8] sm:$0xff]
    %v1489 = vld [vmem:[#allocation8 + $0xf0] sm:$0xff]
    %v1490 = vld [vmem:[#allocation8 + $0xf8] sm:$0xff]
    %v1491 = vld [vmem:[#allocation8 + $0x100] sm:$0xff]
    %v1492 = vld [vmem:[#allocation8 + $0x108] sm:$0xff]
    %v1493 = vld [vmem:[#allocation8 + $0x110] sm:$0xff]
    %v1494 = vld [vmem:[#allocation8 + $0x118] sm:$0xff]
    %v1495 = vld [vmem:[#allocation8 + $0x120] sm:$0xff]
    %v1496 = vld [vmem:[#allocation8 + $0x128] sm:$0xff]
    %v1497 = vld [vmem:[#allocation8 + $0x130] sm:$0xff]
    %v1498 = vld [vmem:[#allocation8 + $0x138] sm:$0xff]
    %v1499 = vld [vmem:[#allocation8 + $0x140] sm:$0xff]
    %v1500 = vld [vmem:[#allocation8 + $0x148] sm:$0xff]
    %v1501 = vld [vmem:[#allocation8 + $0x150] sm:$0xff]
    %v1502 = vld [vmem:[#allocation8 + $0x158] sm:$0xff]
    %v1503 = vld [vmem:[#allocation8 + $0x160] sm:$0xff]
    %v1504 = vld [vmem:[#allocation8 + $0x168] sm:$0xff]
    %v1505 = vld [vmem:[#allocation8 + $0x170] sm:$0xff]
    %v1506 = vld [vmem:[#allocation8 + $0x178] sm:$0xff]
    %v1507 = vld [vmem:[#allocation8 + $0x180] sm:$0xff]
    %v1508 = vld [vmem:[#allocation8 + $0x188] sm:$0xff]
    %v1509 = vld [vmem:[#allocation8 + $0x190] sm:$0xff]
    %v1510 = vld [vmem:[#allocation8 + $0x198] sm:$0xff]
    %v1511 = vld [vmem:[#allocation8 + $0x1a0] sm:$0xff]
    %v1512 = vld [vmem:[#allocation8 + $0x1a8] sm:$0xff]
    %v1513 = vld [vmem:[#allocation8 + $0x1b0] sm:$0xff]
    %v1514 = vld [vmem:[#allocation8 + $0x1b8] sm:$0xff]
    %v1515 = vld [vmem:[#allocation8 + $0x1c0] sm:$0xff]
    %v1516 = vld [vmem:[#allocation8 + $0x1c8] sm:$0xff]
    %v1517 = vld [vmem:[#allocation8 + $0x1d0] sm:$0xff]
    %v1518 = vld [vmem:[#allocation8 + $0x1d8] sm:$0xff]
    %v1519 = vld [vmem:[#allocation8 + $0x1e0] sm:$0xff]
    %v1520 = vld [vmem:[#allocation8 + $0x1e8] sm:$0xff]
    %v1521 = vld [vmem:[#allocation8 + $0x1f0] sm:$0xff]
    %v1522 = vld [vmem:[#allocation8 + $0x1f8] sm:$0xff]
    %v1523 = vlaneseq
    %v1524 = vshrl.u32 %v1523, 7
    %v1525 = vsub.s32 1, %v1524
    %v1526 = vrot.slane %v103, %v1525
    %v1527 = vlaneseq
    %v1528 = vshrl.u32 %v1527, 7
    %v1529 = vsub.s32 1, %v1528
    %v1530 = vrot.slane %v104, %v1529
    %v1531 = vlaneseq
    %v1532 = vshrl.u32 %v1531, 7
    %v1533 = vsub.s32 1, %v1532
    %v1534 = vrot.slane %v105, %v1533
    %v1535 = vlaneseq
    %v1536 = vshrl.u32 %v1535, 7
    %v1537 = vsub.s32 1, %v1536
    %v1538 = vrot.slane %v106, %v1537
    %v1539 = vlaneseq
    %v1540 = vshrl.u32 %v1539, 7
    %v1541 = vsub.s32 1, %v1540
    %v1542 = vrot.slane %v107, %v1541
    %v1543 = vlaneseq
    %v1544 = vshrl.u32 %v1543, 7
    %v1545 = vsub.s32 1, %v1544
    %v1546 = vrot.slane %v108, %v1545
    %v1547 = vlaneseq
    %v1548 = vshrl.u32 %v1547, 7
    %v1549 = vsub.s32 1, %v1548
    %v1550 = vrot.slane %v109, %v1549
    %v1551 = vlaneseq
    %v1552 = vshrl.u32 %v1551, 7
    %v1553 = vsub.s32 1, %v1552
    %v1554 = vrot.slane %v110, %v1553
    %v1619 = vunpack.c.l.b16 %v1459
    %v1620 = vunpack.c.h.b16 %v1459
    %v1621 = vunpack.c.l.b16 %v1460
    %v1622 = vunpack.c.h.b16 %v1460
    %v1623 = vunpack.c.l.b16 %v1461
    %v1624 = vunpack.c.h.b16 %v1461
    %v1625 = vunpack.c.l.b16 %v1462
    %v1626 = vunpack.c.h.b16 %v1462
    %v1627 = vunpack.c.l.b16 %v1463
    %v1628 = vunpack.c.h.b16 %v1463
    %v1629 = vunpack.c.l.b16 %v1464
    %v1630 = vunpack.c.h.b16 %v1464
    %v1631 = vunpack.c.l.b16 %v1465
    %v1632 = vunpack.c.h.b16 %v1465
    %v1633 = vunpack.c.l.b16 %v1466
    %v1634 = vunpack.c.h.b16 %v1466
    %v1635 = vunpack.c.l.b16 %v1467
    %v1636 = vunpack.c.h.b16 %v1467
    %v1637 = vunpack.c.l.b16 %v1468
    %v1638 = vunpack.c.h.b16 %v1468
    %v1639 = vunpack.c.l.b16 %v1469
    %v1640 = vunpack.c.h.b16 %v1469
    %v1641 = vunpack.c.l.b16 %v1470
    %v1642 = vunpack.c.h.b16 %v1470
    %v1643 = vunpack.c.l.b16 %v1471
    %v1644 = vunpack.c.h.b16 %v1471
    %v1645 = vunpack.c.l.b16 %v1472
    %v1646 = vunpack.c.h.b16 %v1472
    %v1647 = vunpack.c.l.b16 %v1473
    %v1648 = vunpack.c.h.b16 %v1473
    %v1649 = vunpack.c.l.b16 %v1474
    %v1650 = vunpack.c.h.b16 %v1474
    %v1651 = vunpack.c.l.b16 %v1475
    %v1652 = vunpack.c.h.b16 %v1475
    %v1653 = vunpack.c.l.b16 %v1476
    %v1654 = vunpack.c.h.b16 %v1476
    %v1655 = vunpack.c.l.b16 %v1477
    %v1656 = vunpack.c.h.b16 %v1477
    %v1657 = vunpack.c.l.b16 %v1478
    %v1658 = vunpack.c.h.b16 %v1478
    %v1659 = vunpack.c.l.b16 %v1479
    %v1660 = vunpack.c.h.b16 %v1479
    %v1661 = vunpack.c.l.b16 %v1480
    %v1662 = vunpack.c.h.b16 %v1480
    %v1663 = vunpack.c.l.b16 %v1481
    %v1664 = vunpack.c.h.b16 %v1481
    %v1665 = vunpack.c.l.b16 %v1482
    %v1666 = vunpack.c.h.b16 %v1482
    %v1667 = vunpack.c.l.b16 %v1483
    %v1668 = vunpack.c.h.b16 %v1483
    %v1669 = vunpack.c.l.b16 %v1484
    %v1670 = vunpack.c.h.b16 %v1484
    %v1671 = vunpack.c.l.b16 %v1485
    %v1672 = vunpack.c.h.b16 %v1485
    %v1673 = vunpack.c.l.b16 %v1486
    %v1674 = vunpack.c.h.b16 %v1486
    %v1675 = vunpack.c.l.b16 %v1487
    %v1676 = vunpack.c.h.b16 %v1487
    %v1677 = vunpack.c.l.b16 %v1488
    %v1678 = vunpack.c.h.b16 %v1488
    %v1679 = vunpack.c.l.b16 %v1489
    %v1680 = vunpack.c.h.b16 %v1489
    %v1681 = vunpack.c.l.b16 %v1490
    %v1682 = vunpack.c.h.b16 %v1490
    %v1683 = vunpack.c.l.b16 %v1491
    %v1684 = vunpack.c.h.b16 %v1491
    %v1685 = vunpack.c.l.b16 %v1492
    %v1686 = vunpack.c.h.b16 %v1492
    %v1687 = vunpack.c.l.b16 %v1493
    %v1688 = vunpack.c.h.b16 %v1493
    %v1689 = vunpack.c.l.b16 %v1494
    %v1690 = vunpack.c.h.b16 %v1494
    %v1691 = vunpack.c.l.b16 %v1495
    %v1692 = vunpack.c.h.b16 %v1495
    %v1693 = vunpack.c.l.b16 %v1496
    %v1694 = vunpack.c.h.b16 %v1496
    %v1695 = vunpack.c.l.b16 %v1497
    %v1696 = vunpack.c.h.b16 %v1497
    %v1697 = vunpack.c.l.b16 %v1498
    %v1698 = vunpack.c.h.b16 %v1498
    %v1699 = vunpack.c.l.b16 %v1499
    %v1700 = vunpack.c.h.b16 %v1499
    %v1701 = vunpack.c.l.b16 %v1500
    %v1702 = vunpack.c.h.b16 %v1500
    %v1703 = vunpack.c.l.b16 %v1501
    %v1704 = vunpack.c.h.b16 %v1501
    %v1705 = vunpack.c.l.b16 %v1502
    %v1706 = vunpack.c.h.b16 %v1502
    %v1707 = vunpack.c.l.b16 %v1503
    %v1708 = vunpack.c.h.b16 %v1503
    %v1709 = vunpack.c.l.b16 %v1504
    %v1710 = vunpack.c.h.b16 %v1504
    %v1711 = vunpack.c.l.b16 %v1505
    %v1712 = vunpack.c.h.b16 %v1505
    %v1713 = vunpack.c.l.b16 %v1506
    %v1714 = vunpack.c.h.b16 %v1506
    %v1715 = vunpack.c.l.b16 %v1507
    %v1716 = vunpack.c.h.b16 %v1507
    %v1717 = vunpack.c.l.b16 %v1508
    %v1718 = vunpack.c.h.b16 %v1508
    %v1719 = vunpack.c.l.b16 %v1509
    %v1720 = vunpack.c.h.b16 %v1509
    %v1721 = vunpack.c.l.b16 %v1510
    %v1722 = vunpack.c.h.b16 %v1510
    %v1723 = vunpack.c.l.b16 %v1511
    %v1724 = vunpack.c.h.b16 %v1511
    %v1725 = vunpack.c.l.b16 %v1512
    %v1726 = vunpack.c.h.b16 %v1512
    %v1727 = vunpack.c.l.b16 %v1513
    %v1728 = vunpack.c.h.b16 %v1513
    %v1729 = vunpack.c.l.b16 %v1514
    %v1730 = vunpack.c.h.b16 %v1514
    %v1731 = vunpack.c.l.b16 %v1515
    %v1732 = vunpack.c.h.b16 %v1515
    %v1733 = vunpack.c.l.b16 %v1516
    %v1734 = vunpack.c.h.b16 %v1516
    %v1735 = vunpack.c.l.b16 %v1517
    %v1736 = vunpack.c.h.b16 %v1517
    %v1737 = vunpack.c.l.b16 %v1518
    %v1738 = vunpack.c.h.b16 %v1518
    %v1739 = vunpack.c.l.b16 %v1519
    %v1740 = vunpack.c.h.b16 %v1519
    %v1741 = vunpack.c.l.b16 %v1520
    %v1742 = vunpack.c.h.b16 %v1520
    %v1743 = vunpack.c.l.b16 %v1521
    %v1744 = vunpack.c.h.b16 %v1521
    %v1745 = vunpack.c.l.b16 %v1522
    %v1746 = vunpack.c.h.b16 %v1522
    %v1747 = vpack.c.b16 %v1627, %v1619
    %v1748 = vpack.c.b16 %v1628, %v1620
    %v1749 = vpack.c.b16 %v1629, %v1621
    %v1750 = vpack.c.b16 %v1630, %v1622
    %v1751 = vpack.c.b16 %v1631, %v1623
    %v1752 = vpack.c.b16 %v1632, %v1624
    %v1753 = vpack.c.b16 %v1633, %v1625
    %v1754 = vpack.c.b16 %v1634, %v1626
    %v1755 = vpack.c.b16 %v1643, %v1635
    %v1756 = vpack.c.b16 %v1644, %v1636
    %v1757 = vpack.c.b16 %v1645, %v1637
    %v1758 = vpack.c.b16 %v1646, %v1638
    %v1759 = vpack.c.b16 %v1647, %v1639
    %v1760 = vpack.c.b16 %v1648, %v1640
    %v1761 = vpack.c.b16 %v1649, %v1641
    %v1762 = vpack.c.b16 %v1650, %v1642
    %v1763 = vpack.c.b16 %v1659, %v1651
    %v1764 = vpack.c.b16 %v1660, %v1652
    %v1765 = vpack.c.b16 %v1661, %v1653
    %v1766 = vpack.c.b16 %v1662, %v1654
    %v1767 = vpack.c.b16 %v1663, %v1655
    %v1768 = vpack.c.b16 %v1664, %v1656
    %v1769 = vpack.c.b16 %v1665, %v1657
    %v1770 = vpack.c.b16 %v1666, %v1658
    %v1771 = vpack.c.b16 %v1675, %v1667
    %v1772 = vpack.c.b16 %v1676, %v1668
    %v1773 = vpack.c.b16 %v1677, %v1669
    %v1774 = vpack.c.b16 %v1678, %v1670
    %v1775 = vpack.c.b16 %v1679, %v1671
    %v1776 = vpack.c.b16 %v1680, %v1672
    %v1777 = vpack.c.b16 %v1681, %v1673
    %v1778 = vpack.c.b16 %v1682, %v1674
    %v1779 = vpack.c.b16 %v1691, %v1683
    %v1780 = vpack.c.b16 %v1692, %v1684
    %v1781 = vpack.c.b16 %v1693, %v1685
    %v1782 = vpack.c.b16 %v1694, %v1686
    %v1783 = vpack.c.b16 %v1695, %v1687
    %v1784 = vpack.c.b16 %v1696, %v1688
    %v1785 = vpack.c.b16 %v1697, %v1689
    %v1786 = vpack.c.b16 %v1698, %v1690
    %v1787 = vpack.c.b16 %v1707, %v1699
    %v1788 = vpack.c.b16 %v1708, %v1700
    %v1789 = vpack.c.b16 %v1709, %v1701
    %v1790 = vpack.c.b16 %v1710, %v1702
    %v1791 = vpack.c.b16 %v1711, %v1703
    %v1792 = vpack.c.b16 %v1712, %v1704
    %v1793 = vpack.c.b16 %v1713, %v1705
    %v1794 = vpack.c.b16 %v1714, %v1706
    %v1795 = vpack.c.b16 %v1723, %v1715
    %v1796 = vpack.c.b16 %v1724, %v1716
    %v1797 = vpack.c.b16 %v1725, %v1717
    %v1798 = vpack.c.b16 %v1726, %v1718
    %v1799 = vpack.c.b16 %v1727, %v1719
    %v1800 = vpack.c.b16 %v1728, %v1720
    %v1801 = vpack.c.b16 %v1729, %v1721
    %v1802 = vpack.c.b16 %v1730, %v1722
    %v1803 = vpack.c.b16 %v1739, %v1731
    %v1804 = vpack.c.b16 %v1740, %v1732
    %v1805 = vpack.c.b16 %v1741, %v1733
    %v1806 = vpack.c.b16 %v1742, %v1734
    %v1807 = vpack.c.b16 %v1743, %v1735
    %v1808 = vpack.c.b16 %v1744, %v1736
    %v1809 = vpack.c.b16 %v1745, %v1737
    %v1810 = vpack.c.b16 %v1746, %v1738
    %1875 = vmatprep.subr.bf16.mxu0 %v1748
    %1876 = vmatpush1.bf16.msra.mxu0 %v1747
    %1877 = vmatprep.subr.bf16.mxu0 %v1756
    %1878 = vmatpush1.bf16.msra.mxu0 %v1755
    %1879 = vmatprep.subr.bf16.mxu0 %v1764
    %1880 = vmatpush1.bf16.msra.mxu0 %v1763
    %1881 = vmatprep.subr.bf16.mxu0 %v1772
    %1882 = vmatpush1.bf16.msra.mxu0 %v1771
    %1883 = vmatprep.subr.bf16.mxu0 %v1780
    %1884 = vmatpush1.bf16.msra.mxu0 %v1779
    %1885 = vmatprep.subr.bf16.mxu0 %v1788
    %1886 = vmatpush1.bf16.msra.mxu0 %v1787
    %1887 = vmatprep.subr.bf16.mxu0 %v1796
    %1888 = vmatpush1.bf16.msra.mxu0 %v1795
    %1889 = vmatprep.subr.bf16.mxu0 %v1804
    %1890 = vmatpush1.bf16.msra.mxu0 %v1803
    %1891 = vmatprep.subr.bf16.mxu0 0
    %1892 = vmatpush1.bf16.msra.mxu0 0
    %1893 = vmatprep.subr.bf16.mxu0 0
    %1894 = vmatpush1.bf16.msra.mxu0 0
    %1895 = vmatprep.subr.bf16.mxu0 0
    %1896 = vmatpush1.bf16.msra.mxu0 0
    %1897 = vmatprep.subr.bf16.mxu0 0
    %1898 = vmatpush1.bf16.msra.mxu0 0
    %1899 = vmatprep.subr.bf16.mxu0 0
    %1900 = vmatpush1.bf16.msra.mxu0 0
    %1901 = vmatprep.subr.bf16.mxu0 0
    %1902 = vmatpush1.bf16.msra.mxu0 0
    %1903 = vmatprep.subr.bf16.mxu0 0
    %1904 = vmatpush1.bf16.msra.mxu0 0
    %1905 = vmatprep.subr.bf16.mxu0 0
    %1906 = vmatpush1.bf16.msra.mxu0 0
    %1907 = vmatprep.mubr.bf16.mxu0 0
    %1908 = vmatmul.mubr.bf16.gmra.mrb[0].mxu0 %v1458
    %v1909 = vpop.f32.mrb[0].mxu0
    %v1910 = vadd.f32 %v1526, %v1909
    %v1911 = vpop.f32.mrb[0].mxu0
    %v1912 = vadd.f32 %v1530, %v1911
    %v1913 = vpop.f32.mrb[0].mxu0
    %v1914 = vadd.f32 %v1526, %v1913
    %v1915 = vpop.f32.mrb[0].mxu0
    %v1916 = vadd.f32 %v1530, %v1915
    %1917 = vdwg.mxu0
    %1918 = vmatprep.subr.bf16.mxu0 %v1750
    %1919 = vmatpush1.bf16.msra.mxu0 %v1749
    %1920 = vmatprep.subr.bf16.mxu0 %v1758
    %1921 = vmatpush1.bf16.msra.mxu0 %v1757
    %1922 = vmatprep.subr.bf16.mxu0 %v1766
    %1923 = vmatpush1.bf16.msra.mxu0 %v1765
    %1924 = vmatprep.subr.bf16.mxu0 %v1774
    %1925 = vmatpush1.bf16.msra.mxu0 %v1773
    %1926 = vmatprep.subr.bf16.mxu0 %v1782
    %1927 = vmatpush1.bf16.msra.mxu0 %v1781
    %1928 = vmatprep.subr.bf16.mxu0 %v1790
    %1929 = vmatpush1.bf16.msra.mxu0 %v1789
    %1930 = vmatprep.subr.bf16.mxu0 %v1798
    %1931 = vmatpush1.bf16.msra.mxu0 %v1797
    %1932 = vmatprep.subr.bf16.mxu0 %v1806
    %1933 = vmatpush1.bf16.msra.mxu0 %v1805
    %1934 = vmatprep.subr.bf16.mxu0 0
    %1935 = vmatpush1.bf16.msra.mxu0 0
    %1936 = vmatprep.subr.bf16.mxu0 0
    %1937 = vmatpush1.bf16.msra.mxu0 0
    %1938 = vmatprep.subr.bf16.mxu0 0
    %1939 = vmatpush1.bf16.msra.mxu0 0
    %1940 = vmatprep.subr.bf16.mxu0 0
    %1941 = vmatpush1.bf16.msra.mxu0 0
    %1942 = vmatprep.subr.bf16.mxu0 0
    %1943 = vmatpush1.bf16.msra.mxu0 0
    %1944 = vmatprep.subr.bf16.mxu0 0
    %1945 = vmatpush1.bf16.msra.mxu0 0
    %1946 = vmatprep.subr.bf16.mxu0 0
    %1947 = vmatpush1.bf16.msra.mxu0 0
    %1948 = vmatprep.subr.bf16.mxu0 0
    %1949 = vmatpush1.bf16.msra.mxu0 0
    %1950 = vmatprep.mubr.bf16.mxu0 0
    %1951 = vmatmul.mubr.bf16.gmra.mrb[0].mxu0 %v1458
    %v1952 = vpop.f32.mrb[0].mxu0
    %v1953 = vadd.f32 %v1534, %v1952
    %v1954 = vpop.f32.mrb[0].mxu0
    %v1955 = vadd.f32 %v1538, %v1954
    %v1956 = vpop.f32.mrb[0].mxu0
    %v1957 = vadd.f32 %v1534, %v1956
    %v1958 = vpop.f32.mrb[0].mxu0
    %v1959 = vadd.f32 %v1538, %v1958
    %1960 = vdwg.mxu0
    %1961 = vmatprep.subr.bf16.mxu0 %v1752
    %1962 = vmatpush1.bf16.msra.mxu0 %v1751
    %1963 = vmatprep.subr.bf16.mxu0 %v1760
    %1964 = vmatpush1.bf16.msra.mxu0 %v1759
    %1965 = vmatprep.subr.bf16.mxu0 %v1768
    %1966 = vmatpush1.bf16.msra.mxu0 %v1767
    %1967 = vmatprep.subr.bf16.mxu0 %v1776
    %1968 = vmatpush1.bf16.msra.mxu0 %v1775
    %1969 = vmatprep.subr.bf16.mxu0 %v1784
    %1970 = vmatpush1.bf16.msra.mxu0 %v1783
    %1971 = vmatprep.subr.bf16.mxu0 %v1792
    %1972 = vmatpush1.bf16.msra.mxu0 %v1791
    %1973 = vmatprep.subr.bf16.mxu0 %v1800
    %1974 = vmatpush1.bf16.msra.mxu0 %v1799
    %1975 = vmatprep.subr.bf16.mxu0 %v1808
    %1976 = vmatpush1.bf16.msra.mxu0 %v1807
    %1977 = vmatprep.subr.bf16.mxu0 0
    %1978 = vmatpush1.bf16.msra.mxu0 0
    %1979 = vmatprep.subr.bf16.mxu0 0
    %1980 = vmatpush1.bf16.msra.mxu0 0
    %1981 = vmatprep.subr.bf16.mxu0 0
    %1982 = vmatpush1.bf16.msra.mxu0 0
    %1983 = vmatprep.subr.bf16.mxu0 0
    %1984 = vmatpush1.bf16.msra.mxu0 0
    %1985 = vmatprep.subr.bf16.mxu0 0
    %1986 = vmatpush1.bf16.msra.mxu0 0
    %1987 = vmatprep.subr.bf16.mxu0 0
    %1988 = vmatpush1.bf16.msra.mxu0 0
    %1989 = vmatprep.subr.bf16.mxu0 0
    %1990 = vmatpush1.bf16.msra.mxu0 0
    %1991 = vmatprep.subr.bf16.mxu0 0
    %1992 = vmatpush1.bf16.msra.mxu0 0
    %1993 = vmatprep.mubr.bf16.mxu0 0
    %1994 = vmatmul.mubr.bf16.gmra.mrb[0].mxu0 %v1458
    %v1995 = vpop.f32.mrb[0].mxu0
    %v1996 = vadd.f32 %v1542, %v1995
    %v1997 = vpop.f32.mrb[0].mxu0
    %v1998 = vadd.f32 %v1546, %v1997
    %v1999 = vpop.f32.mrb[0].mxu0
    %v2000 = vadd.f32 %v1542, %v1999
    %v2001 = vpop.f32.mrb[0].mxu0
    %v2002 = vadd.f32 %v1546, %v2001
    %2003 = vdwg.mxu0
    %2004 = vmatprep.subr.bf16.mxu0 %v1754
    %2005 = vmatpush1.bf16.msra.mxu0 %v1753
    %2006 = vmatprep.subr.bf16.mxu0 %v1762
    %2007 = vmatpush1.bf16.msra.mxu0 %v1761
    %2008 = vmatprep.subr.bf16.mxu0 %v1770
    %2009 = vmatpush1.bf16.msra.mxu0 %v1769
    %2010 = vmatprep.subr.bf16.mxu0 %v1778
    %2011 = vmatpush1.bf16.msra.mxu0 %v1777
    %2012 = vmatprep.subr.bf16.mxu0 %v1786
    %2013 = vmatpush1.bf16.msra.mxu0 %v1785
    %2014 = vmatprep.subr.bf16.mxu0 %v1794
    %2015 = vmatpush1.bf16.msra.mxu0 %v1793
    %2016 = vmatprep.subr.bf16.mxu0 %v1802
    %2017 = vmatpush1.bf16.msra.mxu0 %v1801
    %2018 = vmatprep.subr.bf16.mxu0 %v1810
    %2019 = vmatpush1.bf16.msra.mxu0 %v1809
    %2020 = vmatprep.subr.bf16.mxu0 0
    %2021 = vmatpush1.bf16.msra.mxu0 0
    %2022 = vmatprep.subr.bf16.mxu0 0
    %2023 = vmatpush1.bf16.msra.mxu0 0
    %2024 = vmatprep.subr.bf16.mxu0 0
    %2025 = vmatpush1.bf16.msra.mxu0 0
    %2026 = vmatprep.subr.bf16.mxu0 0
    %2027 = vmatpush1.bf16.msra.mxu0 0
    %2028 = vmatprep.subr.bf16.mxu0 0
    %2029 = vmatpush1.bf16.msra.mxu0 0
    %2030 = vmatprep.subr.bf16.mxu0 0
    %2031 = vmatpush1.bf16.msra.mxu0 0
    %2032 = vmatprep.subr.bf16.mxu0 0
    %2033 = vmatpush1.bf16.msra.mxu0 0
    %2034 = vmatprep.subr.bf16.mxu0 0
    %2035 = vmatpush1.bf16.msra.mxu0 0
    %2036 = vmatprep.mubr.bf16.mxu0 0
    %2037 = vmatmul.mubr.bf16.gmra.mrb[0].mxu0 %v1458
    %v2038 = vpop.f32.mrb[0].mxu0
    %v2039 = vadd.f32 %v1550, %v2038
    %v2040 = vpop.f32.mrb[0].mxu0
    %v2041 = vadd.f32 %v1554, %v2040
    %v2042 = vpop.f32.mrb[0].mxu0
    %v2043 = vadd.f32 %v1550, %v2042
    %v2044 = vpop.f32.mrb[0].mxu0
    %v2045 = vadd.f32 %v1554, %v2044
    %2046 = vdwg.mxu0
    %v2047 = vmul.f32 %v1910, 0.5
    %v2048 = vmul.f32 %v1912, 0.5
    %v2049 = vmul.f32 %v1953, 0.5
    %v2050 = vmul.f32 %v1955, 0.5
    %v2051 = vmul.f32 %v1996, 0.5
    %v2052 = vmul.f32 %v1998, 0.5
    %v2053 = vmul.f32 %v2039, 0.5
    %v2054 = vmul.f32 %v2041, 0.5
    %v2055 = vmul.f32 %v1914, 0.5
    %v2056 = vmul.f32 %v1916, 0.5
    %v2057 = vmul.f32 %v1957, 0.5
    %v2058 = vmul.f32 %v1959, 0.5
    %v2059 = vmul.f32 %v2000, 0.5
    %v2060 = vmul.f32 %v2002, 0.5
    %v2061 = vmul.f32 %v2043, 0.5
    %v2062 = vmul.f32 %v2045, 0.5
    %v2063 = vmul.f32 %v1910, 0.044715
    %v2064 = vmul.f32 %v1912, 0.044715
    %v2065 = vmul.f32 %v1953, 0.044715
    %v2066 = vmul.f32 %v1955, 0.044715
    %v2067 = vmul.f32 %v1996, 0.044715
    %v2068 = vmul.f32 %v1998, 0.044715
    %v2069 = vmul.f32 %v2039, 0.044715
    %v2070 = vmul.f32 %v2041, 0.044715
    %v2071 = vmul.f32 %v1914, 0.044715
    %v2072 = vmul.f32 %v1916, 0.044715
    %v2073 = vmul.f32 %v1957, 0.044715
    %v2074 = vmul.f32 %v1959, 0.044715
    %v2075 = vmul.f32 %v2000, 0.044715
    %v2076 = vmul.f32 %v2002, 0.044715
    %v2077 = vmul.f32 %v2043, 0.044715
    %v2078 = vmul.f32 %v2045, 0.044715
    %v2079 = vmul.f32 %v2063, %v1910
    %v2080 = vmul.f32 %v2064, %v1912
    %v2081 = vmul.f32 %v2065, %v1953
    %v2082 = vmul.f32 %v2066, %v1955
    %v2083 = vmul.f32 %v2067, %v1996
    %v2084 = vmul.f32 %v2068, %v1998
    %v2085 = vmul.f32 %v2069, %v2039
    %v2086 = vmul.f32 %v2070, %v2041
    %v2087 = vmul.f32 %v2071, %v1914
    %v2088 = vmul.f32 %v2072, %v1916
    %v2089 = vmul.f32 %v2073, %v1957
    %v2090 = vmul.f32 %v2074, %v1959
    %v2091 = vmul.f32 %v2075, %v2000
    %v2092 = vmul.f32 %v2076, %v2002
    %v2093 = vmul.f32 %v2077, %v2043
    %v2094 = vmul.f32 %v2078, %v2045
    %v2095 = vmul.f32 %v2079, %v1910
    %v2096 = vmul.f32 %v2080, %v1912
    %v2097 = vmul.f32 %v2081, %v1953
    %v2098 = vmul.f32 %v2082, %v1955
    %v2099 = vmul.f32 %v2083, %v1996
    %v2100 = vmul.f32 %v2084, %v1998
    %v2101 = vmul.f32 %v2085, %v2039
    %v2102 = vmul.f32 %v2086, %v2041
    %v2103 = vmul.f32 %v2087, %v1914
    %v2104 = vmul.f32 %v2088, %v1916
    %v2105 = vmul.f32 %v2089, %v1957
    %v2106 = vmul.f32 %v2090, %v1959
    %v2107 = vmul.f32 %v2091, %v2000
    %v2108 = vmul.f32 %v2092, %v2002
    %v2109 = vmul.f32 %v2093, %v2043
    %v2110 = vmul.f32 %v2094, %v2045
    %v2111 = vadd.f32 %v1910, %v2095
    %v2112 = vadd.f32 %v1912, %v2096
    %v2113 = vadd.f32 %v1953, %v2097
    %v2114 = vadd.f32 %v1955, %v2098
    %v2115 = vadd.f32 %v1996, %v2099
    %v2116 = vadd.f32 %v1998, %v2100
    %v2117 = vadd.f32 %v2039, %v2101
    %v2118 = vadd.f32 %v2041, %v2102
    %v2119 = vadd.f32 %v1914, %v2103
    %v2120 = vadd.f32 %v1916, %v2104
    %v2121 = vadd.f32 %v1957, %v2105
    %v2122 = vadd.f32 %v1959, %v2106
    %v2123 = vadd.f32 %v2000, %v2107
    %v2124 = vadd.f32 %v2002, %v2108
    %v2125 = vadd.f32 %v2043, %v2109
    %v2126 = vadd.f32 %v2045, %v2110
    %v2127 = vmul.f32 %v2111, 0.7978846
    %v2128 = vmul.f32 %v2112, 0.7978846
    %v2129 = vmul.f32 %v2113, 0.7978846
    %v2130 = vmul.f32 %v2114, 0.7978846
    %v2131 = vmul.f32 %v2115, 0.7978846
    %v2132 = vmul.f32 %v2116, 0.7978846
    %v2133 = vmul.f32 %v2117, 0.7978846
    %v2134 = vmul.f32 %v2118, 0.7978846
    %v2135 = vmul.f32 %v2119, 0.7978846
    %v2136 = vmul.f32 %v2120, 0.7978846
    %v2137 = vmul.f32 %v2121, 0.7978846
    %v2138 = vmul.f32 %v2122, 0.7978846
    %v2139 = vmul.f32 %v2123, 0.7978846
    %v2140 = vmul.f32 %v2124, 0.7978846
    %v2141 = vmul.f32 %v2125, 0.7978846
    %v2142 = vmul.f32 %v2126, 0.7978846
    %v2143 = vtanh.pop %v2127
    %v2144 = vtanh.pop %v2128
    %v2145 = vtanh.pop %v2129
    %v2146 = vtanh.pop %v2130
    %v2147 = vtanh.pop %v2131
    %v2148 = vtanh.pop %v2132
    %v2149 = vtanh.pop %v2133
    %v2150 = vtanh.pop %v2134
    %v2151 = vtanh.pop %v2135
    %v2152 = vtanh.pop %v2136
    %v2153 = vtanh.pop %v2137
    %v2154 = vtanh.pop %v2138
    %v2155 = vtanh.pop %v2139
    %v2156 = vtanh.pop %v2140
    %v2157 = vtanh.pop %v2141
    %v2158 = vtanh.pop %v2142
    %v2159 = vadd.f32 %v2143, 1.0
    %v2160 = vadd.f32 %v2144, 1.0
    %v2161 = vadd.f32 %v2145, 1.0
    %v2162 = vadd.f32 %v2146, 1.0
    %v2163 = vadd.f32 %v2147, 1.0
    %v2164 = vadd.f32 %v2148, 1.0
    %v2165 = vadd.f32 %v2149, 1.0
    %v2166 = vadd.f32 %v2150, 1.0
    %v2167 = vadd.f32 %v2151, 1.0
    %v2168 = vadd.f32 %v2152, 1.0
    %v2169 = vadd.f32 %v2153, 1.0
    %v2170 = vadd.f32 %v2154, 1.0
    %v2171 = vadd.f32 %v2155, 1.0
    %v2172 = vadd.f32 %v2156, 1.0
    %v2173 = vadd.f32 %v2157, 1.0
    %v2174 = vadd.f32 %v2158, 1.0
    %v2175 = vmul.f32 %v2047, %v2159
    %v2176 = vmul.f32 %v2048, %v2160
    %v2177 = vmul.f32 %v2049, %v2161
    %v2178 = vmul.f32 %v2050, %v2162
    %v2179 = vmul.f32 %v2051, %v2163
    %v2180 = vmul.f32 %v2052, %v2164
    %v2181 = vmul.f32 %v2053, %v2165
    %v2182 = vmul.f32 %v2054, %v2166
    %v2183 = vmul.f32 %v2055, %v2167
    %v2184 = vmul.f32 %v2056, %v2168
    %v2185 = vmul.f32 %v2057, %v2169
    %v2186 = vmul.f32 %v2058, %v2170
    %v2187 = vmul.f32 %v2059, %v2171
    %v2188 = vmul.f32 %v2060, %v2172
    %v2189 = vmul.f32 %v2061, %v2173
    %v2190 = vmul.f32 %v2062, %v2174
    %v2191 = vpack.c.bf16 %v2183, %v2175
    %v2192 = vpack.c.bf16 %v2184, %v2176
    %v2193 = vpack.c.bf16 %v2185, %v2177
    %v2194 = vpack.c.bf16 %v2186, %v2178
    %v2195 = vpack.c.bf16 %v2187, %v2179
    %v2196 = vpack.c.bf16 %v2188, %v2180
    %v2197 = vpack.c.bf16 %v2189, %v2181
    %v2198 = vpack.c.bf16 %v2190, %v2182
    %v2199 = vld [vmem:[#allocation9] sm:$0xf]
    %v2200 = vld [vmem:[#allocation9 + $0x4] sm:$0xf]
    %v2201 = vld [vmem:[#allocation9 + $0x8] sm:$0xf]
    %v2202 = vld [vmem:[#allocation9 + $0xc] sm:$0xf]
    %v2203 = vld [vmem:[#allocation9 + $0x10] sm:$0xf]
    %v2204 = vld [vmem:[#allocation9 + $0x14] sm:$0xf]
    %v2205 = vld [vmem:[#allocation9 + $0x18] sm:$0xf]
    %v2206 = vld [vmem:[#allocation9 + $0x1c] sm:$0xf]
    %v2207 = vld [vmem:[#allocation9 + $0x20] sm:$0xf]
    %v2208 = vld [vmem:[#allocation9 + $0x24] sm:$0xf]
    %v2209 = vld [vmem:[#allocation9 + $0x28] sm:$0xf]
    %v2210 = vld [vmem:[#allocation9 + $0x2c] sm:$0xf]
    %v2211 = vld [vmem:[#allocation9 + $0x30] sm:$0xf]
    %v2212 = vld [vmem:[#allocation9 + $0x34] sm:$0xf]
    %v2213 = vld [vmem:[#allocation9 + $0x38] sm:$0xf]
    %v2214 = vld [vmem:[#allocation9 + $0x3c] sm:$0xf]
    %v2215 = vld [vmem:[#allocation9 + $0x40] sm:$0xf]
    %v2216 = vld [vmem:[#allocation9 + $0x44] sm:$0xf]
    %v2217 = vld [vmem:[#allocation9 + $0x48] sm:$0xf]
    %v2218 = vld [vmem:[#allocation9 + $0x4c] sm:$0xf]
    %v2219 = vld [vmem:[#allocation9 + $0x50] sm:$0xf]
    %v2220 = vld [vmem:[#allocation9 + $0x54] sm:$0xf]
    %v2221 = vld [vmem:[#allocation9 + $0x58] sm:$0xf]
    %v2222 = vld [vmem:[#allocation9 + $0x5c] sm:$0xf]
    %v2223 = vld [vmem:[#allocation9 + $0x60] sm:$0xf]
    %v2224 = vld [vmem:[#allocation9 + $0x64] sm:$0xf]
    %v2225 = vld [vmem:[#allocation9 + $0x68] sm:$0xf]
    %v2226 = vld [vmem:[#allocation9 + $0x6c] sm:$0xf]
    %v2227 = vld [vmem:[#allocation9 + $0x70] sm:$0xf]
    %v2228 = vld [vmem:[#allocation9 + $0x74] sm:$0xf]
    %v2229 = vld [vmem:[#allocation9 + $0x78] sm:$0xf]
    %v2230 = vld [vmem:[#allocation9 + $0x7c] sm:$0xf]
    %v2231 = vld [vmem:[#allocation9 + $0x80] sm:$0xf]
    %v2232 = vld [vmem:[#allocation9 + $0x84] sm:$0xf]
    %v2233 = vld [vmem:[#allocation9 + $0x88] sm:$0xf]
    %v2234 = vld [vmem:[#allocation9 + $0x8c] sm:$0xf]
    %v2235 = vld [vmem:[#allocation9 + $0x90] sm:$0xf]
    %v2236 = vld [vmem:[#allocation9 + $0x94] sm:$0xf]
    %v2237 = vld [vmem:[#allocation9 + $0x98] sm:$0xf]
    %v2238 = vld [vmem:[#allocation9 + $0x9c] sm:$0xf]
    %v2239 = vld [vmem:[#allocation9 + $0xa0] sm:$0xf]
    %v2240 = vld [vmem:[#allocation9 + $0xa4] sm:$0xf]
    %v2241 = vld [vmem:[#allocation9 + $0xa8] sm:$0xf]
    %v2242 = vld [vmem:[#allocation9 + $0xac] sm:$0xf]
    %v2243 = vld [vmem:[#allocation9 + $0xb0] sm:$0xf]
    %v2244 = vld [vmem:[#allocation9 + $0xb4] sm:$0xf]
    %v2245 = vld [vmem:[#allocation9 + $0xb8] sm:$0xf]
    %v2246 = vld [vmem:[#allocation9 + $0xbc] sm:$0xf]
    %v2247 = vld [vmem:[#allocation9 + $0xc0] sm:$0xf]
    %v2248 = vld [vmem:[#allocation9 + $0xc4] sm:$0xf]
    %v2249 = vld [vmem:[#allocation9 + $0xc8] sm:$0xf]
    %v2250 = vld [vmem:[#allocation9 + $0xcc] sm:$0xf]
    %v2251 = vld [vmem:[#allocation9 + $0xd0] sm:$0xf]
    %v2252 = vld [vmem:[#allocation9 + $0xd4] sm:$0xf]
    %v2253 = vld [vmem:[#allocation9 + $0xd8] sm:$0xf]
    %v2254 = vld [vmem:[#allocation9 + $0xdc] sm:$0xf]
    %v2255 = vld [vmem:[#allocation9 + $0xe0] sm:$0xf]
    %v2256 = vld [vmem:[#allocation9 + $0xe4] sm:$0xf]
    %v2257 = vld [vmem:[#allocation9 + $0xe8] sm:$0xf]
    %v2258 = vld [vmem:[#allocation9 + $0xec] sm:$0xf]
    %v2259 = vld [vmem:[#allocation9 + $0xf0] sm:$0xf]
    %v2260 = vld [vmem:[#allocation9 + $0xf4] sm:$0xf]
    %v2261 = vld [vmem:[#allocation9 + $0xf8] sm:$0xf]
    %v2262 = vld [vmem:[#allocation9 + $0xfc] sm:$0xf]
    %v2263 = vld [vmem:[#allocation9 + $0x100] sm:$0xf]
    %v2264 = vld [vmem:[#allocation9 + $0x104] sm:$0xf]
    %v2265 = vld [vmem:[#allocation9 + $0x108] sm:$0xf]
    %v2266 = vld [vmem:[#allocation9 + $0x10c] sm:$0xf]
    %v2267 = vld [vmem:[#allocation9 + $0x110] sm:$0xf]
    %v2268 = vld [vmem:[#allocation9 + $0x114] sm:$0xf]
    %v2269 = vld [vmem:[#allocation9 + $0x118] sm:$0xf]
    %v2270 = vld [vmem:[#allocation9 + $0x11c] sm:$0xf]
    %v2271 = vld [vmem:[#allocation9 + $0x120] sm:$0xf]
    %v2272 = vld [vmem:[#allocation9 + $0x124] sm:$0xf]
    %v2273 = vld [vmem:[#allocation9 + $0x128] sm:$0xf]
    %v2274 = vld [vmem:[#allocation9 + $0x12c] sm:$0xf]
    %v2275 = vld [vmem:[#allocation9 + $0x130] sm:$0xf]
    %v2276 = vld [vmem:[#allocation9 + $0x134] sm:$0xf]
    %v2277 = vld [vmem:[#allocation9 + $0x138] sm:$0xf]
    %v2278 = vld [vmem:[#allocation9 + $0x13c] sm:$0xf]
    %v2279 = vld [vmem:[#allocation9 + $0x140] sm:$0xf]
    %v2280 = vld [vmem:[#allocation9 + $0x144] sm:$0xf]
    %v2281 = vld [vmem:[#allocation9 + $0x148] sm:$0xf]
    %v2282 = vld [vmem:[#allocation9 + $0x14c] sm:$0xf]
    %v2283 = vld [vmem:[#allocation9 + $0x150] sm:$0xf]
    %v2284 = vld [vmem:[#allocation9 + $0x154] sm:$0xf]
    %v2285 = vld [vmem:[#allocation9 + $0x158] sm:$0xf]
    %v2286 = vld [vmem:[#allocation9 + $0x15c] sm:$0xf]
    %v2287 = vld [vmem:[#allocation9 + $0x160] sm:$0xf]
    %v2288 = vld [vmem:[#allocation9 + $0x164] sm:$0xf]
    %v2289 = vld [vmem:[#allocation9 + $0x168] sm:$0xf]
    %v2290 = vld [vmem:[#allocation9 + $0x16c] sm:$0xf]
    %v2291 = vld [vmem:[#allocation9 + $0x170] sm:$0xf]
    %v2292 = vld [vmem:[#allocation9 + $0x174] sm:$0xf]
    %v2293 = vld [vmem:[#allocation9 + $0x178] sm:$0xf]
    %v2294 = vld [vmem:[#allocation9 + $0x17c] sm:$0xf]
    %v2295 = vld [vmem:[#allocation9 + $0x180] sm:$0xf]
    %v2296 = vld [vmem:[#allocation9 + $0x184] sm:$0xf]
    %v2297 = vld [vmem:[#allocation9 + $0x188] sm:$0xf]
    %v2298 = vld [vmem:[#allocation9 + $0x18c] sm:$0xf]
    %v2299 = vld [vmem:[#allocation9 + $0x190] sm:$0xf]
    %v2300 = vld [vmem:[#allocation9 + $0x194] sm:$0xf]
    %v2301 = vld [vmem:[#allocation9 + $0x198] sm:$0xf]
    %v2302 = vld [vmem:[#allocation9 + $0x19c] sm:$0xf]
    %v2303 = vld [vmem:[#allocation9 + $0x1a0] sm:$0xf]
    %v2304 = vld [vmem:[#allocation9 + $0x1a4] sm:$0xf]
    %v2305 = vld [vmem:[#allocation9 + $0x1a8] sm:$0xf]
    %v2306 = vld [vmem:[#allocation9 + $0x1ac] sm:$0xf]
    %v2307 = vld [vmem:[#allocation9 + $0x1b0] sm:$0xf]
    %v2308 = vld [vmem:[#allocation9 + $0x1b4] sm:$0xf]
    %v2309 = vld [vmem:[#allocation9 + $0x1b8] sm:$0xf]
    %v2310 = vld [vmem:[#allocation9 + $0x1bc] sm:$0xf]
    %v2311 = vld [vmem:[#allocation9 + $0x1c0] sm:$0xf]
    %v2312 = vld [vmem:[#allocation9 + $0x1c4] sm:$0xf]
    %v2313 = vld [vmem:[#allocation9 + $0x1c8] sm:$0xf]
    %v2314 = vld [vmem:[#allocation9 + $0x1cc] sm:$0xf]
    %v2315 = vld [vmem:[#allocation9 + $0x1d0] sm:$0xf]
    %v2316 = vld [vmem:[#allocation9 + $0x1d4] sm:$0xf]
    %v2317 = vld [vmem:[#allocation9 + $0x1d8] sm:$0xf]
    %v2318 = vld [vmem:[#allocation9 + $0x1dc] sm:$0xf]
    %v2319 = vld [vmem:[#allocation9 + $0x1e0] sm:$0xf]
    %v2320 = vld [vmem:[#allocation9 + $0x1e4] sm:$0xf]
    %v2321 = vld [vmem:[#allocation9 + $0x1e8] sm:$0xf]
    %v2322 = vld [vmem:[#allocation9 + $0x1ec] sm:$0xf]
    %v2323 = vld [vmem:[#allocation9 + $0x1f0] sm:$0xf]
    %v2324 = vld [vmem:[#allocation9 + $0x1f4] sm:$0xf]
    %v2325 = vld [vmem:[#allocation9 + $0x1f8] sm:$0xf]
    %v2326 = vld [vmem:[#allocation9 + $0x1fc] sm:$0xf]
    %v2327 = vlaneseq
    %v2328 = vshrl.u32 %v2327, 7
    %v2329 = vsub.s32 2, %v2328
    %v2330 = vrot.slane %v103, %v2329
    %v2459 = vunpack.c.l.b16 %v2199
    %v2460 = vunpack.c.l.b16 %v2200
    %v2461 = vunpack.c.l.b16 %v2201
    %v2462 = vunpack.c.l.b16 %v2202
    %v2463 = vunpack.c.l.b16 %v2203
    %v2464 = vunpack.c.l.b16 %v2204
    %v2465 = vunpack.c.l.b16 %v2205
    %v2466 = vunpack.c.l.b16 %v2206
    %v2467 = vunpack.c.l.b16 %v2207
    %v2468 = vunpack.c.l.b16 %v2208
    %v2469 = vunpack.c.l.b16 %v2209
    %v2470 = vunpack.c.l.b16 %v2210
    %v2471 = vunpack.c.l.b16 %v2211
    %v2472 = vunpack.c.l.b16 %v2212
    %v2473 = vunpack.c.l.b16 %v2213
    %v2474 = vunpack.c.l.b16 %v2214
    %v2475 = vunpack.c.l.b16 %v2215
    %v2476 = vunpack.c.l.b16 %v2216
    %v2477 = vunpack.c.l.b16 %v2217
    %v2478 = vunpack.c.l.b16 %v2218
    %v2479 = vunpack.c.l.b16 %v2219
    %v2480 = vunpack.c.l.b16 %v2220
    %v2481 = vunpack.c.l.b16 %v2221
    %v2482 = vunpack.c.l.b16 %v2222
    %v2483 = vunpack.c.l.b16 %v2223
    %v2484 = vunpack.c.l.b16 %v2224
    %v2485 = vunpack.c.l.b16 %v2225
    %v2486 = vunpack.c.l.b16 %v2226
    %v2487 = vunpack.c.l.b16 %v2227
    %v2488 = vunpack.c.l.b16 %v2228
    %v2489 = vunpack.c.l.b16 %v2229
    %v2490 = vunpack.c.l.b16 %v2230
    %v2491 = vunpack.c.l.b16 %v2231
    %v2492 = vunpack.c.l.b16 %v2232
    %v2493 = vunpack.c.l.b16 %v2233
    %v2494 = vunpack.c.l.b16 %v2234
    %v2495 = vunpack.c.l.b16 %v2235
    %v2496 = vunpack.c.l.b16 %v2236
    %v2497 = vunpack.c.l.b16 %v2237
    %v2498 = vunpack.c.l.b16 %v2238
    %v2499 = vunpack.c.l.b16 %v2239
    %v2500 = vunpack.c.l.b16 %v2240
    %v2501 = vunpack.c.l.b16 %v2241
    %v2502 = vunpack.c.l.b16 %v2242
    %v2503 = vunpack.c.l.b16 %v2243
    %v2504 = vunpack.c.l.b16 %v2244
    %v2505 = vunpack.c.l.b16 %v2245
    %v2506 = vunpack.c.l.b16 %v2246
    %v2507 = vunpack.c.l.b16 %v2247
    %v2508 = vunpack.c.l.b16 %v2248
    %v2509 = vunpack.c.l.b16 %v2249
    %v2510 = vunpack.c.l.b16 %v2250
    %v2511 = vunpack.c.l.b16 %v2251
    %v2512 = vunpack.c.l.b16 %v2252
    %v2513 = vunpack.c.l.b16 %v2253
    %v2514 = vunpack.c.l.b16 %v2254
    %v2515 = vunpack.c.l.b16 %v2255
    %v2516 = vunpack.c.l.b16 %v2256
    %v2517 = vunpack.c.l.b16 %v2257
    %v2518 = vunpack.c.l.b16 %v2258
    %v2519 = vunpack.c.l.b16 %v2259
    %v2520 = vunpack.c.l.b16 %v2260
    %v2521 = vunpack.c.l.b16 %v2261
    %v2522 = vunpack.c.l.b16 %v2262
    %v2523 = vunpack.c.l.b16 %v2263
    %v2524 = vunpack.c.l.b16 %v2264
    %v2525 = vunpack.c.l.b16 %v2265
    %v2526 = vunpack.c.l.b16 %v2266
    %v2527 = vunpack.c.l.b16 %v2267
    %v2528 = vunpack.c.l.b16 %v2268
    %v2529 = vunpack.c.l.b16 %v2269
    %v2530 = vunpack.c.l.b16 %v2270
    %v2531 = vunpack.c.l.b16 %v2271
    %v2532 = vunpack.c.l.b16 %v2272
    %v2533 = vunpack.c.l.b16 %v2273
    %v2534 = vunpack.c.l.b16 %v2274
    %v2535 = vunpack.c.l.b16 %v2275
    %v2536 = vunpack.c.l.b16 %v2276
    %v2537 = vunpack.c.l.b16 %v2277
    %v2538 = vunpack.c.l.b16 %v2278
    %v2539 = vunpack.c.l.b16 %v2279
    %v2540 = vunpack.c.l.b16 %v2280
    %v2541 = vunpack.c.l.b16 %v2281
    %v2542 = vunpack.c.l.b16 %v2282
    %v2543 = vunpack.c.l.b16 %v2283
    %v2544 = vunpack.c.l.b16 %v2284
    %v2545 = vunpack.c.l.b16 %v2285
    %v2546 = vunpack.c.l.b16 %v2286
    %v2547 = vunpack.c.l.b16 %v2287
    %v2548 = vunpack.c.l.b16 %v2288
    %v2549 = vunpack.c.l.b16 %v2289
    %v2550 = vunpack.c.l.b16 %v2290
    %v2551 = vunpack.c.l.b16 %v2291
    %v2552 = vunpack.c.l.b16 %v2292
    %v2553 = vunpack.c.l.b16 %v2293
    %v2554 = vunpack.c.l.b16 %v2294
    %v2555 = vunpack.c.l.b16 %v2295
    %v2556 = vunpack.c.l.b16 %v2296
    %v2557 = vunpack.c.l.b16 %v2297
    %v2558 = vunpack.c.l.b16 %v2298
    %v2559 = vunpack.c.l.b16 %v2299
    %v2560 = vunpack.c.l.b16 %v2300
    %v2561 = vunpack.c.l.b16 %v2301
    %v2562 = vunpack.c.l.b16 %v2302
    %v2563 = vunpack.c.l.b16 %v2303
    %v2564 = vunpack.c.l.b16 %v2304
    %v2565 = vunpack.c.l.b16 %v2305
    %v2566 = vunpack.c.l.b16 %v2306
    %v2567 = vunpack.c.l.b16 %v2307
    %v2568 = vunpack.c.l.b16 %v2308
    %v2569 = vunpack.c.l.b16 %v2309
    %v2570 = vunpack.c.l.b16 %v2310
    %v2571 = vunpack.c.l.b16 %v2311
    %v2572 = vunpack.c.l.b16 %v2312
    %v2573 = vunpack.c.l.b16 %v2313
    %v2574 = vunpack.c.l.b16 %v2314
    %v2575 = vunpack.c.l.b16 %v2315
    %v2576 = vunpack.c.l.b16 %v2316
    %v2577 = vunpack.c.l.b16 %v2317
    %v2578 = vunpack.c.l.b16 %v2318
    %v2579 = vunpack.c.l.b16 %v2319
    %v2580 = vunpack.c.l.b16 %v2320
    %v2581 = vunpack.c.l.b16 %v2321
    %v2582 = vunpack.c.l.b16 %v2322
    %v2583 = vunpack.c.l.b16 %v2323
    %v2584 = vunpack.c.l.b16 %v2324
    %v2585 = vunpack.c.l.b16 %v2325
    %v2586 = vunpack.c.l.b16 %v2326
    %v2587 = vpack.c.b16 %v2460, %v2459
    %v2588 = vpack.c.b16 %v2462, %v2461
    %v2589 = vpack.c.b16 %v2464, %v2463
    %v2590 = vpack.c.b16 %v2466, %v2465
    %v2591 = vpack.c.b16 %v2468, %v2467
    %v2592 = vpack.c.b16 %v2470, %v2469
    %v2593 = vpack.c.b16 %v2472, %v2471
    %v2594 = vpack.c.b16 %v2474, %v2473
    %v2595 = vpack.c.b16 %v2476, %v2475
    %v2596 = vpack.c.b16 %v2478, %v2477
    %v2597 = vpack.c.b16 %v2480, %v2479
    %v2598 = vpack.c.b16 %v2482, %v2481
    %v2599 = vpack.c.b16 %v2484, %v2483
    %v2600 = vpack.c.b16 %v2486, %v2485
    %v2601 = vpack.c.b16 %v2488, %v2487
    %v2602 = vpack.c.b16 %v2490, %v2489
    %v2603 = vpack.c.b16 %v2492, %v2491
    %v2604 = vpack.c.b16 %v2494, %v2493
    %v2605 = vpack.c.b16 %v2496, %v2495
    %v2606 = vpack.c.b16 %v2498, %v2497
    %v2607 = vpack.c.b16 %v2500, %v2499
    %v2608 = vpack.c.b16 %v2502, %v2501
    %v2609 = vpack.c.b16 %v2504, %v2503
    %v2610 = vpack.c.b16 %v2506, %v2505
    %v2611 = vpack.c.b16 %v2508, %v2507
    %v2612 = vpack.c.b16 %v2510, %v2509
    %v2613 = vpack.c.b16 %v2512, %v2511
    %v2614 = vpack.c.b16 %v2514, %v2513
    %v2615 = vpack.c.b16 %v2516, %v2515
    %v2616 = vpack.c.b16 %v2518, %v2517
    %v2617 = vpack.c.b16 %v2520, %v2519
    %v2618 = vpack.c.b16 %v2522, %v2521
    %v2619 = vpack.c.b16 %v2524, %v2523
    %v2620 = vpack.c.b16 %v2526, %v2525
    %v2621 = vpack.c.b16 %v2528, %v2527
    %v2622 = vpack.c.b16 %v2530, %v2529
    %v2623 = vpack.c.b16 %v2532, %v2531
    %v2624 = vpack.c.b16 %v2534, %v2533
    %v2625 = vpack.c.b16 %v2536, %v2535
    %v2626 = vpack.c.b16 %v2538, %v2537
    %v2627 = vpack.c.b16 %v2540, %v2539
    %v2628 = vpack.c.b16 %v2542, %v2541
    %v2629 = vpack.c.b16 %v2544, %v2543
    %v2630 = vpack.c.b16 %v2546, %v2545
    %v2631 = vpack.c.b16 %v2548, %v2547
    %v2632 = vpack.c.b16 %v2550, %v2549
    %v2633 = vpack.c.b16 %v2552, %v2551
    %v2634 = vpack.c.b16 %v2554, %v2553
    %v2635 = vpack.c.b16 %v2556, %v2555
    %v2636 = vpack.c.b16 %v2558, %v2557
    %v2637 = vpack.c.b16 %v2560, %v2559
    %v2638 = vpack.c.b16 %v2562, %v2561
    %v2639 = vpack.c.b16 %v2564, %v2563
    %v2640 = vpack.c.b16 %v2566, %v2565
    %v2641 = vpack.c.b16 %v2568, %v2567
    %v2642 = vpack.c.b16 %v2570, %v2569
    %v2643 = vpack.c.b16 %v2572, %v2571
    %v2644 = vpack.c.b16 %v2574, %v2573
    %v2645 = vpack.c.b16 %v2576, %v2575
    %v2646 = vpack.c.b16 %v2578, %v2577
    %v2647 = vpack.c.b16 %v2580, %v2579
    %v2648 = vpack.c.b16 %v2582, %v2581
    %v2649 = vpack.c.b16 %v2584, %v2583
    %v2650 = vpack.c.b16 %v2586, %v2585
    %2715 = vmatprep.subr.bf16.mxu0 0
    %2716 = vmatpush1.bf16.msra.mxu0 %v2587
    %2717 = vmatprep.subr.bf16.mxu0 0
    %2718 = vmatpush1.bf16.msra.mxu0 %v2588
    %2719 = vmatprep.subr.bf16.mxu0 0
    %2720 = vmatpush1.bf16.msra.mxu0 %v2589
    %2721 = vmatprep.subr.bf16.mxu0 0
    %2722 = vmatpush1.bf16.msra.mxu0 %v2590
    %2723 = vmatprep.subr.bf16.mxu0 0
    %2724 = vmatpush1.bf16.msra.mxu0 %v2591
    %2725 = vmatprep.subr.bf16.mxu0 0
    %2726 = vmatpush1.bf16.msra.mxu0 %v2592
    %2727 = vmatprep.subr.bf16.mxu0 0
    %2728 = vmatpush1.bf16.msra.mxu0 %v2593
    %2729 = vmatprep.subr.bf16.mxu0 0
    %2730 = vmatpush1.bf16.msra.mxu0 %v2594
    %2731 = vmatprep.subr.bf16.mxu0 0
    %2732 = vmatpush1.bf16.msra.mxu0 %v2595
    %2733 = vmatprep.subr.bf16.mxu0 0
    %2734 = vmatpush1.bf16.msra.mxu0 %v2596
    %2735 = vmatprep.subr.bf16.mxu0 0
    %2736 = vmatpush1.bf16.msra.mxu0 %v2597
    %2737 = vmatprep.subr.bf16.mxu0 0
    %2738 = vmatpush1.bf16.msra.mxu0 %v2598
    %2739 = vmatprep.subr.bf16.mxu0 0
    %2740 = vmatpush1.bf16.msra.mxu0 %v2599
    %2741 = vmatprep.subr.bf16.mxu0 0
    %2742 = vmatpush1.bf16.msra.mxu0 %v2600
    %2743 = vmatprep.subr.bf16.mxu0 0
    %2744 = vmatpush1.bf16.msra.mxu0 %v2601
    %2745 = vmatprep.subr.bf16.mxu0 0
    %2746 = vmatpush1.bf16.msra.mxu0 %v2602
    %2747 = vmatprep.mubr.bf16.mxu0 %v2192
    %2748 = vmatmul.mubr.bf16.gmra.mrb[0].mxu0 %v2191
    %v2749 = vpop.f32.mrb[0].mxu0
    %v2750 = vadd.f32 %v2330, %v2749
    %v2751 = vpop.f32.mrb[0].mxu0
    %v2752 = vpop.f32.mrb[0].mxu0
    %v2753 = vadd.f32 %v2330, %v2752
    %v2754 = vpop.f32.mrb[0].mxu0
    %2755 = vdwg.mxu0
    %2756 = vmatprep.subr.bf16.mxu0 0
    %2757 = vmatpush1.bf16.msra.mxu0 %v2603
    %2758 = vmatprep.subr.bf16.mxu0 0
    %2759 = vmatpush1.bf16.msra.mxu0 %v2604
    %2760 = vmatprep.subr.bf16.mxu0 0
    %2761 = vmatpush1.bf16.msra.mxu0 %v2605
    %2762 = vmatprep.subr.bf16.mxu0 0
    %2763 = vmatpush1.bf16.msra.mxu0 %v2606
    %2764 = vmatprep.subr.bf16.mxu0 0
    %2765 = vmatpush1.bf16.msra.mxu0 %v2607
    %2766 = vmatprep.subr.bf16.mxu0 0
    %2767 = vmatpush1.bf16.msra.mxu0 %v2608
    %2768 = vmatprep.subr.bf16.mxu0 0
    %2769 = vmatpush1.bf16.msra.mxu0 %v2609
    %2770 = vmatprep.subr.bf16.mxu0 0
    %2771 = vmatpush1.bf16.msra.mxu0 %v2610
    %2772 = vmatprep.subr.bf16.mxu0 0
    %2773 = vmatpush1.bf16.msra.mxu0 %v2611
    %2774 = vmatprep.subr.bf16.mxu0 0
    %2775 = vmatpush1.bf16.msra.mxu0 %v2612
    %2776 = vmatprep.subr.bf16.mxu0 0
    %2777 = vmatpush1.bf16.msra.mxu0 %v2613
    %2778 = vmatprep.subr.bf16.mxu0 0
    %2779 = vmatpush1.bf16.msra.mxu0 %v2614
    %2780 = vmatprep.subr.bf16.mxu0 0
    %2781 = vmatpush1.bf16.msra.mxu0 %v2615
    %2782 = vmatprep.subr.bf16.mxu0 0
    %2783 = vmatpush1.bf16.msra.mxu0 %v2616
    %2784 = vmatprep.subr.bf16.mxu0 0
    %2785 = vmatpush1.bf16.msra.mxu0 %v2617
    %2786 = vmatprep.subr.bf16.mxu0 0
    %2787 = vmatpush1.bf16.msra.mxu0 %v2618
    %2788 = vmatprep.mubr.bf16.mxu0 %v2194
    %2789 = vmatmul.mubr.bf16.gmra.mrb[0].mxu0 %v2193
    %v2790 = vpop.f32.mrb[0].mxu0
    %v2791 = vadd.f32 %v2750, %v2790
    %v2792 = vpop.f32.mrb[0].mxu0
    %v2793 = vpop.f32.mrb[0].mxu0
    %v2794 = vadd.f32 %v2753, %v2793
    %v2795 = vpop.f32.mrb[0].mxu0
    %2796 = vdwg.mxu0
    %2797 = vmatprep.subr.bf16.mxu0 0
    %2798 = vmatpush1.bf16.msra.mxu0 %v2619
    %2799 = vmatprep.subr.bf16.mxu0 0
    %2800 = vmatpush1.bf16.msra.mxu0 %v2620
    %2801 = vmatprep.subr.bf16.mxu0 0
    %2802 = vmatpush1.bf16.msra.mxu0 %v2621
    %2803 = vmatprep.subr.bf16.mxu0 0
    %2804 = vmatpush1.bf16.msra.mxu0 %v2622
    %2805 = vmatprep.subr.bf16.mxu0 0
    %2806 = vmatpush1.bf16.msra.mxu0 %v2623
    %2807 = vmatprep.subr.bf16.mxu0 0
    %2808 = vmatpush1.bf16.msra.mxu0 %v2624
    %2809 = vmatprep.subr.bf16.mxu0 0
    %2810 = vmatpush1.bf16.msra.mxu0 %v2625
    %2811 = vmatprep.subr.bf16.mxu0 0
    %2812 = vmatpush1.bf16.msra.mxu0 %v2626
    %2813 = vmatprep.subr.bf16.mxu0 0
    %2814 = vmatpush1.bf16.msra.mxu0 %v2627
    %2815 = vmatprep.subr.bf16.mxu0 0
    %2816 = vmatpush1.bf16.msra.mxu0 %v2628
    %2817 = vmatprep.subr.bf16.mxu0 0
    %2818 = vmatpush1.bf16.msra.mxu0 %v2629
    %2819 = vmatprep.subr.bf16.mxu0 0
    %2820 = vmatpush1.bf16.msra.mxu0 %v2630
    %2821 = vmatprep.subr.bf16.mxu0 0
    %2822 = vmatpush1.bf16.msra.mxu0 %v2631
    %2823 = vmatprep.subr.bf16.mxu0 0
    %2824 = vmatpush1.bf16.msra.mxu0 %v2632
    %2825 = vmatprep.subr.bf16.mxu0 0
    %2826 = vmatpush1.bf16.msra.mxu0 %v2633
    %2827 = vmatprep.subr.bf16.mxu0 0
    %2828 = vmatpush1.bf16.msra.mxu0 %v2634
    %2829 = vmatprep.mubr.bf16.mxu0 %v2196
    %2830 = vmatmul.mubr.bf16.gmra.mrb[0].mxu0 %v2195
    %v2831 = vpop.f32.mrb[0].mxu0
    %v2832 = vadd.f32 %v2791, %v2831
    %v2833 = vpop.f32.mrb[0].mxu0
    %v2834 = vpop.f32.mrb[0].mxu0
    %v2835 = vadd.f32 %v2794, %v2834
    %v2836 = vpop.f32.mrb[0].mxu0
    %2837 = vdwg.mxu0
    %2838 = vmatprep.subr.bf16.mxu0 0
    %2839 = vmatpush1.bf16.msra.mxu0 %v2635
    %2840 = vmatprep.subr.bf16.mxu0 0
    %2841 = vmatpush1.bf16.msra.mxu0 %v2636
    %2842 = vmatprep.subr.bf16.mxu0 0
    %2843 = vmatpush1.bf16.msra.mxu0 %v2637
    %2844 = vmatprep.subr.bf16.mxu0 0
    %2845 = vmatpush1.bf16.msra.mxu0 %v2638
    %2846 = vmatprep.subr.bf16.mxu0 0
    %2847 = vmatpush1.bf16.msra.mxu0 %v2639
    %2848 = vmatprep.subr.bf16.mxu0 0
    %2849 = vmatpush1.bf16.msra.mxu0 %v2640
    %2850 = vmatprep.subr.bf16.mxu0 0
    %2851 = vmatpush1.bf16.msra.mxu0 %v2641
    %2852 = vmatprep.subr.bf16.mxu0 0
    %2853 = vmatpush1.bf16.msra.mxu0 %v2642
    %2854 = vmatprep.subr.bf16.mxu0 0
    %2855 = vmatpush1.bf16.msra.mxu0 %v2643
    %2856 = vmatprep.subr.bf16.mxu0 0
    %2857 = vmatpush1.bf16.msra.mxu0 %v2644
    %2858 = vmatprep.subr.bf16.mxu0 0
    %2859 = vmatpush1.bf16.msra.mxu0 %v2645
    %2860 = vmatprep.subr.bf16.mxu0 0
    %2861 = vmatpush1.bf16.msra.mxu0 %v2646
    %2862 = vmatprep.subr.bf16.mxu0 0
    %2863 = vmatpush1.bf16.msra.mxu0 %v2647
    %2864 = vmatprep.subr.bf16.mxu0 0
    %2865 = vmatpush1.bf16.msra.mxu0 %v2648
    %2866 = vmatprep.subr.bf16.mxu0 0
    %2867 = vmatpush1.bf16.msra.mxu0 %v2649
    %2868 = vmatprep.subr.bf16.mxu0 0
    %2869 = vmatpush1.bf16.msra.mxu0 %v2650
    %2870 = vmatprep.mubr.bf16.mxu0 %v2198
    %2871 = vmatmul.mubr.bf16.gmra.mrb[0].mxu0 %v2197
    %v2872 = vpop.f32.mrb[0].mxu0
    %v2873 = vadd.f32 %v2832, %v2872
    %v2874 = vpop.f32.mrb[0].mxu0
    %v2875 = vpop.f32.mrb[0].mxu0
    %v2876 = vadd.f32 %v2835, %v2875
    %v2877 = vpop.f32.mrb[0].mxu0
    %2878 = vdwg.mxu0
    %v2879 = vadd.f32 %v1456, %v2873
    %v2880 = vadd.f32 %v1457, %v2876
    %2881 = vadd.xlane.f32.xlu0 %v2879
    %v2882 = vpop.xlane.xlu0 %2881
    %2883 = vadd.xlane.f32.xlu0 %v2880
    %v2884 = vpop.xlane.xlu0 %2883
    %v2885 = vmul.f32 %v2882, 0.010416667
    %v2886 = vmul.f32 %v2884, 0.010416667
    %v2887 = vsub.f32 %v2879, %v2885
    %v2888 = vsub.f32 %v2880, %v2886
    %v2889 = vmul.f32 %v2887, %v102
    %v2890 = vmul.f32 %v2888, %v102
    %v2891 = vmul.f32 %v2889, %v2889
    %v2892 = vmul.f32 %v2890, %v2890
    %2893 = vadd.xlane.f32.xlu0 %v2891
    %v2894 = vpop.xlane.xlu0 %2893
    %2895 = vadd.xlane.f32.xlu0 %v2892
    %v2896 = vpop.xlane.xlu0 %2895
    %v2897 = vmul.f32 %v2894, 0.010416667
    %v2898 = vmul.f32 %v2896, 0.010416667
    %v2899 = vadd.f32 %v2897, 1e-05
    %v2900 = vadd.f32 %v2898, 1e-05
    %v2901 = vrsqrt.pop %v2899
    %v2902 = vrsqrt.pop %v2900
    %v2903 = vmul.f32 %v2889, %v2901
    %v2904 = vmul.f32 %v2890, %v2902
    %v2905 = vmul.f32 %v2903, %v1449
    %v2906 = vmul.f32 %v2904, %v1449
    %v2907 = vadd.f32 %v2905, %v1455
    %v2908 = vadd.f32 %v2906, %v1455
    %2909 = vst [vmem:[#allocation2] sm:$0xff] %v2907
    %2910 = vst [vmem:[#allocation2 + $0x8] sm:$0xff] %v2908
    // Predicated region
    $region46: #{tpu_custom_call.1} parent=1 // pred_check
      %p2911 = pneg %p88
    $region47: #{tpu_custom_call.1} parent=1 // pred_check_branch
      %2913 = sbr.rel (%p2911) target = $region49
    $region48: #{tpu_custom_call.1} parent=1 // pred_region
      %2914 = vst [vmem:[#allocation12] sm:$0xff] %v2907
      %2915 = vst [vmem:[#allocation12 + $0x8] sm:$0xff] %v2908
    $region49: #{tpu_custom_call.1} parent=1 // pred_fallthru
      _
    // Predicated region
    $region50: #{tpu_custom_call.1} parent=1 // pred_check
      _
    $region51: #{tpu_custom_call.1} parent=1 // pred_check_branch
      %2917 = sbr.rel (0) target = $region53
    $region52: #{tpu_custom_call.1} parent=1 // pred_region
      %s2919 = ssub.s32 256, 256
      %2920 = vsyncadd [#allocation5], %s2919
      %s2921 = sshll.u32 [#allocation12], 4
      %s2922 = int_to_ptr.vmem [resolvable:$true] %s2921
      %2927 = dma.vmem_to_hbm [thread:$0]  %s2922, 256, %s5, [#allocation5], 128, 128, 8
    $region53: #{tpu_custom_call.1} parent=1 // pred_fallthru
      _
    // Predicated region
    $region54: #{tpu_custom_call.1} parent=1 // pred_check
      _
    $region55: #{tpu_custom_call.1} parent=1 // pred_check_branch
      %2929 = sbr.rel (0) target = $region57
    $region56: #{tpu_custom_call.1} parent=1 // pred_region
      %2930 = dma.done [#allocation5], 256
    $region57: #{tpu_custom_call.1} parent=1 // pred_fallthru
      _
    %2931 = vsyncpa [#allocation4], 1
    %2932 = vsyncpa [#allocation7], 1
    %2933 = vsyncpa [#allocation10], 1
    %2934 = vsyncpa [#allocation5], 1

</llo_original>
